<compile_context>
chip_gen: v7x
topology: tpu7x:2x2x1
jax: 0.10.0
libtpu: 0.0.40
codegen_flags: <defaults>
</compile_context>

<pallas_src>
import math
import functools

import jax
import jax.numpy as jnp
from jax.experimental import pallas as pl
from jax.experimental.pallas import tpu as pltpu

_EPS = 1e-5
_NEG_INF = -1e9


# ----------------------------------------------------------------------------
# Pallas kernel: embedding prologue + the FULL stack of post-norm
# TransformerEncoderLayers (MHA, residual+LN, ReLU MLP, residual+LN), fused.
# ----------------------------------------------------------------------------
def _fused_encoder_kernel(meta_ref, emb_ref, kpz_ref, pe_ref, w_ref, b_ref,
                          o_ref, *, n_layers, n_head, d_model, n_hid,
                          seq_plus):
    D = d_model
    dh = D // n_head
    scale = 1.0 / math.sqrt(dh)

    # ---------------- prologue: embedding + time feature + kp_zero + PE -----
    meta = meta_ref[...]                       # [R, 3] = (event, time, is_real)
    R = meta.shape[0]
    ev = meta[:, 0:1]                          # event_type in {0, 1}
    ti = meta[:, 1:2]                          # clamp(time/1000, 0, 1)
    real = meta[:, 2:3]                        # 0 for the appended kp_zero row

    emb = emb_ref[...]                         # [2, D], lane D-1 zero padded
    row_emb = ev * emb[1:2, :] + (1.0 - ev) * emb[0:1, :]      # gather -> select
    lane = jax.lax.broadcasted_iota(jnp.int32, (R, D), 1)
    row_emb = row_emb + jnp.where(lane == D - 1, ti, 0.0)      # concat -> select
    x = real * row_emb + (1.0 - real) * kpz_ref[...]           # kp_zero row
    x = x * math.sqrt(D) + pe_ref[...]

    # Block-diagonal attention bias (batch folded into rows), built in-kernel.
    # floor((idx + 0.5)/Sp) is a robust integer-division-by-constant on the VPU.
    rid = jax.lax.broadcasted_iota(jnp.int32, (R, R), 0).astype(jnp.float32)
    cid = jax.lax.broadcasted_iota(jnp.int32, (R, R), 1).astype(jnp.float32)
    inv_sp = 1.0 / float(seq_plus)
    same_seq = (jnp.floor((rid + 0.5) * inv_sp)
                == jnp.floor((cid + 0.5) * inv_sp))
    mask = jnp.where(same_seq, 0.0, _NEG_INF)

    # ---------------- transformer encoder stack ------------------------------
    for l in range(n_layers):                  # static unroll (n_layers = 3)
        bsl = b_ref[l]                         # [8, LW] bias / LN slab

        # --- fused QKV projection: ONE lane-dense MXU dot --------------------
        w_attn = w_ref[l, 0:D, :]              # [D, LW]: cols [Wq|Wk|Wv|Wo|pad]
        qkv = jnp.dot(x, w_attn,
                      preferred_element_type=jnp.float32) + bsl[0:1, :]
        # (columns 3D:LW of qkv are x@Wo / padding garbage; never read)

        ctx_heads = []
        for h in range(n_head):                # static unroll (n_head = 2)
            q = qkv[:, h * dh:(h + 1) * dh]
            k = qkv[:, D + h * dh:D + (h + 1) * dh]
            v = qkv[:, 2 * D + h * dh:2 * D + (h + 1) * dh]
            s = jnp.einsum('qe,ke->qk', q, k,
                           preferred_element_type=jnp.float32) * scale + mask
            s = s - jnp.max(s, axis=-1, keepdims=True)
            p = jnp.exp(s)
            p = p / jnp.sum(p, axis=-1, keepdims=True)   # exact (review note)
            ctx_heads.append(jnp.dot(p, v, preferred_element_type=jnp.float32))

        # --- fused output projection: one [D, D] dot --------------------------
        ctx = jnp.concatenate(ctx_heads, axis=-1)                   # [R, D]
        attn = jnp.dot(ctx, w_attn[:, 3 * D:4 * D],
                       preferred_element_type=jnp.float32) + bsl[1:2, 0:D]

        # --- residual + LayerNorm 1 (post-norm, eps = 1e-5) -------------------
        x1 = x + attn                          # dropout == identity (eval)
        mu1 = jnp.mean(x1, axis=-1, keepdims=True)
        var1 = jnp.mean((x1 - mu1) ** 2, axis=-1, keepdims=True)
        x1n = ((x1 - mu1) * jax.lax.rsqrt(var1 + _EPS)
               * bsl[2:3, 0:D] + bsl[3:4, 0:D])

        # --- feed-forward (ReLU) ----------------------------------------------
        w1 = w_ref[l, D:2 * D, :]                        # [D, LW]
        w2 = w_ref[l, 2 * D:2 * D + n_hid, :]            # [n_hid, LW]
        h1 = jnp.maximum(
            jnp.dot(x1n, w1, preferred_element_type=jnp.float32)[:, 0:n_hid]
            + bsl[4:5, 0:n_hid], 0.0)                    # [R, n_hid]
        ff = (jnp.dot(h1, w2, preferred_element_type=jnp.float32)[:, 0:D]
              + bsl[5:6, 0:D])

        # --- residual + LayerNorm 2 -------------------------------------------
        x2 = x1n + ff
        mu2 = jnp.mean(x2, axis=-1, keepdims=True)
        var2 = jnp.mean((x2 - mu2) ** 2, axis=-1, keepdims=True)
        x = ((x2 - mu2) * jax.lax.rsqrt(var2 + _EPS)
             * bsl[6:7, 0:D] + bsl[7:8, 0:D])

    o_ref[...] = x.astype(o_ref.dtype)


# ----------------------------------------------------------------------------
# Wrapper: one pallas_call for the whole KeyPwEncoder forward pass
# ----------------------------------------------------------------------------
def positional_encoding_table(seq_len, d_model):
    assert d_model % 2 == 0, "positional encoding table assumes even d_model"
    position = jnp.arange(seq_len, dtype=jnp.float32)[:, None]
    div_term = jnp.exp(jnp.arange(0, d_model, 2, dtype=jnp.float32)
                       * (-math.log(10000.0) / d_model))
    pe = jnp.zeros((seq_len, d_model), dtype=jnp.float32)
    pe = pe.at[:, 0::2].set(jnp.sin(position * div_term))
    pe = pe.at[:, 1::2].set(jnp.cos(position * div_term))
    return pe


def key_pw_encoder_forward(event_type, time_interval, emb_table, kp_zero,
                           packed_params, n_head, seq_per_block=None):
    """event_type: [B,S] int32 in {0,1}; time_interval: [B,S] float32.

    Returns [B, S+1, D] float32.  Everything D-wide (embedding select, concat,
    scale, PE add, 3 transformer layers) runs inside ONE pallas_call; the
    wrapper only builds a tiny [B*(S+1), 3] metadata slab.
    seq_per_block: sequences per grid step.  Default = whole batch in one
    block (best on single-TC v5e/v6e; at this batch size also best on v7x).
    Multi-block grids require seq_per_block*(S+1) % 8 == 0 (BlockSpec rule).
    """
    B, S = event_type.shape
    Sp = S + 1
    D = kp_zero.shape[-1]
    w_slab, b_slab = packed_params["w"], packed_params["b"]
    n_layers = w_slab.shape[0]
    n_hid = w_slab.shape[1] - 2 * D

    if seq_per_block is None:
        seq_per_block = B
    assert B % seq_per_block == 0
    rows = seq_per_block * Sp
    num_blocks = B // seq_per_block
    if num_blocks > 1:
        assert rows % 8 == 0, (
            "multi-block grids need 8-aligned row blocks; use the default "
            "single-block configuration for small batches")

    # Tiny [B, Sp]-sized scalar features (no D-wide work wrapper-side).
    ev = jnp.pad(event_type.astype(jnp.float32), ((0, 0), (0, 1)))
    ti = jnp.pad(jnp.clip(time_interval / 1000.0, 0.0, 1.0), ((0, 0), (0, 1)))
    is_real = jnp.pad(jnp.ones((B, S), jnp.float32), ((0, 0), (0, 1)))
    meta = jnp.stack([ev, ti, is_real], axis=-1).reshape(B * Sp, 3)

    emb_pad = jnp.pad(emb_table,
                      ((0, 0), (0, D - emb_table.shape[1])))          # [2, D]
    pe_full = jnp.tile(positional_encoding_table(Sp, D), (B, 1))      # const

    grid = (num_blocks,)
    in_specs = [
        pl.BlockSpec((rows, 3), lambda i: (i, 0)),        # meta
        pl.BlockSpec(emb_pad.shape, lambda i: (0, 0)),    # padded emb table
        pl.BlockSpec(kp_zero.shape, lambda i: (0, 0)),    # kp_zero
        pl.BlockSpec((rows, D), lambda i: (i, 0)),        # tiled PE table
        pl.BlockSpec(w_slab.shape, lambda i: (0, 0, 0)),  # weight slab
        pl.BlockSpec(b_slab.shape, lambda i: (0, 0, 0)),  # bias / LN slab
    ]
    out2d = pl.pallas_call(
        functools.partial(_fused_encoder_kernel, n_layers=n_layers,
                          n_head=n_head, d_model=D, n_hid=n_hid, seq_plus=Sp),
        out_shape=jax.ShapeDtypeStruct((B * Sp, D), jnp.float32),
        grid=grid,
        in_specs=in_specs,
        out_specs=pl.BlockSpec((rows, D), lambda i: (i, 0)),
        compiler_params=pltpu.CompilerParams(
            dimension_semantics=("parallel",)),
    )(meta, emb_pad, kp_zero, pe_full, w_slab, b_slab)
    return out2d.reshape(B, Sp, D)


# ----------------------------------------------------------------------------
# Wrapper-side packing of torch-style params into two lane-dense slabs
# ----------------------------------------------------------------------------
def pack_params(torch_layers):
    """Pack each layer into:
       weight slab [D(attn: Wqkv|Wo) + D(W1) + n_hid(W2), LW]  (LW = 128 here)
       bias slab   [8, LW]: qkv_b, o_b, ln1w, ln1b, b1, b2, ln2w, ln2b
    stacked over layers.  All matmul weights are pre-transposed to x @ W form.
    """
    D = torch_layers[0]["norm1_weight"].shape[0]
    n_hid = torch_layers[0]["linear1_weight"].shape[0]
    LW = max(4 * D, n_hid)

    def pad_lanes(a):
        return jnp.pad(a, ((0, 0), (0, LW - a.shape[-1])))

    w_slabs, b_slabs = [], []
    for p in torch_layers:
        w_qkv = jnp.transpose(p["in_proj_weight"])       # [D, 3D]
        w_o = jnp.transpose(p["out_proj_weight"])        # [D, D]
        w1 = jnp.transpose(p["linear1_weight"])          # [D, n_hid]
        w2 = jnp.transpose(p["linear2_weight"])          # [n_hid, D]
        w_slabs.append(jnp.concatenate([
            pad_lanes(jnp.concatenate([w_qkv, w_o], axis=1)),   # rows 0:D
            pad_lanes(w1),                                      # rows D:2D
            pad_lanes(w2),                                      # rows 2D:2D+n_hid
        ], axis=0))

        def row(v):
            return pad_lanes(v.reshape(1, -1))
        b_slabs.append(jnp.concatenate([
            row(p["in_proj_bias"]), row(p["out_proj_bias"]),
            row(p["norm1_weight"]), row(p["norm1_bias"]),
            row(p["linear1_bias"]), row(p["linear2_bias"]),
            row(p["norm2_weight"]), row(p["norm2_bias"]),
        ], axis=0))
    return {"w": jnp.stack(w_slabs, 0), "b": jnp.stack(b_slabs, 0)}


# ----------------------------------------------------------------------------
# Synthetic PyTorch-shaped parameters
# ----------------------------------------------------------------------------
def init_torch_style_params(key, emb_d, n_head, n_hid, n_layers):
    D = emb_d + 1
    keys = jax.random.split(key, 1 + n_layers)
    # nn.Embedding(2, emb_d).weight.uniform_(-0.1, 0.1)
    emb_table = jax.random.uniform(keys[0], (2, emb_d),
                                   minval=-0.1, maxval=0.1, dtype=jnp.float32)
    layers = []
    for l in range(n_layers):
        k = jax.random.split(keys[1 + l], 10)
        w, bsc = 0.1, 0.05
        layers.append(dict(
            in_proj_weight=w * jax.random.normal(k[0], (3 * D, D), jnp.float32),
            in_proj_bias=bsc * jax.random.normal(k[1], (3 * D,), jnp.float32),
            out_proj_weight=w * jax.random.normal(k[2], (D, D), jnp.float32),
            out_proj_bias=bsc * jax.random.normal(k[3], (D,), jnp.float32),
            norm1_weight=1.0 + 0.1 * jax.random.normal(k[4], (D,), jnp.float32),
            norm1_bias=bsc * jax.random.normal(k[5], (D,), jnp.float32),
            linear1_weight=w * jax.random.normal(k[6], (n_hid, D), jnp.float32),
            linear1_bias=bsc * jax.random.normal(k[7], (n_hid,), jnp.float32),
            linear2_weight=w * jax.random.normal(k[8], (D, n_hid), jnp.float32),
            linear2_bias=bsc * jax.random.normal(k[9], (D,), jnp.float32),
            norm2_weight=jnp.ones((D,), jnp.float32),
            norm2_bias=jnp.zeros((D,), jnp.float32),
        ))
    return emb_table, layers


# ----------------------------------------------------------------------------
# Pure-JAX reference (mirrors PyTorch KeyPwEncoder, eval mode)
# ----------------------------------------------------------------------------
def _embed_and_position(event_type, time_interval, emb_table, kp_zero):
    B, S = event_type.shape
    emb_d = emb_table.shape[1]
    D = emb_d + 1
    kp_event_emb = jnp.take(emb_table, event_type, axis=0)            # [B,S,emb_d]
    src_ti = jnp.clip(time_interval[..., None] / 1000.0, 0.0, 1.0)    # [B,S,1]
    kp_inputs = jnp.concatenate([kp_event_emb, src_ti], axis=-1)      # [B,S,D]
    kp_zero_b = jnp.broadcast_to(kp_zero[None, :, :], (B, 1, D))
    kp_inputs = jnp.concatenate([kp_inputs, kp_zero_b], axis=1)       # [B,S+1,D]
    kp_inputs = kp_inputs * math.sqrt(D)
    pe = positional_encoding_table(S + 1, D)
    return kp_inputs + pe[None, :, :]


def reference_forward(event_type, time_interval, emb_table, kp_zero,
                      torch_layers, n_head):
    x = _embed_and_position(event_type, time_interval, emb_table, kp_zero)
    B, Sp, D = x.shape
    dh = D // n_head

    def layer_norm(v, w, b):
        mu = jnp.mean(v, axis=-1, keepdims=True)
        var = jnp.mean((v - mu) ** 2, axis=-1, keepdims=True)
        return (v - mu) * jax.lax.rsqrt(var + _EPS) * w + b

    for lp in torch_layers:
        qkv = jnp.einsum('bsd,ed->bse', x, lp["in_proj_weight"]) + lp["in_proj_bias"]
        q, k, v = jnp.split(qkv, 3, axis=-1)

        def heads(t):
            return t.reshape(B, Sp, n_head, dh).transpose(0, 2, 1, 3)

        q, k, v = heads(q), heads(k), heads(v)
        s = jnp.einsum('bhqe,bhke->bhqk', q, k) / math.sqrt(dh)
        a = jax.nn.softmax(s, axis=-1)
        ctx = jnp.einsum('bhqk,bhke->bhqe', a, v)
        ctx = ctx.transpose(0, 2, 1, 3).reshape(B, Sp, D)
        attn = jnp.einsum('bsd,ed->bse', ctx, lp["out_proj_weight"]) + lp["out_proj_bias"]
        x1 = layer_norm(x + attn, lp["norm1_weight"], lp["norm1_bias"])
        hmid = jax.nn.relu(jnp.einsum('bsd,hd->bsh', x1, lp["linear1_weight"])
                           + lp["linear1_bias"])
        ff = jnp.einsum('bsh,dh->bsd', hmid, lp["linear2_weight"]) + lp["linear2_bias"]
        x = layer_norm(x1 + ff, lp["norm2_weight"], lp["norm2_bias"])
    return x


# ----------------------------------------------------------------------------
if __name__ == "__main__":
    # d_model = emb_d + 1 must be even and divisible by n_head=2 -> emb_d odd.
    emb_d, n_head, n_hid, n_layers = 31, 2, 128, 3
    B, S = 2, 8

    key = jax.random.PRNGKey(0)
    k_ev, k_ti, k_params = jax.random.split(key, 3)

    event_type = jax.random.randint(k_ev, (B, S), 0, 2, dtype=jnp.int32)
    time_interval = jax.random.uniform(k_ti, (B, S), minval=0.0, maxval=2000.0,
                                       dtype=jnp.float32)

    emb_table, torch_layers = init_torch_style_params(k_params, emb_d, n_head,
                                                      n_hid, n_layers)
    kp_zero = jnp.zeros((1, emb_d + 1), dtype=jnp.float32)   # nn.Parameter(zeros)
    packed = pack_params(torch_layers)

    fwd = jax.jit(functools.partial(key_pw_encoder_forward, n_head=n_head))
    out = fwd(event_type, time_interval, emb_table, kp_zero, packed)
    out = jax.block_until_ready(out)

    assert out.shape == (B, S + 1, emb_d + 1), out.shape
    assert out.dtype == jnp.float32
    assert bool(jnp.all(jnp.isfinite(out)))

    # Numerical check against the pure-JAX reference (exact softmax denominator
    # now; remaining delta is MXU f32 matmul emulation, typically ~1e-5).
    ref = reference_forward(event_type, time_interval, emb_table, kp_zero,
                            torch_layers, n_head)
    max_err = float(jnp.max(jnp.abs(out - ref)))
    assert max_err < 1e-2, f"max |pallas - reference| = {max_err}"

    print("KERNEL_OK")
</pallas_src>

<mosaic_0001>
module attributes {stable_mosaic.version = 11 : i64} {
  func.func @_fused_encoder_kernel(%arg0: i32, %arg1: memref<18x3xf32, #tpu.memory_space<vmem>>, %arg2: memref<2x32xf32, #tpu.memory_space<vmem>>, %arg3: memref<1x32xf32, #tpu.memory_space<vmem>>, %arg4: memref<18x32xf32, #tpu.memory_space<vmem>>, %arg5: memref<3x192x128xf32, #tpu.memory_space<vmem>>, %arg6: memref<3x8x128xf32, #tpu.memory_space<vmem>>, %arg7: memref<18x32xf32, #tpu.memory_space<vmem>>) attributes {dimension_semantics = [#tpu.dimension_semantics<parallel>], iteration_bounds = array<i64: 1>, scalar_prefetch = 0 : i64, scratch_operands = 0 : i64, tpu.core_type = #tpu.core_type<tc>, window_params = [{transform_indices = @transform_0, window_bounds = array<i64: 18, 3>}, {pipeline_mode = #tpu.pipeline_mode<synchronous>, transform_indices = @transform_1, window_bounds = array<i64: 2, 32>}, {pipeline_mode = #tpu.pipeline_mode<synchronous>, transform_indices = @transform_2, window_bounds = array<i64: 1, 32>}, {transform_indices = @transform_3, window_bounds = array<i64: 18, 32>}, {pipeline_mode = #tpu.pipeline_mode<synchronous>, transform_indices = @transform_4, window_bounds = array<i64: 3, 192, 128>}, {pipeline_mode = #tpu.pipeline_mode<synchronous>, transform_indices = @transform_5, window_bounds = array<i64: 3, 8, 128>}, {transform_indices = @transform_6, window_bounds = array<i64: 18, 32>}]} {
    %c0 = arith.constant 0 : index
    %c0_0 = arith.constant 0 : index
    %0 = vector.load %arg1[%c0, %c0_0] : memref<18x3xf32, #tpu.memory_space<vmem>>, vector<18x3xf32>
    %1 = vector.extract_strided_slice %0 {offsets = [0, 0], sizes = [18, 1], strides = [1, 1]} : vector<18x3xf32> to vector<18x1xf32>
    %2 = vector.extract_strided_slice %0 {offsets = [0, 1], sizes = [18, 1], strides = [1, 1]} : vector<18x3xf32> to vector<18x1xf32>
    %3 = vector.extract_strided_slice %0 {offsets = [0, 2], sizes = [18, 1], strides = [1, 1]} : vector<18x3xf32> to vector<18x1xf32>
    %c0_1 = arith.constant 0 : index
    %c0_2 = arith.constant 0 : index
    %4 = vector.load %arg2[%c0_1, %c0_2] : memref<2x32xf32, #tpu.memory_space<vmem>>, vector<2x32xf32>
    %5 = vector.extract_strided_slice %4 {offsets = [1, 0], sizes = [1, 32], strides = [1, 1]} : vector<2x32xf32> to vector<1x32xf32>
    %6 = vector.broadcast %1 : vector<18x1xf32> to vector<18x32xf32>
    %7 = vector.broadcast %5 : vector<1x32xf32> to vector<18x32xf32>
    %8 = arith.mulf %6, %7 : vector<18x32xf32>
    %cst = arith.constant 1.000000e+00 : f32
    %9 = vector.broadcast %cst : f32 to vector<18x1xf32>
    %10 = arith.subf %9, %1 : vector<18x1xf32>
    %11 = vector.extract_strided_slice %4 {offsets = [0, 0], sizes = [1, 32], strides = [1, 1]} : vector<2x32xf32> to vector<1x32xf32>
    %12 = vector.broadcast %10 : vector<18x1xf32> to vector<18x32xf32>
    %13 = vector.broadcast %11 : vector<1x32xf32> to vector<18x32xf32>
    %14 = arith.mulf %12, %13 : vector<18x32xf32>
    %15 = arith.addf %8, %14 : vector<18x32xf32>
    %16 = tpu.iota {dimensions = array<i32: 1>} : vector<18x32xi32>
    %c31_i32 = arith.constant 31 : i32
    %17 = vector.broadcast %c31_i32 : i32 to vector<18x32xi32>
    %18 = arith.cmpi eq, %16, %17 : vector<18x32xi32>
    %cst_3 = arith.constant 0.000000e+00 : f32
    %19 = vector.shape_cast %2 : vector<18x1xf32> to vector<18x1xf32>
    %20 = vector.broadcast %19 : vector<18x1xf32> to vector<18x32xf32>
    %21 = vector.broadcast %cst_3 : f32 to vector<18x32xf32>
    %22 = arith.select %18, %20, %21 : vector<18x32xi1>, vector<18x32xf32>
    %23 = arith.addf %15, %22 : vector<18x32xf32>
    %24 = vector.broadcast %3 : vector<18x1xf32> to vector<18x32xf32>
    %25 = arith.mulf %24, %23 : vector<18x32xf32>
    %cst_4 = arith.constant 1.000000e+00 : f32
    %26 = vector.broadcast %cst_4 : f32 to vector<18x1xf32>
    %27 = arith.subf %26, %3 : vector<18x1xf32>
    %c0_5 = arith.constant 0 : index
    %c0_6 = arith.constant 0 : index
    %28 = vector.load %arg3[%c0_5, %c0_6] : memref<1x32xf32, #tpu.memory_space<vmem>>, vector<1x32xf32>
    %29 = vector.broadcast %27 : vector<18x1xf32> to vector<18x32xf32>
    %30 = vector.broadcast %28 : vector<1x32xf32> to vector<18x32xf32>
    %31 = arith.mulf %29, %30 : vector<18x32xf32>
    %32 = arith.addf %25, %31 : vector<18x32xf32>
    %cst_7 = arith.constant 5.65685415 : f32
    %33 = vector.broadcast %cst_7 : f32 to vector<18x32xf32>
    %34 = arith.mulf %32, %33 : vector<18x32xf32>
    %c0_8 = arith.constant 0 : index
    %c0_9 = arith.constant 0 : index
    %35 = vector.load %arg4[%c0_8, %c0_9] : memref<18x32xf32, #tpu.memory_space<vmem>>, vector<18x32xf32>
    %36 = arith.addf %34, %35 : vector<18x32xf32>
    %37 = tpu.iota {dimensions = array<i32: 0>} : vector<18x18xi32>
    %38 = arith.sitofp %37 : vector<18x18xi32> to vector<18x18xf32>
    %39 = tpu.iota {dimensions = array<i32: 1>} : vector<18x18xi32>
    %40 = arith.sitofp %39 : vector<18x18xi32> to vector<18x18xf32>
    %cst_10 = arith.constant 5.000000e-01 : f32
    %41 = vector.broadcast %cst_10 : f32 to vector<18x18xf32>
    %42 = arith.addf %38, %41 : vector<18x18xf32>
    %cst_11 = arith.constant 0.111111112 : f32
    %43 = vector.broadcast %cst_11 : f32 to vector<18x18xf32>
    %44 = arith.mulf %42, %43 : vector<18x18xf32>
    %45 = math.floor %44 : vector<18x18xf32>
    %cst_12 = arith.constant 5.000000e-01 : f32
    %46 = vector.broadcast %cst_12 : f32 to vector<18x18xf32>
    %47 = arith.addf %40, %46 : vector<18x18xf32>
    %cst_13 = arith.constant 0.111111112 : f32
    %48 = vector.broadcast %cst_13 : f32 to vector<18x18xf32>
    %49 = arith.mulf %47, %48 : vector<18x18xf32>
    %50 = math.floor %49 : vector<18x18xf32>
    %51 = arith.cmpf oeq, %45, %50 : vector<18x18xf32>
    %cst_14 = arith.constant 0.000000e+00 : f32
    %cst_15 = arith.constant -1.000000e+09 : f32
    %52 = vector.broadcast %cst_14 : f32 to vector<18x18xf32>
    %53 = vector.broadcast %cst_15 : f32 to vector<18x18xf32>
    %54 = arith.select %51, %52, %53 : vector<18x18xi1>, vector<18x18xf32>
    %c0_16 = arith.constant 0 : index
    %c0_17 = arith.constant 0 : index
    %c0_18 = arith.constant 0 : index
    %55 = vector.load %arg6[%c0_16, %c0_17, %c0_18] : memref<3x8x128xf32, #tpu.memory_space<vmem>>, vector<1x8x128xf32>
    %56 = vector.shape_cast %55 : vector<1x8x128xf32> to vector<8x128xf32>
    %c0_19 = arith.constant 0 : index
    %c0_20 = arith.constant 0 : index
    %c0_21 = arith.constant 0 : index
    %57 = vector.load %arg5[%c0_19, %c0_20, %c0_21] : memref<3x192x128xf32, #tpu.memory_space<vmem>>, vector<1x32x128xf32>
    %58 = vector.shape_cast %57 : vector<1x32x128xf32> to vector<32x128xf32>
    %cst_22 = arith.constant dense<0.000000e+00> : vector<18x128xf32>
    %59 = tpu.matmul %36, %58, %cst_22 {dimension_numbers = #tpu.dot_dimension_numbers<[1], [0], [0], [1], [0, 0, 1, 1], [], []>} : vector<18x32xf32>, vector<32x128xf32>, vector<18x128xf32> -> vector<18x128xf32>
    %60 = vector.extract_strided_slice %56 {offsets = [0, 0], sizes = [1, 128], strides = [1, 1]} : vector<8x128xf32> to vector<1x128xf32>
    %61 = vector.broadcast %60 : vector<1x128xf32> to vector<18x128xf32>
    %62 = arith.addf %59, %61 : vector<18x128xf32>
    %63 = vector.extract_strided_slice %62 {offsets = [0, 0], sizes = [18, 16], strides = [1, 1]} : vector<18x128xf32> to vector<18x16xf32>
    %64 = vector.extract_strided_slice %62 {offsets = [0, 32], sizes = [18, 16], strides = [1, 1]} : vector<18x128xf32> to vector<18x16xf32>
    %65 = vector.extract_strided_slice %62 {offsets = [0, 64], sizes = [18, 16], strides = [1, 1]} : vector<18x128xf32> to vector<18x16xf32>
    "tpu.trace_start"() <{level = 10 : i32, message = "qe,ke->qk"}> : () -> ()
    %cst_23 = arith.constant dense<0.000000e+00> : vector<18x18xf32>
    %66 = tpu.matmul %63, %64, %cst_23 {dimension_numbers = #tpu.dot_dimension_numbers<[1], [1], [0], [0], [0, 0, 1, 0], [], []>} : vector<18x16xf32>, vector<18x16xf32>, vector<18x18xf32> -> vector<18x18xf32>
    "tpu.trace_stop"() : () -> ()
    %cst_24 = arith.constant 2.500000e-01 : f32
    %67 = vector.broadcast %cst_24 : f32 to vector<18x18xf32>
    %68 = arith.mulf %66, %67 : vector<18x18xf32>
    %69 = arith.addf %68, %54 : vector<18x18xf32>
    %cst_25 = arith.constant dense<0xFF800000> : vector<18xf32>
    %70 = vector.multi_reduction <maximumf>, %69, %cst_25 [1] : vector<18x18xf32> to vector<18xf32>
    %71 = vector.shape_cast %70 : vector<18xf32> to vector<18x1xf32>
    %72 = vector.broadcast %71 : vector<18x1xf32> to vector<18x18xf32>
    %73 = arith.subf %69, %72 : vector<18x18xf32>
    %74 = math.exp %73 : vector<18x18xf32>
    %cst_26 = arith.constant dense<0.000000e+00> : vector<18xf32>
    %75 = vector.multi_reduction <add>, %74, %cst_26 [1] : vector<18x18xf32> to vector<18xf32>
    %76 = vector.shape_cast %75 : vector<18xf32> to vector<18x1xf32>
    %77 = vector.broadcast %76 : vector<18x1xf32> to vector<18x18xf32>
    %78 = arith.divf %74, %77 : vector<18x18xf32>
    %cst_27 = arith.constant dense<0.000000e+00> : vector<18x16xf32>
    %79 = tpu.matmul %78, %65, %cst_27 {dimension_numbers = #tpu.dot_dimension_numbers<[1], [0], [0], [1], [0, 0, 1, 1], [], []>} : vector<18x18xf32>, vector<18x16xf32>, vector<18x16xf32> -> vector<18x16xf32>
    %80 = vector.extract_strided_slice %62 {offsets = [0, 16], sizes = [18, 16], strides = [1, 1]} : vector<18x128xf32> to vector<18x16xf32>
    %81 = vector.extract_strided_slice %62 {offsets = [0, 48], sizes = [18, 16], strides = [1, 1]} : vector<18x128xf32> to vector<18x16xf32>
    %82 = vector.extract_strided_slice %62 {offsets = [0, 80], sizes = [18, 16], strides = [1, 1]} : vector<18x128xf32> to vector<18x16xf32>
    "tpu.trace_start"() <{level = 10 : i32, message = "qe,ke->qk"}> : () -> ()
    %cst_28 = arith.constant dense<0.000000e+00> : vector<18x18xf32>
    %83 = tpu.matmul %80, %81, %cst_28 {dimension_numbers = #tpu.dot_dimension_numbers<[1], [1], [0], [0], [0, 0, 1, 0], [], []>} : vector<18x16xf32>, vector<18x16xf32>, vector<18x18xf32> -> vector<18x18xf32>
    "tpu.trace_stop"() : () -> ()
    %cst_29 = arith.constant 2.500000e-01 : f32
    %84 = vector.broadcast %cst_29 : f32 to vector<18x18xf32>
    %85 = arith.mulf %83, %84 : vector<18x18xf32>
    %86 = arith.addf %85, %54 : vector<18x18xf32>
    %cst_30 = arith.constant dense<0xFF800000> : vector<18xf32>
    %87 = vector.multi_reduction <maximumf>, %86, %cst_30 [1] : vector<18x18xf32> to vector<18xf32>
    %88 = vector.shape_cast %87 : vector<18xf32> to vector<18x1xf32>
    %89 = vector.broadcast %88 : vector<18x1xf32> to vector<18x18xf32>
    %90 = arith.subf %86, %89 : vector<18x18xf32>
    %91 = math.exp %90 : vector<18x18xf32>
    %cst_31 = arith.constant dense<0.000000e+00> : vector<18xf32>
    %92 = vector.multi_reduction <add>, %91, %cst_31 [1] : vector<18x18xf32> to vector<18xf32>
    %93 = vector.shape_cast %92 : vector<18xf32> to vector<18x1xf32>
    %94 = vector.broadcast %93 : vector<18x1xf32> to vector<18x18xf32>
    %95 = arith.divf %91, %94 : vector<18x18xf32>
    %cst_32 = arith.constant dense<0.000000e+00> : vector<18x16xf32>
    %96 = tpu.matmul %95, %82, %cst_32 {dimension_numbers = #tpu.dot_dimension_numbers<[1], [0], [0], [1], [0, 0, 1, 1], [], []>} : vector<18x18xf32>, vector<18x16xf32>, vector<18x16xf32> -> vector<18x16xf32>
    %97 = tpu.concatenate %79, %96 in 1 : vector<18x16xf32>, vector<18x16xf32> -> vector<18x32xf32>
    %98 = vector.extract_strided_slice %58 {offsets = [0, 96], sizes = [32, 32], strides = [1, 1]} : vector<32x128xf32> to vector<32x32xf32>
    %cst_33 = arith.constant dense<0.000000e+00> : vector<18x32xf32>
    %99 = tpu.matmul %97, %98, %cst_33 {dimension_numbers = #tpu.dot_dimension_numbers<[1], [0], [0], [1], [0, 0, 1, 1], [], []>} : vector<18x32xf32>, vector<32x32xf32>, vector<18x32xf32> -> vector<18x32xf32>
    %100 = vector.extract_strided_slice %56 {offsets = [1, 0], sizes = [1, 32], strides = [1, 1]} : vector<8x128xf32> to vector<1x32xf32>
    %101 = vector.broadcast %100 : vector<1x32xf32> to vector<18x32xf32>
    %102 = arith.addf %99, %101 : vector<18x32xf32>
    %103 = arith.addf %36, %102 : vector<18x32xf32>
    %cst_34 = arith.constant dense<0.000000e+00> : vector<18xf32>
    %104 = vector.multi_reduction <add>, %103, %cst_34 [1] : vector<18x32xf32> to vector<18xf32>
    %105 = vector.shape_cast %104 : vector<18xf32> to vector<18x1xf32>
    %cst_35 = arith.constant 3.200000e+01 : f32
    %106 = vector.broadcast %cst_35 : f32 to vector<18x1xf32>
    %107 = arith.divf %105, %106 : vector<18x1xf32>
    %108 = vector.broadcast %107 : vector<18x1xf32> to vector<18x32xf32>
    %109 = arith.subf %103, %108 : vector<18x32xf32>
    %110 = arith.mulf %109, %109 : vector<18x32xf32>
    %cst_36 = arith.constant dense<0.000000e+00> : vector<18xf32>
    %111 = vector.multi_reduction <add>, %110, %cst_36 [1] : vector<18x32xf32> to vector<18xf32>
    %112 = vector.shape_cast %111 : vector<18xf32> to vector<18x1xf32>
    %cst_37 = arith.constant 3.200000e+01 : f32
    %113 = vector.broadcast %cst_37 : f32 to vector<18x1xf32>
    %114 = arith.divf %112, %113 : vector<18x1xf32>
    %115 = vector.broadcast %107 : vector<18x1xf32> to vector<18x32xf32>
    %116 = arith.subf %103, %115 : vector<18x32xf32>
    %cst_38 = arith.constant 9.99999974E-6 : f32
    %117 = vector.broadcast %cst_38 : f32 to vector<18x1xf32>
    %118 = arith.addf %114, %117 : vector<18x1xf32>
    %119 = math.rsqrt %118 : vector<18x1xf32>
    %120 = vector.broadcast %119 : vector<18x1xf32> to vector<18x32xf32>
    %121 = arith.mulf %116, %120 : vector<18x32xf32>
    %122 = vector.extract_strided_slice %56 {offsets = [2, 0], sizes = [1, 32], strides = [1, 1]} : vector<8x128xf32> to vector<1x32xf32>
    %123 = vector.broadcast %122 : vector<1x32xf32> to vector<18x32xf32>
    %124 = arith.mulf %121, %123 : vector<18x32xf32>
    %125 = vector.extract_strided_slice %56 {offsets = [3, 0], sizes = [1, 32], strides = [1, 1]} : vector<8x128xf32> to vector<1x32xf32>
    %126 = vector.broadcast %125 : vector<1x32xf32> to vector<18x32xf32>
    %127 = arith.addf %124, %126 : vector<18x32xf32>
    %c0_39 = arith.constant 0 : index
    %c32 = arith.constant 32 : index
    %c0_40 = arith.constant 0 : index
    %128 = vector.load %arg5[%c0_39, %c32, %c0_40] : memref<3x192x128xf32, #tpu.memory_space<vmem>>, vector<1x32x128xf32>
    %129 = vector.shape_cast %128 : vector<1x32x128xf32> to vector<32x128xf32>
    %c0_41 = arith.constant 0 : index
    %c64 = arith.constant 64 : index
    %c0_42 = arith.constant 0 : index
    %130 = vector.load %arg5[%c0_41, %c64, %c0_42] : memref<3x192x128xf32, #tpu.memory_space<vmem>>, vector<1x128x128xf32>
    %131 = vector.shape_cast %130 : vector<1x128x128xf32> to vector<128x128xf32>
    %cst_43 = arith.constant dense<0.000000e+00> : vector<18x128xf32>
    %132 = tpu.matmul %127, %129, %cst_43 {dimension_numbers = #tpu.dot_dimension_numbers<[1], [0], [0], [1], [0, 0, 1, 1], [], []>} : vector<18x32xf32>, vector<32x128xf32>, vector<18x128xf32> -> vector<18x128xf32>
    %133 = vector.extract_strided_slice %56 {offsets = [4, 0], sizes = [1, 128], strides = [1, 1]} : vector<8x128xf32> to vector<1x128xf32>
    %134 = vector.broadcast %133 : vector<1x128xf32> to vector<18x128xf32>
    %135 = arith.addf %132, %134 : vector<18x128xf32>
    %cst_44 = arith.constant 0.000000e+00 : f32
    %136 = vector.broadcast %cst_44 : f32 to vector<18x128xf32>
    %137 = arith.maximumf %135, %136 : vector<18x128xf32>
    %cst_45 = arith.constant dense<0.000000e+00> : vector<18x128xf32>
    %138 = tpu.matmul %137, %131, %cst_45 {dimension_numbers = #tpu.dot_dimension_numbers<[1], [0], [0], [1], [0, 0, 1, 1], [], []>} : vector<18x128xf32>, vector<128x128xf32>, vector<18x128xf32> -> vector<18x128xf32>
    %139 = vector.extract_strided_slice %138 {offsets = [0, 0], sizes = [18, 32], strides = [1, 1]} : vector<18x128xf32> to vector<18x32xf32>
    %140 = vector.extract_strided_slice %56 {offsets = [5, 0], sizes = [1, 32], strides = [1, 1]} : vector<8x128xf32> to vector<1x32xf32>
    %141 = vector.broadcast %140 : vector<1x32xf32> to vector<18x32xf32>
    %142 = arith.addf %139, %141 : vector<18x32xf32>
    %143 = arith.addf %127, %142 : vector<18x32xf32>
    %cst_46 = arith.constant dense<0.000000e+00> : vector<18xf32>
    %144 = vector.multi_reduction <add>, %143, %cst_46 [1] : vector<18x32xf32> to vector<18xf32>
    %145 = vector.shape_cast %144 : vector<18xf32> to vector<18x1xf32>
    %cst_47 = arith.constant 3.200000e+01 : f32
    %146 = vector.broadcast %cst_47 : f32 to vector<18x1xf32>
    %147 = arith.divf %145, %146 : vector<18x1xf32>
    %148 = vector.broadcast %147 : vector<18x1xf32> to vector<18x32xf32>
    %149 = arith.subf %143, %148 : vector<18x32xf32>
    %150 = arith.mulf %149, %149 : vector<18x32xf32>
    %cst_48 = arith.constant dense<0.000000e+00> : vector<18xf32>
    %151 = vector.multi_reduction <add>, %150, %cst_48 [1] : vector<18x32xf32> to vector<18xf32>
    %152 = vector.shape_cast %151 : vector<18xf32> to vector<18x1xf32>
    %cst_49 = arith.constant 3.200000e+01 : f32
    %153 = vector.broadcast %cst_49 : f32 to vector<18x1xf32>
    %154 = arith.divf %152, %153 : vector<18x1xf32>
    %155 = vector.broadcast %147 : vector<18x1xf32> to vector<18x32xf32>
    %156 = arith.subf %143, %155 : vector<18x32xf32>
    %cst_50 = arith.constant 9.99999974E-6 : f32
    %157 = vector.broadcast %cst_50 : f32 to vector<18x1xf32>
    %158 = arith.addf %154, %157 : vector<18x1xf32>
    %159 = math.rsqrt %158 : vector<18x1xf32>
    %160 = vector.broadcast %159 : vector<18x1xf32> to vector<18x32xf32>
    %161 = arith.mulf %156, %160 : vector<18x32xf32>
    %162 = vector.extract_strided_slice %56 {offsets = [6, 0], sizes = [1, 32], strides = [1, 1]} : vector<8x128xf32> to vector<1x32xf32>
    %163 = vector.broadcast %162 : vector<1x32xf32> to vector<18x32xf32>
    %164 = arith.mulf %161, %163 : vector<18x32xf32>
    %165 = vector.extract_strided_slice %56 {offsets = [7, 0], sizes = [1, 32], strides = [1, 1]} : vector<8x128xf32> to vector<1x32xf32>
    %166 = vector.broadcast %165 : vector<1x32xf32> to vector<18x32xf32>
    %167 = arith.addf %164, %166 : vector<18x32xf32>
    %c1 = arith.constant 1 : index
    %c0_51 = arith.constant 0 : index
    %c0_52 = arith.constant 0 : index
    %168 = vector.load %arg6[%c1, %c0_51, %c0_52] : memref<3x8x128xf32, #tpu.memory_space<vmem>>, vector<1x8x128xf32>
    %169 = vector.shape_cast %168 : vector<1x8x128xf32> to vector<8x128xf32>
    %c1_53 = arith.constant 1 : index
    %c0_54 = arith.constant 0 : index
    %c0_55 = arith.constant 0 : index
    %170 = vector.load %arg5[%c1_53, %c0_54, %c0_55] : memref<3x192x128xf32, #tpu.memory_space<vmem>>, vector<1x32x128xf32>
    %171 = vector.shape_cast %170 : vector<1x32x128xf32> to vector<32x128xf32>
    %cst_56 = arith.constant dense<0.000000e+00> : vector<18x128xf32>
    %172 = tpu.matmul %167, %171, %cst_56 {dimension_numbers = #tpu.dot_dimension_numbers<[1], [0], [0], [1], [0, 0, 1, 1], [], []>} : vector<18x32xf32>, vector<32x128xf32>, vector<18x128xf32> -> vector<18x128xf32>
    %173 = vector.extract_strided_slice %169 {offsets = [0, 0], sizes = [1, 128], strides = [1, 1]} : vector<8x128xf32> to vector<1x128xf32>
    %174 = vector.broadcast %173 : vector<1x128xf32> to vector<18x128xf32>
    %175 = arith.addf %172, %174 : vector<18x128xf32>
    %176 = vector.extract_strided_slice %175 {offsets = [0, 0], sizes = [18, 16], strides = [1, 1]} : vector<18x128xf32> to vector<18x16xf32>
    %177 = vector.extract_strided_slice %175 {offsets = [0, 32], sizes = [18, 16], strides = [1, 1]} : vector<18x128xf32> to vector<18x16xf32>
    %178 = vector.extract_strided_slice %175 {offsets = [0, 64], sizes = [18, 16], strides = [1, 1]} : vector<18x128xf32> to vector<18x16xf32>
    "tpu.trace_start"() <{level = 10 : i32, message = "qe,ke->qk"}> : () -> ()
    %cst_57 = arith.constant dense<0.000000e+00> : vector<18x18xf32>
    %179 = tpu.matmul %176, %177, %cst_57 {dimension_numbers = #tpu.dot_dimension_numbers<[1], [1], [0], [0], [0, 0, 1, 0], [], []>} : vector<18x16xf32>, vector<18x16xf32>, vector<18x18xf32> -> vector<18x18xf32>
    "tpu.trace_stop"() : () -> ()
    %cst_58 = arith.constant 2.500000e-01 : f32
    %180 = vector.broadcast %cst_58 : f32 to vector<18x18xf32>
    %181 = arith.mulf %179, %180 : vector<18x18xf32>
    %182 = arith.addf %181, %54 : vector<18x18xf32>
    %cst_59 = arith.constant dense<0xFF800000> : vector<18xf32>
    %183 = vector.multi_reduction <maximumf>, %182, %cst_59 [1] : vector<18x18xf32> to vector<18xf32>
    %184 = vector.shape_cast %183 : vector<18xf32> to vector<18x1xf32>
    %185 = vector.broadcast %184 : vector<18x1xf32> to vector<18x18xf32>
    %186 = arith.subf %182, %185 : vector<18x18xf32>
    %187 = math.exp %186 : vector<18x18xf32>
    %cst_60 = arith.constant dense<0.000000e+00> : vector<18xf32>
    %188 = vector.multi_reduction <add>, %187, %cst_60 [1] : vector<18x18xf32> to vector<18xf32>
    %189 = vector.shape_cast %188 : vector<18xf32> to vector<18x1xf32>
    %190 = vector.broadcast %189 : vector<18x1xf32> to vector<18x18xf32>
    %191 = arith.divf %187, %190 : vector<18x18xf32>
    %cst_61 = arith.constant dense<0.000000e+00> : vector<18x16xf32>
    %192 = tpu.matmul %191, %178, %cst_61 {dimension_numbers = #tpu.dot_dimension_numbers<[1], [0], [0], [1], [0, 0, 1, 1], [], []>} : vector<18x18xf32>, vector<18x16xf32>, vector<18x16xf32> -> vector<18x16xf32>
    %193 = vector.extract_strided_slice %175 {offsets = [0, 16], sizes = [18, 16], strides = [1, 1]} : vector<18x128xf32> to vector<18x16xf32>
    %194 = vector.extract_strided_slice %175 {offsets = [0, 48], sizes = [18, 16], strides = [1, 1]} : vector<18x128xf32> to vector<18x16xf32>
    %195 = vector.extract_strided_slice %175 {offsets = [0, 80], sizes = [18, 16], strides = [1, 1]} : vector<18x128xf32> to vector<18x16xf32>
    "tpu.trace_start"() <{level = 10 : i32, message = "qe,ke->qk"}> : () -> ()
    %cst_62 = arith.constant dense<0.000000e+00> : vector<18x18xf32>
    %196 = tpu.matmul %193, %194, %cst_62 {dimension_numbers = #tpu.dot_dimension_numbers<[1], [1], [0], [0], [0, 0, 1, 0], [], []>} : vector<18x16xf32>, vector<18x16xf32>, vector<18x18xf32> -> vector<18x18xf32>
    "tpu.trace_stop"() : () -> ()
    %cst_63 = arith.constant 2.500000e-01 : f32
    %197 = vector.broadcast %cst_63 : f32 to vector<18x18xf32>
    %198 = arith.mulf %196, %197 : vector<18x18xf32>
    %199 = arith.addf %198, %54 : vector<18x18xf32>
    %cst_64 = arith.constant dense<0xFF800000> : vector<18xf32>
    %200 = vector.multi_reduction <maximumf>, %199, %cst_64 [1] : vector<18x18xf32> to vector<18xf32>
    %201 = vector.shape_cast %200 : vector<18xf32> to vector<18x1xf32>
    %202 = vector.broadcast %201 : vector<18x1xf32> to vector<18x18xf32>
    %203 = arith.subf %199, %202 : vector<18x18xf32>
    %204 = math.exp %203 : vector<18x18xf32>
    %cst_65 = arith.constant dense<0.000000e+00> : vector<18xf32>
    %205 = vector.multi_reduction <add>, %204, %cst_65 [1] : vector<18x18xf32> to vector<18xf32>
    %206 = vector.shape_cast %205 : vector<18xf32> to vector<18x1xf32>
    %207 = vector.broadcast %206 : vector<18x1xf32> to vector<18x18xf32>
    %208 = arith.divf %204, %207 : vector<18x18xf32>
    %cst_66 = arith.constant dense<0.000000e+00> : vector<18x16xf32>
    %209 = tpu.matmul %208, %195, %cst_66 {dimension_numbers = #tpu.dot_dimension_numbers<[1], [0], [0], [1], [0, 0, 1, 1], [], []>} : vector<18x18xf32>, vector<18x16xf32>, vector<18x16xf32> -> vector<18x16xf32>
    %210 = tpu.concatenate %192, %209 in 1 : vector<18x16xf32>, vector<18x16xf32> -> vector<18x32xf32>
    %211 = vector.extract_strided_slice %171 {offsets = [0, 96], sizes = [32, 32], strides = [1, 1]} : vector<32x128xf32> to vector<32x32xf32>
    %cst_67 = arith.constant dense<0.000000e+00> : vector<18x32xf32>
    %212 = tpu.matmul %210, %211, %cst_67 {dimension_numbers = #tpu.dot_dimension_numbers<[1], [0], [0], [1], [0, 0, 1, 1], [], []>} : vector<18x32xf32>, vector<32x32xf32>, vector<18x32xf32> -> vector<18x32xf32>
    %213 = vector.extract_strided_slice %169 {offsets = [1, 0], sizes = [1, 32], strides = [1, 1]} : vector<8x128xf32> to vector<1x32xf32>
    %214 = vector.broadcast %213 : vector<1x32xf32> to vector<18x32xf32>
    %215 = arith.addf %212, %214 : vector<18x32xf32>
    %216 = arith.addf %167, %215 : vector<18x32xf32>
    %cst_68 = arith.constant dense<0.000000e+00> : vector<18xf32>
    %217 = vector.multi_reduction <add>, %216, %cst_68 [1] : vector<18x32xf32> to vector<18xf32>
    %218 = vector.shape_cast %217 : vector<18xf32> to vector<18x1xf32>
    %cst_69 = arith.constant 3.200000e+01 : f32
    %219 = vector.broadcast %cst_69 : f32 to vector<18x1xf32>
    %220 = arith.divf %218, %219 : vector<18x1xf32>
    %221 = vector.broadcast %220 : vector<18x1xf32> to vector<18x32xf32>
    %222 = arith.subf %216, %221 : vector<18x32xf32>
    %223 = arith.mulf %222, %222 : vector<18x32xf32>
    %cst_70 = arith.constant dense<0.000000e+00> : vector<18xf32>
    %224 = vector.multi_reduction <add>, %223, %cst_70 [1] : vector<18x32xf32> to vector<18xf32>
    %225 = vector.shape_cast %224 : vector<18xf32> to vector<18x1xf32>
    %cst_71 = arith.constant 3.200000e+01 : f32
    %226 = vector.broadcast %cst_71 : f32 to vector<18x1xf32>
    %227 = arith.divf %225, %226 : vector<18x1xf32>
    %228 = vector.broadcast %220 : vector<18x1xf32> to vector<18x32xf32>
    %229 = arith.subf %216, %228 : vector<18x32xf32>
    %cst_72 = arith.constant 9.99999974E-6 : f32
    %230 = vector.broadcast %cst_72 : f32 to vector<18x1xf32>
    %231 = arith.addf %227, %230 : vector<18x1xf32>
    %232 = math.rsqrt %231 : vector<18x1xf32>
    %233 = vector.broadcast %232 : vector<18x1xf32> to vector<18x32xf32>
    %234 = arith.mulf %229, %233 : vector<18x32xf32>
    %235 = vector.extract_strided_slice %169 {offsets = [2, 0], sizes = [1, 32], strides = [1, 1]} : vector<8x128xf32> to vector<1x32xf32>
    %236 = vector.broadcast %235 : vector<1x32xf32> to vector<18x32xf32>
    %237 = arith.mulf %234, %236 : vector<18x32xf32>
    %238 = vector.extract_strided_slice %169 {offsets = [3, 0], sizes = [1, 32], strides = [1, 1]} : vector<8x128xf32> to vector<1x32xf32>
    %239 = vector.broadcast %238 : vector<1x32xf32> to vector<18x32xf32>
    %240 = arith.addf %237, %239 : vector<18x32xf32>
    %c1_73 = arith.constant 1 : index
    %c32_74 = arith.constant 32 : index
    %c0_75 = arith.constant 0 : index
    %241 = vector.load %arg5[%c1_73, %c32_74, %c0_75] : memref<3x192x128xf32, #tpu.memory_space<vmem>>, vector<1x32x128xf32>
    %242 = vector.shape_cast %241 : vector<1x32x128xf32> to vector<32x128xf32>
    %c1_76 = arith.constant 1 : index
    %c64_77 = arith.constant 64 : index
    %c0_78 = arith.constant 0 : index
    %243 = vector.load %arg5[%c1_76, %c64_77, %c0_78] : memref<3x192x128xf32, #tpu.memory_space<vmem>>, vector<1x128x128xf32>
    %244 = vector.shape_cast %243 : vector<1x128x128xf32> to vector<128x128xf32>
    %cst_79 = arith.constant dense<0.000000e+00> : vector<18x128xf32>
    %245 = tpu.matmul %240, %242, %cst_79 {dimension_numbers = #tpu.dot_dimension_numbers<[1], [0], [0], [1], [0, 0, 1, 1], [], []>} : vector<18x32xf32>, vector<32x128xf32>, vector<18x128xf32> -> vector<18x128xf32>
    %246 = vector.extract_strided_slice %169 {offsets = [4, 0], sizes = [1, 128], strides = [1, 1]} : vector<8x128xf32> to vector<1x128xf32>
    %247 = vector.broadcast %246 : vector<1x128xf32> to vector<18x128xf32>
    %248 = arith.addf %245, %247 : vector<18x128xf32>
    %cst_80 = arith.constant 0.000000e+00 : f32
    %249 = vector.broadcast %cst_80 : f32 to vector<18x128xf32>
    %250 = arith.maximumf %248, %249 : vector<18x128xf32>
    %cst_81 = arith.constant dense<0.000000e+00> : vector<18x128xf32>
    %251 = tpu.matmul %250, %244, %cst_81 {dimension_numbers = #tpu.dot_dimension_numbers<[1], [0], [0], [1], [0, 0, 1, 1], [], []>} : vector<18x128xf32>, vector<128x128xf32>, vector<18x128xf32> -> vector<18x128xf32>
    %252 = vector.extract_strided_slice %251 {offsets = [0, 0], sizes = [18, 32], strides = [1, 1]} : vector<18x128xf32> to vector<18x32xf32>
    %253 = vector.extract_strided_slice %169 {offsets = [5, 0], sizes = [1, 32], strides = [1, 1]} : vector<8x128xf32> to vector<1x32xf32>
    %254 = vector.broadcast %253 : vector<1x32xf32> to vector<18x32xf32>
    %255 = arith.addf %252, %254 : vector<18x32xf32>
    %256 = arith.addf %240, %255 : vector<18x32xf32>
    %cst_82 = arith.constant dense<0.000000e+00> : vector<18xf32>
    %257 = vector.multi_reduction <add>, %256, %cst_82 [1] : vector<18x32xf32> to vector<18xf32>
    %258 = vector.shape_cast %257 : vector<18xf32> to vector<18x1xf32>
    %cst_83 = arith.constant 3.200000e+01 : f32
    %259 = vector.broadcast %cst_83 : f32 to vector<18x1xf32>
    %260 = arith.divf %258, %259 : vector<18x1xf32>
    %261 = vector.broadcast %260 : vector<18x1xf32> to vector<18x32xf32>
    %262 = arith.subf %256, %261 : vector<18x32xf32>
    %263 = arith.mulf %262, %262 : vector<18x32xf32>
    %cst_84 = arith.constant dense<0.000000e+00> : vector<18xf32>
    %264 = vector.multi_reduction <add>, %263, %cst_84 [1] : vector<18x32xf32> to vector<18xf32>
    %265 = vector.shape_cast %264 : vector<18xf32> to vector<18x1xf32>
    %cst_85 = arith.constant 3.200000e+01 : f32
    %266 = vector.broadcast %cst_85 : f32 to vector<18x1xf32>
    %267 = arith.divf %265, %266 : vector<18x1xf32>
    %268 = vector.broadcast %260 : vector<18x1xf32> to vector<18x32xf32>
    %269 = arith.subf %256, %268 : vector<18x32xf32>
    %cst_86 = arith.constant 9.99999974E-6 : f32
    %270 = vector.broadcast %cst_86 : f32 to vector<18x1xf32>
    %271 = arith.addf %267, %270 : vector<18x1xf32>
    %272 = math.rsqrt %271 : vector<18x1xf32>
    %273 = vector.broadcast %272 : vector<18x1xf32> to vector<18x32xf32>
    %274 = arith.mulf %269, %273 : vector<18x32xf32>
    %275 = vector.extract_strided_slice %169 {offsets = [6, 0], sizes = [1, 32], strides = [1, 1]} : vector<8x128xf32> to vector<1x32xf32>
    %276 = vector.broadcast %275 : vector<1x32xf32> to vector<18x32xf32>
    %277 = arith.mulf %274, %276 : vector<18x32xf32>
    %278 = vector.extract_strided_slice %169 {offsets = [7, 0], sizes = [1, 32], strides = [1, 1]} : vector<8x128xf32> to vector<1x32xf32>
    %279 = vector.broadcast %278 : vector<1x32xf32> to vector<18x32xf32>
    %280 = arith.addf %277, %279 : vector<18x32xf32>
    %c2 = arith.constant 2 : index
    %c0_87 = arith.constant 0 : index
    %c0_88 = arith.constant 0 : index
    %281 = vector.load %arg6[%c2, %c0_87, %c0_88] : memref<3x8x128xf32, #tpu.memory_space<vmem>>, vector<1x8x128xf32>
    %282 = vector.shape_cast %281 : vector<1x8x128xf32> to vector<8x128xf32>
    %c2_89 = arith.constant 2 : index
    %c0_90 = arith.constant 0 : index
    %c0_91 = arith.constant 0 : index
    %283 = vector.load %arg5[%c2_89, %c0_90, %c0_91] : memref<3x192x128xf32, #tpu.memory_space<vmem>>, vector<1x32x128xf32>
    %284 = vector.shape_cast %283 : vector<1x32x128xf32> to vector<32x128xf32>
    %cst_92 = arith.constant dense<0.000000e+00> : vector<18x128xf32>
    %285 = tpu.matmul %280, %284, %cst_92 {dimension_numbers = #tpu.dot_dimension_numbers<[1], [0], [0], [1], [0, 0, 1, 1], [], []>} : vector<18x32xf32>, vector<32x128xf32>, vector<18x128xf32> -> vector<18x128xf32>
    %286 = vector.extract_strided_slice %282 {offsets = [0, 0], sizes = [1, 128], strides = [1, 1]} : vector<8x128xf32> to vector<1x128xf32>
    %287 = vector.broadcast %286 : vector<1x128xf32> to vector<18x128xf32>
    %288 = arith.addf %285, %287 : vector<18x128xf32>
    %289 = vector.extract_strided_slice %288 {offsets = [0, 0], sizes = [18, 16], strides = [1, 1]} : vector<18x128xf32> to vector<18x16xf32>
    %290 = vector.extract_strided_slice %288 {offsets = [0, 32], sizes = [18, 16], strides = [1, 1]} : vector<18x128xf32> to vector<18x16xf32>
    %291 = vector.extract_strided_slice %288 {offsets = [0, 64], sizes = [18, 16], strides = [1, 1]} : vector<18x128xf32> to vector<18x16xf32>
    "tpu.trace_start"() <{level = 10 : i32, message = "qe,ke->qk"}> : () -> ()
    %cst_93 = arith.constant dense<0.000000e+00> : vector<18x18xf32>
    %292 = tpu.matmul %289, %290, %cst_93 {dimension_numbers = #tpu.dot_dimension_numbers<[1], [1], [0], [0], [0, 0, 1, 0], [], []>} : vector<18x16xf32>, vector<18x16xf32>, vector<18x18xf32> -> vector<18x18xf32>
    "tpu.trace_stop"() : () -> ()
    %cst_94 = arith.constant 2.500000e-01 : f32
    %293 = vector.broadcast %cst_94 : f32 to vector<18x18xf32>
    %294 = arith.mulf %292, %293 : vector<18x18xf32>
    %295 = arith.addf %294, %54 : vector<18x18xf32>
    %cst_95 = arith.constant dense<0xFF800000> : vector<18xf32>
    %296 = vector.multi_reduction <maximumf>, %295, %cst_95 [1] : vector<18x18xf32> to vector<18xf32>
    %297 = vector.shape_cast %296 : vector<18xf32> to vector<18x1xf32>
    %298 = vector.broadcast %297 : vector<18x1xf32> to vector<18x18xf32>
    %299 = arith.subf %295, %298 : vector<18x18xf32>
    %300 = math.exp %299 : vector<18x18xf32>
    %cst_96 = arith.constant dense<0.000000e+00> : vector<18xf32>
    %301 = vector.multi_reduction <add>, %300, %cst_96 [1] : vector<18x18xf32> to vector<18xf32>
    %302 = vector.shape_cast %301 : vector<18xf32> to vector<18x1xf32>
    %303 = vector.broadcast %302 : vector<18x1xf32> to vector<18x18xf32>
    %304 = arith.divf %300, %303 : vector<18x18xf32>
    %cst_97 = arith.constant dense<0.000000e+00> : vector<18x16xf32>
    %305 = tpu.matmul %304, %291, %cst_97 {dimension_numbers = #tpu.dot_dimension_numbers<[1], [0], [0], [1], [0, 0, 1, 1], [], []>} : vector<18x18xf32>, vector<18x16xf32>, vector<18x16xf32> -> vector<18x16xf32>
    %306 = vector.extract_strided_slice %288 {offsets = [0, 16], sizes = [18, 16], strides = [1, 1]} : vector<18x128xf32> to vector<18x16xf32>
    %307 = vector.extract_strided_slice %288 {offsets = [0, 48], sizes = [18, 16], strides = [1, 1]} : vector<18x128xf32> to vector<18x16xf32>
    %308 = vector.extract_strided_slice %288 {offsets = [0, 80], sizes = [18, 16], strides = [1, 1]} : vector<18x128xf32> to vector<18x16xf32>
    "tpu.trace_start"() <{level = 10 : i32, message = "qe,ke->qk"}> : () -> ()
    %cst_98 = arith.constant dense<0.000000e+00> : vector<18x18xf32>
    %309 = tpu.matmul %306, %307, %cst_98 {dimension_numbers = #tpu.dot_dimension_numbers<[1], [1], [0], [0], [0, 0, 1, 0], [], []>} : vector<18x16xf32>, vector<18x16xf32>, vector<18x18xf32> -> vector<18x18xf32>
    "tpu.trace_stop"() : () -> ()
    %cst_99 = arith.constant 2.500000e-01 : f32
    %310 = vector.broadcast %cst_99 : f32 to vector<18x18xf32>
    %311 = arith.mulf %309, %310 : vector<18x18xf32>
    %312 = arith.addf %311, %54 : vector<18x18xf32>
    %cst_100 = arith.constant dense<0xFF800000> : vector<18xf32>
    %313 = vector.multi_reduction <maximumf>, %312, %cst_100 [1] : vector<18x18xf32> to vector<18xf32>
    %314 = vector.shape_cast %313 : vector<18xf32> to vector<18x1xf32>
    %315 = vector.broadcast %314 : vector<18x1xf32> to vector<18x18xf32>
    %316 = arith.subf %312, %315 : vector<18x18xf32>
    %317 = math.exp %316 : vector<18x18xf32>
    %cst_101 = arith.constant dense<0.000000e+00> : vector<18xf32>
    %318 = vector.multi_reduction <add>, %317, %cst_101 [1] : vector<18x18xf32> to vector<18xf32>
    %319 = vector.shape_cast %318 : vector<18xf32> to vector<18x1xf32>
    %320 = vector.broadcast %319 : vector<18x1xf32> to vector<18x18xf32>
    %321 = arith.divf %317, %320 : vector<18x18xf32>
    %cst_102 = arith.constant dense<0.000000e+00> : vector<18x16xf32>
    %322 = tpu.matmul %321, %308, %cst_102 {dimension_numbers = #tpu.dot_dimension_numbers<[1], [0], [0], [1], [0, 0, 1, 1], [], []>} : vector<18x18xf32>, vector<18x16xf32>, vector<18x16xf32> -> vector<18x16xf32>
    %323 = tpu.concatenate %305, %322 in 1 : vector<18x16xf32>, vector<18x16xf32> -> vector<18x32xf32>
    %324 = vector.extract_strided_slice %284 {offsets = [0, 96], sizes = [32, 32], strides = [1, 1]} : vector<32x128xf32> to vector<32x32xf32>
    %cst_103 = arith.constant dense<0.000000e+00> : vector<18x32xf32>
    %325 = tpu.matmul %323, %324, %cst_103 {dimension_numbers = #tpu.dot_dimension_numbers<[1], [0], [0], [1], [0, 0, 1, 1], [], []>} : vector<18x32xf32>, vector<32x32xf32>, vector<18x32xf32> -> vector<18x32xf32>
    %326 = vector.extract_strided_slice %282 {offsets = [1, 0], sizes = [1, 32], strides = [1, 1]} : vector<8x128xf32> to vector<1x32xf32>
    %327 = vector.broadcast %326 : vector<1x32xf32> to vector<18x32xf32>
    %328 = arith.addf %325, %327 : vector<18x32xf32>
    %329 = arith.addf %280, %328 : vector<18x32xf32>
    %cst_104 = arith.constant dense<0.000000e+00> : vector<18xf32>
    %330 = vector.multi_reduction <add>, %329, %cst_104 [1] : vector<18x32xf32> to vector<18xf32>
    %331 = vector.shape_cast %330 : vector<18xf32> to vector<18x1xf32>
    %cst_105 = arith.constant 3.200000e+01 : f32
    %332 = vector.broadcast %cst_105 : f32 to vector<18x1xf32>
    %333 = arith.divf %331, %332 : vector<18x1xf32>
    %334 = vector.broadcast %333 : vector<18x1xf32> to vector<18x32xf32>
    %335 = arith.subf %329, %334 : vector<18x32xf32>
    %336 = arith.mulf %335, %335 : vector<18x32xf32>
    %cst_106 = arith.constant dense<0.000000e+00> : vector<18xf32>
    %337 = vector.multi_reduction <add>, %336, %cst_106 [1] : vector<18x32xf32> to vector<18xf32>
    %338 = vector.shape_cast %337 : vector<18xf32> to vector<18x1xf32>
    %cst_107 = arith.constant 3.200000e+01 : f32
    %339 = vector.broadcast %cst_107 : f32 to vector<18x1xf32>
    %340 = arith.divf %338, %339 : vector<18x1xf32>
    %341 = vector.broadcast %333 : vector<18x1xf32> to vector<18x32xf32>
    %342 = arith.subf %329, %341 : vector<18x32xf32>
    %cst_108 = arith.constant 9.99999974E-6 : f32
    %343 = vector.broadcast %cst_108 : f32 to vector<18x1xf32>
    %344 = arith.addf %340, %343 : vector<18x1xf32>
    %345 = math.rsqrt %344 : vector<18x1xf32>
    %346 = vector.broadcast %345 : vector<18x1xf32> to vector<18x32xf32>
    %347 = arith.mulf %342, %346 : vector<18x32xf32>
    %348 = vector.extract_strided_slice %282 {offsets = [2, 0], sizes = [1, 32], strides = [1, 1]} : vector<8x128xf32> to vector<1x32xf32>
    %349 = vector.broadcast %348 : vector<1x32xf32> to vector<18x32xf32>
    %350 = arith.mulf %347, %349 : vector<18x32xf32>
    %351 = vector.extract_strided_slice %282 {offsets = [3, 0], sizes = [1, 32], strides = [1, 1]} : vector<8x128xf32> to vector<1x32xf32>
    %352 = vector.broadcast %351 : vector<1x32xf32> to vector<18x32xf32>
    %353 = arith.addf %350, %352 : vector<18x32xf32>
    %c2_109 = arith.constant 2 : index
    %c32_110 = arith.constant 32 : index
    %c0_111 = arith.constant 0 : index
    %354 = vector.load %arg5[%c2_109, %c32_110, %c0_111] : memref<3x192x128xf32, #tpu.memory_space<vmem>>, vector<1x32x128xf32>
    %355 = vector.shape_cast %354 : vector<1x32x128xf32> to vector<32x128xf32>
    %c2_112 = arith.constant 2 : index
    %c64_113 = arith.constant 64 : index
    %c0_114 = arith.constant 0 : index
    %356 = vector.load %arg5[%c2_112, %c64_113, %c0_114] : memref<3x192x128xf32, #tpu.memory_space<vmem>>, vector<1x128x128xf32>
    %357 = vector.shape_cast %356 : vector<1x128x128xf32> to vector<128x128xf32>
    %cst_115 = arith.constant dense<0.000000e+00> : vector<18x128xf32>
    %358 = tpu.matmul %353, %355, %cst_115 {dimension_numbers = #tpu.dot_dimension_numbers<[1], [0], [0], [1], [0, 0, 1, 1], [], []>} : vector<18x32xf32>, vector<32x128xf32>, vector<18x128xf32> -> vector<18x128xf32>
    %359 = vector.extract_strided_slice %282 {offsets = [4, 0], sizes = [1, 128], strides = [1, 1]} : vector<8x128xf32> to vector<1x128xf32>
    %360 = vector.broadcast %359 : vector<1x128xf32> to vector<18x128xf32>
    %361 = arith.addf %358, %360 : vector<18x128xf32>
    %cst_116 = arith.constant 0.000000e+00 : f32
    %362 = vector.broadcast %cst_116 : f32 to vector<18x128xf32>
    %363 = arith.maximumf %361, %362 : vector<18x128xf32>
    %cst_117 = arith.constant dense<0.000000e+00> : vector<18x128xf32>
    %364 = tpu.matmul %363, %357, %cst_117 {dimension_numbers = #tpu.dot_dimension_numbers<[1], [0], [0], [1], [0, 0, 1, 1], [], []>} : vector<18x128xf32>, vector<128x128xf32>, vector<18x128xf32> -> vector<18x128xf32>
    %365 = vector.extract_strided_slice %364 {offsets = [0, 0], sizes = [18, 32], strides = [1, 1]} : vector<18x128xf32> to vector<18x32xf32>
    %366 = vector.extract_strided_slice %282 {offsets = [5, 0], sizes = [1, 32], strides = [1, 1]} : vector<8x128xf32> to vector<1x32xf32>
    %367 = vector.broadcast %366 : vector<1x32xf32> to vector<18x32xf32>
    %368 = arith.addf %365, %367 : vector<18x32xf32>
    %369 = arith.addf %353, %368 : vector<18x32xf32>
    %cst_118 = arith.constant dense<0.000000e+00> : vector<18xf32>
    %370 = vector.multi_reduction <add>, %369, %cst_118 [1] : vector<18x32xf32> to vector<18xf32>
    %371 = vector.shape_cast %370 : vector<18xf32> to vector<18x1xf32>
    %cst_119 = arith.constant 3.200000e+01 : f32
    %372 = vector.broadcast %cst_119 : f32 to vector<18x1xf32>
    %373 = arith.divf %371, %372 : vector<18x1xf32>
    %374 = vector.broadcast %373 : vector<18x1xf32> to vector<18x32xf32>
    %375 = arith.subf %369, %374 : vector<18x32xf32>
    %376 = arith.mulf %375, %375 : vector<18x32xf32>
    %cst_120 = arith.constant dense<0.000000e+00> : vector<18xf32>
    %377 = vector.multi_reduction <add>, %376, %cst_120 [1] : vector<18x32xf32> to vector<18xf32>
    %378 = vector.shape_cast %377 : vector<18xf32> to vector<18x1xf32>
    %cst_121 = arith.constant 3.200000e+01 : f32
    %379 = vector.broadcast %cst_121 : f32 to vector<18x1xf32>
    %380 = arith.divf %378, %379 : vector<18x1xf32>
    %381 = vector.broadcast %373 : vector<18x1xf32> to vector<18x32xf32>
    %382 = arith.subf %369, %381 : vector<18x32xf32>
    %cst_122 = arith.constant 9.99999974E-6 : f32
    %383 = vector.broadcast %cst_122 : f32 to vector<18x1xf32>
    %384 = arith.addf %380, %383 : vector<18x1xf32>
    %385 = math.rsqrt %384 : vector<18x1xf32>
    %386 = vector.broadcast %385 : vector<18x1xf32> to vector<18x32xf32>
    %387 = arith.mulf %382, %386 : vector<18x32xf32>
    %388 = vector.extract_strided_slice %282 {offsets = [6, 0], sizes = [1, 32], strides = [1, 1]} : vector<8x128xf32> to vector<1x32xf32>
    %389 = vector.broadcast %388 : vector<1x32xf32> to vector<18x32xf32>
    %390 = arith.mulf %387, %389 : vector<18x32xf32>
    %391 = vector.extract_strided_slice %282 {offsets = [7, 0], sizes = [1, 32], strides = [1, 1]} : vector<8x128xf32> to vector<1x32xf32>
    %392 = vector.broadcast %391 : vector<1x32xf32> to vector<18x32xf32>
    %393 = arith.addf %390, %392 : vector<18x32xf32>
    %c0_123 = arith.constant 0 : index
    %c0_124 = arith.constant 0 : index
    %394 = vector.load %arg7[%c0_123, %c0_124] : memref<18x32xf32, #tpu.memory_space<vmem>>, vector<18x32xf32>
    tpu.vector_store %arg7[%c0_123, %c0_124], %393 {strides = array<i32>} : memref<18x32xf32, #tpu.memory_space<vmem>>, vector<18x32xf32>,
    return
  }
  func.func @transform_0(%arg0: i32) -> (i32, i32) {
    %c0_i32 = arith.constant 0 : i32
    %c0_i32_0 = arith.constant 0 : i32
    return %arg0, %c0_i32 : i32, i32
  }
  func.func @transform_1(%arg0: i32) -> (i32, i32) {
    %c0_i32 = arith.constant 0 : i32
    %c0_i32_0 = arith.constant 0 : i32
    %c0_i32_1 = arith.constant 0 : i32
    return %c0_i32, %c0_i32_0 : i32, i32
  }
  func.func @transform_2(%arg0: i32) -> (i32, i32) {
    %c0_i32 = arith.constant 0 : i32
    %c0_i32_0 = arith.constant 0 : i32
    %c0_i32_1 = arith.constant 0 : i32
    return %c0_i32, %c0_i32_0 : i32, i32
  }
  func.func @transform_3(%arg0: i32) -> (i32, i32) {
    %c0_i32 = arith.constant 0 : i32
    %c0_i32_0 = arith.constant 0 : i32
    return %arg0, %c0_i32 : i32, i32
  }
  func.func @transform_4(%arg0: i32) -> (i32, i32, i32) {
    %c0_i32 = arith.constant 0 : i32
    %c0_i32_0 = arith.constant 0 : i32
    %c0_i32_1 = arith.constant 0 : i32
    %c0_i32_2 = arith.constant 0 : i32
    return %c0_i32, %c0_i32_0, %c0_i32_1 : i32, i32, i32
  }
  func.func @transform_5(%arg0: i32) -> (i32, i32, i32) {
    %c0_i32 = arith.constant 0 : i32
    %c0_i32_0 = arith.constant 0 : i32
    %c0_i32_1 = arith.constant 0 : i32
    %c0_i32_2 = arith.constant 0 : i32
    return %c0_i32, %c0_i32_0, %c0_i32_1 : i32, i32, i32
  }
  func.func @transform_6(%arg0: i32) -> (i32, i32) {
    %c0_i32 = arith.constant 0 : i32
    %c0_i32_0 = arith.constant 0 : i32
    return %arg0, %c0_i32 : i32, i32
  }
}

</mosaic_0001>

<llo_original>
// kernel: tile.9
$region0: #{tile.9}
  %s0 = inlined_call_operand.vmem [shape: f32[2,9,32], index: 0, kind: input, shape index: {}]
  %s1 = inlined_call_operand.vmem [shape: f32[18,32], index: 1, kind: output, shape index: {}]
  %v2 = vld [vmem:[%s0] sm:$0xff]
  %vm3 = vcmask 261120
  %4 = vst.msk [vmem:[%s1] sm:$0xff] %vm3, %v2
  %s5 = scalar_lea.vmem %s0, 8
  %s6 = smov 3
  %v7 = vld [vmem:[%s5] ss:$8 sm:%s6]
  %vm8 = vcmask 261120
  %s9 = scalar_lea.vmem %s1, 8
  %10 = vst.msk [vmem:[%s9] sm:$0x3] %vm8, %v7
  %s11 = scalar_lea.vmem %s0, 17
  %v12 = vld [vmem:[%s11] sm:$0xff]
  %vm13 = vcmask 261120
  %s14 = scalar_lea.vmem %s1, 10
  %15 = vst.msk [vmem:[%s14] sm:$0xff] %vm13, %v12

// kernel: key_pw_encoder_forward.1
$region0: #{key_pw_encoder_forward.1}
  #allocation0 [shape = 'u32[]', space=smem, size = 0x4, offset = 0x4, fixed_abs, tag = 'smem constant byte address 0x4 - core index']
  #allocation1 [shape = 'u32[144,128]{1,0:T(1,128)}', space=vmem, size = 0x12000, scoped, tag = 'internal scratch']
  %s0 = inlined_call_operand.vmem [shape: f32[18,3], index: 0, kind: input, shape index: {}]
  %s1 = inlined_call_operand.vmem [shape: f32[2,32], index: 1, kind: input, shape index: {}]
  %s2 = inlined_call_operand.vmem [shape: f32[1,32], index: 2, kind: input, shape index: {}]
  %s3 = inlined_call_operand.vmem [shape: f32[18,32], index: 3, kind: input, shape index: {}]
  %s4 = inlined_call_operand.hbm [shape: f32[3,192,128], index: 4, kind: input, shape index: {}]
  %s5 = inlined_call_operand.vmem [shape: f32[3,8,128], index: 5, kind: input, shape index: {}]
  %s6 = inlined_call_operand.vmem [shape: f32[18,32], index: 6, kind: output, shape index: {}]
  %s7 = sld [smem:[#allocation0]]
  $region38: #{key_pw_encoder_forward.1} parent=0
    _
  %s9 = ssub.s32 1, %s7
  %s10 = scalar_select 0, %s9, %s7
  $region1: #{key_pw_encoder_forward.1} parent=0
    #allocation2 [shape = 'u8[294912]{0}', space=vmem, size = 0x48000, scoped, tag = 'input window, operand 4, single buffered']
    #allocation3 [shape = 's32[1]{0}', space=sflag, size = 0x4, scoped, tag = 'scoped memory for key_pw_encoder_forward.1']
    %11 = vsyncpa [#allocation3], 0
    // Predicated region
    $region2: #{key_pw_encoder_forward.1} parent=1 // pred_check
      _
    $region3: #{key_pw_encoder_forward.1} parent=1 // pred_check_branch
      %13 = sbr.rel (0) target = $region5
    $region4: #{key_pw_encoder_forward.1} parent=1 // pred_region
      _
    $region5: #{key_pw_encoder_forward.1} parent=1 // pred_fallthru
      _
    // Predicated region
    $region6: #{key_pw_encoder_forward.1} parent=1 // pred_check
      _
    $region7: #{key_pw_encoder_forward.1} parent=1 // pred_check_branch
      %15 = sbr.rel (0) target = $region9
    $region8: #{key_pw_encoder_forward.1} parent=1 // pred_region
      _
    $region9: #{key_pw_encoder_forward.1} parent=1 // pred_fallthru
      _
    // Predicated region
    $region10: #{key_pw_encoder_forward.1} parent=1 // pred_check
      _
    $region11: #{key_pw_encoder_forward.1} parent=1 // pred_check_branch
      %17 = sbr.rel (0) target = $region13
    $region12: #{key_pw_encoder_forward.1} parent=1 // pred_region
      _
    $region13: #{key_pw_encoder_forward.1} parent=1 // pred_fallthru
      _
    // Predicated region
    $region14: #{key_pw_encoder_forward.1} parent=1 // pred_check
      _
    $region15: #{key_pw_encoder_forward.1} parent=1 // pred_check_branch
      %19 = sbr.rel (0) target = $region17
    $region16: #{key_pw_encoder_forward.1} parent=1 // pred_region
      _
    $region17: #{key_pw_encoder_forward.1} parent=1 // pred_fallthru
      _
    // Predicated region
    $region18: #{key_pw_encoder_forward.1} parent=1 // pred_check
      _
    $region19: #{key_pw_encoder_forward.1} parent=1 // pred_check_branch
      %21 = sbr.rel (0) target = $region21
    $region20: #{key_pw_encoder_forward.1} parent=1 // pred_region
      %s23 = ssub.s32 9216, 9216
      %24 = vsyncadd [#allocation3], %s23
      %s25 = sshll.u32 [#allocation2], 4
      %s26 = int_to_ptr.vmem [resolvable:$true] %s25
      %31 = dma.hbm_to_vmem [thread:$0]  %s4, 9216, %s26, [#allocation3], 128, 128, 8
    $region21: #{key_pw_encoder_forward.1} parent=1 // pred_fallthru
      _
    // Predicated region
    $region22: #{key_pw_encoder_forward.1} parent=1 // pred_check
      _
    $region23: #{key_pw_encoder_forward.1} parent=1 // pred_check_branch
      %33 = sbr.rel (0) target = $region25
    $region24: #{key_pw_encoder_forward.1} parent=1 // pred_region
      _
    $region25: #{key_pw_encoder_forward.1} parent=1 // pred_fallthru
      _
    // Predicated region
    $region26: #{key_pw_encoder_forward.1} parent=1 // pred_check
      _
    $region27: #{key_pw_encoder_forward.1} parent=1 // pred_check_branch
      %35 = sbr.rel (0) target = $region29
    $region28: #{key_pw_encoder_forward.1} parent=1 // pred_region
      %36 = dma.done [#allocation3], 9216
    $region29: #{key_pw_encoder_forward.1} parent=1 // pred_fallthru
      _
    %v37 = vld [vmem:[%s0] sm:$0xff]
    %v38 = vld [vmem:[%s0 + $0x8] sm:$0xff]
    %v39 = vld [vmem:[%s0 + $0x10] sm:$0x3]
    %v40 = vld [vmem:[%s1] sm:$0x3]
    %42 = vset.pattern.permute.xlu0 0
    %43 = vperm.xlu0 %42, %v37
    %v44 = vpop.permute.xlu0 %43
    %47 = vset.pattern.permute.xlu0 0
    %48 = vperm.xlu0 %47, %v38
    %v49 = vpop.permute.xlu0 %48
    %52 = vset.pattern.permute.xlu0 0
    %53 = vperm.xlu0 %52, %v39
    %v54 = vpop.permute.xlu0 %53
    %v56 = vlaneseq
    %v57 = vshrl.u32 %v56, 7
    %v58 = vsub.s32 1, %v57
    %v59 = vrot.slane %v40, %v58
    %v60 = vmul.f32 %v44, %v59
    %v61 = vmul.f32 %v49, %v59
    %v62 = vmul.f32 %v54, %v59
    %v63 = vsub.f32 1.0, %v37
    %v64 = vsub.f32 1.0, %v38
    %v65 = vsub.f32 1.0, %v39
    %67 = vset.pattern.permute.xlu0 0
    %68 = vperm.xlu0 %67, %v63
    %v69 = vpop.permute.xlu0 %68
    %72 = vset.pattern.permute.xlu0 0
    %73 = vperm.xlu0 %72, %v64
    %v74 = vpop.permute.xlu0 %73
    %77 = vset.pattern.permute.xlu0 0
    %78 = vperm.xlu0 %77, %v65
    %v79 = vpop.permute.xlu0 %78
    %v81 = vlaneseq
    %v82 = vshrl.u32 %v81, 7
    %v83 = vsub.s32 0, %v82
    %v84 = vrot.slane %v40, %v83
    %v85 = vmul.f32 %v69, %v84
    %v86 = vmul.f32 %v74, %v84
    %v87 = vmul.f32 %v79, %v84
    %v88 = vadd.f32 %v60, %v85
    %v89 = vadd.f32 %v61, %v86
    %v90 = vadd.f32 %v62, %v87
    %v91 = vlaneseq
    %v92 = vand.u32 %v91, 127
    %vm93 = vcmp.eq.s32.totalorder %v92, 31
    %94 = vset.pattern.permute.xlu0 1
    %95 = vperm.xlu0 %94, %v37
    %v96 = vpop.permute.xlu0 %95
    %98 = vset.pattern.permute.xlu0 1
    %99 = vperm.xlu0 %98, %v38
    %v100 = vpop.permute.xlu0 %99
    %102 = vset.pattern.permute.xlu0 1
    %103 = vperm.xlu0 %102, %v39
    %v104 = vpop.permute.xlu0 %103
    %v106 = vsel %vm93, %v96, 0.0
    %v107 = vsel %vm93, %v100, 0.0
    %v108 = vsel %vm93, %v104, 0.0
    %v109 = vadd.f32 %v88, %v106
    %v110 = vadd.f32 %v89, %v107
    %v111 = vadd.f32 %v90, %v108
    %112 = vset.pattern.permute.xlu0 2
    %113 = vperm.xlu0 %112, %v37
    %v114 = vpop.permute.xlu0 %113
    %116 = vset.pattern.permute.xlu0 2
    %117 = vperm.xlu0 %116, %v38
    %v118 = vpop.permute.xlu0 %117
    %120 = vset.pattern.permute.xlu0 2
    %121 = vperm.xlu0 %120, %v39
    %v122 = vpop.permute.xlu0 %121
    %v124 = vmul.f32 %v114, %v109
    %v125 = vmul.f32 %v118, %v110
    %v126 = vmul.f32 %v122, %v111
    %v127 = vld [vmem:[%s2] sm:$0x1]
    %128 = vset.pattern.permute.xlu0 2
    %129 = vperm.xlu0 %128, %v63
    %v130 = vpop.permute.xlu0 %129
    %132 = vset.pattern.permute.xlu0 2
    %133 = vperm.xlu0 %132, %v64
    %v134 = vpop.permute.xlu0 %133
    %136 = vset.pattern.permute.xlu0 2
    %137 = vperm.xlu0 %136, %v65
    %v138 = vpop.permute.xlu0 %137
    %v141 = vlaneseq
    %v142 = vshrl.u32 %v141, 7
    %v143 = vsub.s32 0, %v142
    %v144 = vrot.slane %v127, %v143
    %v146 = vmul.f32 %v130, %v144
    %v147 = vmul.f32 %v134, %v144
    %v148 = vmul.f32 %v138, %v144
    %v149 = vadd.f32 %v124, %v146
    %v150 = vadd.f32 %v125, %v147
    %v151 = vadd.f32 %v126, %v148
    %v152 = vmul.f32 %v149, 5.656854
    %v153 = vmul.f32 %v150, 5.656854
    %v154 = vmul.f32 %v151, 5.656854
    %v155 = vld [vmem:[%s3] sm:$0xff]
    %v156 = vld [vmem:[%s3 + $0x8] sm:$0xff]
    %v157 = vld [vmem:[%s3 + $0x10] sm:$0x3]
    %v158 = vadd.f32 %v152, %v155
    %v159 = vadd.f32 %v153, %v156
    %v160 = vadd.f32 %v154, %v157
    %v161 = vlaneseq
    %v162 = vshrl.u32 %v161, 7
    %v163 = vadd.s32 %v162, 8
    %v164 = vadd.s32 %v162, 16
    %v165 = vcvt.s32.f32 %v162
    %v166 = vcvt.s32.f32 %v163
    %v167 = vcvt.s32.f32 %v164
    %v168 = vcvt.s32.f32 %v92
    %v169 = vadd.f32 %v165, 0.5
    %v170 = vadd.f32 %v166, 0.5
    %v171 = vadd.f32 %v167, 0.5
    %v172 = vmul.f32 %v169, 0.11111111
    %v173 = vmul.f32 %v170, 0.11111111
    %v174 = vmul.f32 %v171, 0.11111111
    %v175 = vfloor.f32 %v172
    %v176 = vfloor.f32 %v173
    %v177 = vfloor.f32 %v174
    %v178 = vadd.f32 %v168, 0.5
    %v179 = vmul.f32 %v178, 0.11111111
    %v180 = vfloor.f32 %v179
    %vm181 = vcmp.eq.f32.partialorder %v175, %v180
    %vm182 = vcmp.eq.f32.partialorder %v176, %v180
    %vm183 = vcmp.eq.f32.partialorder %v177, %v180
    %v184 = vsel %vm181, 0.0, -1e+09
    %v185 = vsel %vm182, 0.0, -1e+09
    %v186 = vsel %vm183, 0.0, -1e+09
    %v187 = vld [vmem:[%s5] sm:$0xff]
    %v188 = vld [vmem:[#allocation2] sm:$0xff]
    %v189 = vld [vmem:[#allocation2 + $0x8] sm:$0xff]
    %v190 = vld [vmem:[#allocation2 + $0x10] sm:$0xff]
    %v191 = vld [vmem:[#allocation2 + $0x18] sm:$0xff]
    %v192 = vlaneseq
    %v193 = vshrl.u32 %v192, 7
    %v194 = vsub.s32 0, %v193
    %v195 = vrot.slane %v187, %v194
    %vm196 = vcmask 261120
    %v198 = vsel %vm196, %v158, 0
    %v201 = vsel %vm196, %v159, 0
    %v204 = vsel %vm196, %v160, 0
    %206 = vmatprep.subr.mxu0 0.0
    %207 = vmatpush1.msra.mxu0 %v188
    %208 = vmatprep.subr.mxu0 0.0
    %209 = vmatpush1.msra.mxu0 %v189
    %210 = vmatprep.subr.mxu0 0.0
    %211 = vmatpush1.msra.mxu0 %v190
    %212 = vmatprep.subr.mxu0 0.0
    %213 = vmatpush1.msra.mxu0 %v191
    %214 = vmatprep.subr.mxu0 0.0
    %215 = vmatpush1.msra.mxu0 0.0
    %216 = vmatprep.subr.mxu0 0.0
    %217 = vmatpush1.msra.mxu0 0.0
    %218 = vmatprep.subr.mxu0 0.0
    %219 = vmatpush1.msra.mxu0 0.0
    %220 = vmatprep.subr.mxu0 0.0
    %221 = vmatpush1.msra.mxu0 0.0
    %222 = vmatprep.subr.mxu0 0.0
    %223 = vmatpush1.msra.mxu0 0.0
    %224 = vmatprep.subr.mxu0 0.0
    %225 = vmatpush1.msra.mxu0 0.0
    %226 = vmatprep.subr.mxu0 0.0
    %227 = vmatpush1.msra.mxu0 0.0
    %228 = vmatprep.subr.mxu0 0.0
    %229 = vmatpush1.msra.mxu0 0.0
    %230 = vmatprep.subr.mxu0 0.0
    %231 = vmatpush1.msra.mxu0 0.0
    %232 = vmatprep.subr.mxu0 0.0
    %233 = vmatpush1.msra.mxu0 0.0
    %234 = vmatprep.subr.mxu0 0.0
    %235 = vmatpush1.msra.mxu0 0.0
    %236 = vmatprep.subr.mxu0 0.0
    %237 = vmatpush1.msra.mxu0 0.0
    %238 = vmatprep.subr.mxu0 0.0
    %239 = vmatpush1.msra.mxu0 0.0
    %240 = vmatprep.subr.mxu0 0.0
    %241 = vmatpush1.msra.mxu0 0.0
    %242 = vmatprep.subr.mxu0 0.0
    %243 = vmatpush1.msra.mxu0 0.0
    %244 = vmatprep.subr.mxu0 0.0
    %245 = vmatpush1.msra.mxu0 0.0
    %246 = vmatprep.subr.mxu0 0.0
    %247 = vmatpush1.msra.mxu0 0.0
    %248 = vmatprep.subr.mxu0 0.0
    %249 = vmatpush1.msra.mxu0 0.0
    %250 = vmatprep.subr.mxu0 0.0
    %251 = vmatpush1.msra.mxu0 0.0
    %252 = vmatprep.subr.mxu0 0.0
    %253 = vmatpush1.msra.mxu0 0.0
    %254 = vmatprep.subr.mxu0 0.0
    %255 = vmatpush1.msra.mxu0 0.0
    %256 = vmatprep.subr.mxu0 0.0
    %257 = vmatpush1.msra.mxu0 0.0
    %258 = vmatprep.subr.mxu0 0.0
    %259 = vmatpush1.msra.mxu0 0.0
    %260 = vmatprep.subr.mxu0 0.0
    %261 = vmatpush1.msra.mxu0 0.0
    %262 = vmatprep.subr.mxu0 0.0
    %263 = vmatpush1.msra.mxu0 0.0
    %264 = vmatprep.subr.mxu0 0.0
    %265 = vmatpush1.msra.mxu0 0.0
    %266 = vmatprep.subr.mxu0 0.0
    %267 = vmatpush1.msra.mxu0 0.0
    %268 = vmatprep.subr.mxu0 0.0
    %269 = vmatpush1.msra.mxu0 0.0
    %270 = vmatprep.mubr.f32.mxu0 0.0
    %271 = vmatmul.mubr.f32.gmra.mrb[0].mxu0 %v198
    %v272 = vpop.f32.mrb[0].mxu0
    %v273 = vadd.f32 %v195, %v272
    %v274 = vpop.f32.mrb[0].mxu0
    %275 = vmatprep.mubr.f32.mxu0 0.0
    %276 = vmatmul.mubr.f32.gmra.mrb[0].mxu0 %v201
    %v277 = vpop.f32.mrb[0].mxu0
    %v278 = vadd.f32 %v195, %v277
    %v279 = vpop.f32.mrb[0].mxu0
    %280 = vmatprep.mubr.f32.mxu0 0.0
    %281 = vmatmul.mubr.f32.gmra.mrb[0].mxu0 %v204
    %v282 = vpop.f32.mrb[0].mxu0
    %v283 = vadd.f32 %v195, %v282
    %v284 = vpop.f32.mrb[0].mxu0
    %285 = vdwg.mxu0
    %289 = vrot.lane.b32.xlu0 %v273, 96
    %v290 = vpop.permute.xlu0 %289
    %291 = vrot.lane.b32.xlu0 %v278, 96
    %v292 = vpop.permute.xlu0 %291
    %293 = vrot.lane.b32.xlu0 %v283, 96
    %v294 = vpop.permute.xlu0 %293
    %vm295 = vcmask 130048
    %v296 = vsel %vm295, %v273, 0
    %v298 = vsel %vm295, %v278, 0
    %v300 = vsel %vm295, %v283, 0
    %v302 = vsel %vm295, %v290, 0
    %v304 = vsel %vm295, %v292, 0
    %v306 = vsel %vm295, %v294, 0
    %308 = vmatprep.subr.mxu0 0.0
    %309 = vmatpush1.xpose.msra.mxu0 %v302
    %310 = vmatprep.subr.mxu0 0.0
    %311 = vmatpush1.xpose.msra.mxu0 %v304
    %312 = vmatprep.subr.mxu0 0.0
    %313 = vmatpush1.xpose.msra.mxu0 %v306
    %314 = vmatprep.subr.mxu0 0.0
    %315 = vmatpush1.xpose.msra.mxu0 0.0
    %316 = vmatprep.subr.mxu0 0.0
    %317 = vmatpush1.xpose.msra.mxu0 0.0
    %318 = vmatprep.subr.mxu0 0.0
    %319 = vmatpush1.xpose.msra.mxu0 0.0
    %320 = vmatprep.subr.mxu0 0.0
    %321 = vmatpush1.xpose.msra.mxu0 0.0
    %322 = vmatprep.subr.mxu0 0.0
    %323 = vmatpush1.xpose.msra.mxu0 0.0
    %324 = vmatprep.subr.mxu0 0.0
    %325 = vmatpush1.xpose.msra.mxu0 0.0
    %326 = vmatprep.subr.mxu0 0.0
    %327 = vmatpush1.xpose.msra.mxu0 0.0
    %328 = vmatprep.subr.mxu0 0.0
    %329 = vmatpush1.xpose.msra.mxu0 0.0
    %330 = vmatprep.subr.mxu0 0.0
    %331 = vmatpush1.xpose.msra.mxu0 0.0
    %332 = vmatprep.subr.mxu0 0.0
    %333 = vmatpush1.xpose.msra.mxu0 0.0
    %334 = vmatprep.subr.mxu0 0.0
    %335 = vmatpush1.xpose.msra.mxu0 0.0
    %336 = vmatprep.subr.mxu0 0.0
    %337 = vmatpush1.xpose.msra.mxu0 0.0
    %338 = vmatprep.subr.mxu0 0.0
    %339 = vmatpush1.xpose.msra.mxu0 0.0
    %340 = vmatprep.subr.mxu0 0.0
    %341 = vmatpush1.xpose.msra.mxu0 0.0
    %342 = vmatprep.subr.mxu0 0.0
    %343 = vmatpush1.xpose.msra.mxu0 0.0
    %344 = vmatprep.subr.mxu0 0.0
    %345 = vmatpush1.xpose.msra.mxu0 0.0
    %346 = vmatprep.subr.mxu0 0.0
    %347 = vmatpush1.xpose.msra.mxu0 0.0
    %348 = vmatprep.subr.mxu0 0.0
    %349 = vmatpush1.xpose.msra.mxu0 0.0
    %350 = vmatprep.subr.mxu0 0.0
    %351 = vmatpush1.xpose.msra.mxu0 0.0
    %352 = vmatprep.subr.mxu0 0.0
    %353 = vmatpush1.xpose.msra.mxu0 0.0
    %354 = vmatprep.subr.mxu0 0.0
    %355 = vmatpush1.xpose.msra.mxu0 0.0
    %356 = vmatprep.subr.mxu0 0.0
    %357 = vmatpush1.xpose.msra.mxu0 0.0
    %358 = vmatprep.subr.mxu0 0.0
    %359 = vmatpush1.xpose.msra.mxu0 0.0
    %360 = vmatprep.subr.mxu0 0.0
    %361 = vmatpush1.xpose.msra.mxu0 0.0
    %362 = vmatprep.subr.mxu0 0.0
    %363 = vmatpush1.xpose.msra.mxu0 0.0
    %364 = vmatprep.subr.mxu0 0.0
    %365 = vmatpush1.xpose.msra.mxu0 0.0
    %366 = vmatprep.subr.mxu0 0.0
    %367 = vmatpush1.xpose.msra.mxu0 0.0
    %368 = vmatprep.subr.mxu0 0.0
    %369 = vmatpush1.xpose.msra.mxu0 0.0
    %370 = vmatprep.subr.mxu0 0.0
    %371 = vmatpush1.xpose.msra.mxu0 0.0
    %372 = vmatprep.mubr.f32.mxu0 0.0
    %373 = vmatmul.mubr.f32.gmra.mrb[0].mxu0 %v296
    %v374 = vpop.f32.mrb[0].mxu0
    %v375 = vadd.f32 0.0, %v374
    %v376 = vpop.f32.mrb[0].mxu0
    %377 = vmatprep.mubr.f32.mxu0 0.0
    %378 = vmatmul.mubr.f32.gmra.mrb[0].mxu0 %v298
    %v379 = vpop.f32.mrb[0].mxu0
    %v380 = vadd.f32 0.0, %v379
    %v381 = vpop.f32.mrb[0].mxu0
    %382 = vmatprep.mubr.f32.mxu0 0.0
    %383 = vmatmul.mubr.f32.gmra.mrb[0].mxu0 %v300
    %v384 = vpop.f32.mrb[0].mxu0
    %v385 = vadd.f32 0.0, %v384
    %v386 = vpop.f32.mrb[0].mxu0
    %387 = vdwg.mxu0
    %v388 = vmul.f32 %v375, 0.25
    %v389 = vmul.f32 %v380, 0.25
    %v390 = vmul.f32 %v385, 0.25
    %v391 = vadd.f32 %v388, %v184
    %v392 = vadd.f32 %v389, %v185
    %v393 = vadd.f32 %v390, %v186
    %vm394 = vcmask 146432
    %v395 = vsel %vm394, %v391, -inf
    %396 = vmax.xlane.f32.xlu0 %v395
    %v397 = vpop.xlane.xlu0 %396
    %v398 = vsel %vm394, %v392, -inf
    %399 = vmax.xlane.f32.xlu0 %v398
    %v400 = vpop.xlane.xlu0 %399
    %vm401 = vcmask 140288
    %v402 = vsel %vm401, %v393, -inf
    %403 = vmax.xlane.f32.xlu0 %v402
    %v404 = vpop.xlane.xlu0 %403
    %v405 = vsub.f32 %v391, %v397
    %v406 = vsub.f32 %v392, %v400
    %v407 = vsub.f32 %v393, %v404
    %v408 = vmul.f32 %v405, 1.442695
    %v409 = vpow.pop %v408
    %v410 = vmul.f32 %v406, 1.442695
    %v411 = vpow.pop %v410
    %v412 = vmul.f32 %v407, 1.442695
    %v413 = vpow.pop %v412
    %v414 = vsel %vm394, %v409, 0.0
    %415 = vadd.xlane.f32.xlu0 %v414
    %v416 = vpop.xlane.xlu0 %415
    %v417 = vsel %vm394, %v411, 0.0
    %418 = vadd.xlane.f32.xlu0 %v417
    %v419 = vpop.xlane.xlu0 %418
    %v420 = vsel %vm401, %v413, 0.0
    %421 = vadd.xlane.f32.xlu0 %v420
    %v422 = vpop.xlane.xlu0 %421
    %v423 = vrcp.pop %v416
    %v424 = vmul.f32 %v409, %v423
    %v425 = vrcp.pop %v419
    %v426 = vmul.f32 %v411, %v425
    %v427 = vrcp.pop %v422
    %v428 = vmul.f32 %v413, %v427
    %429 = vrot.lane.b32.xlu0 %v273, 64
    %v430 = vpop.permute.xlu0 %429
    %431 = vrot.lane.b32.xlu0 %v278, 64
    %v432 = vpop.permute.xlu0 %431
    %433 = vrot.lane.b32.xlu0 %v283, 64
    %v434 = vpop.permute.xlu0 %433
    %v438 = vsel %vm394, %v424, 0
    %v441 = vsel %vm394, %v426, 0
    %v444 = vsel %vm394, %v428, 0
    %vm446 = vcmask 1041408
    %v447 = vsel %vm446, %v434, 0
    %449 = vmatprep.subr.mxu0 0.0
    %450 = vmatpush1.msra.mxu0 %v430
    %451 = vmatprep.subr.mxu0 0.0
    %452 = vmatpush1.msra.mxu0 %v432
    %453 = vmatprep.subr.mxu0 0.0
    %454 = vmatpush1.msra.mxu0 %v447
    %455 = vmatprep.subr.mxu0 0.0
    %456 = vmatpush1.msra.mxu0 0.0
    %457 = vmatprep.subr.mxu0 0.0
    %458 = vmatpush1.msra.mxu0 0.0
    %459 = vmatprep.subr.mxu0 0.0
    %460 = vmatpush1.msra.mxu0 0.0
    %461 = vmatprep.subr.mxu0 0.0
    %462 = vmatpush1.msra.mxu0 0.0
    %463 = vmatprep.subr.mxu0 0.0
    %464 = vmatpush1.msra.mxu0 0.0
    %465 = vmatprep.subr.mxu0 0.0
    %466 = vmatpush1.msra.mxu0 0.0
    %467 = vmatprep.subr.mxu0 0.0
    %468 = vmatpush1.msra.mxu0 0.0
    %469 = vmatprep.subr.mxu0 0.0
    %470 = vmatpush1.msra.mxu0 0.0
    %471 = vmatprep.subr.mxu0 0.0
    %472 = vmatpush1.msra.mxu0 0.0
    %473 = vmatprep.subr.mxu0 0.0
    %474 = vmatpush1.msra.mxu0 0.0
    %475 = vmatprep.subr.mxu0 0.0
    %476 = vmatpush1.msra.mxu0 0.0
    %477 = vmatprep.subr.mxu0 0.0
    %478 = vmatpush1.msra.mxu0 0.0
    %479 = vmatprep.subr.mxu0 0.0
    %480 = vmatpush1.msra.mxu0 0.0
    %481 = vmatprep.subr.mxu0 0.0
    %482 = vmatpush1.msra.mxu0 0.0
    %483 = vmatprep.subr.mxu0 0.0
    %484 = vmatpush1.msra.mxu0 0.0
    %485 = vmatprep.subr.mxu0 0.0
    %486 = vmatpush1.msra.mxu0 0.0
    %487 = vmatprep.subr.mxu0 0.0
    %488 = vmatpush1.msra.mxu0 0.0
    %489 = vmatprep.subr.mxu0 0.0
    %490 = vmatpush1.msra.mxu0 0.0
    %491 = vmatprep.subr.mxu0 0.0
    %492 = vmatpush1.msra.mxu0 0.0
    %493 = vmatprep.subr.mxu0 0.0
    %494 = vmatpush1.msra.mxu0 0.0
    %495 = vmatprep.subr.mxu0 0.0
    %496 = vmatpush1.msra.mxu0 0.0
    %497 = vmatprep.subr.mxu0 0.0
    %498 = vmatpush1.msra.mxu0 0.0
    %499 = vmatprep.subr.mxu0 0.0
    %500 = vmatpush1.msra.mxu0 0.0
    %501 = vmatprep.subr.mxu0 0.0
    %502 = vmatpush1.msra.mxu0 0.0
    %503 = vmatprep.subr.mxu0 0.0
    %504 = vmatpush1.msra.mxu0 0.0
    %505 = vmatprep.subr.mxu0 0.0
    %506 = vmatpush1.msra.mxu0 0.0
    %507 = vmatprep.subr.mxu0 0.0
    %508 = vmatpush1.msra.mxu0 0.0
    %509 = vmatprep.subr.mxu0 0.0
    %510 = vmatpush1.msra.mxu0 0.0
    %511 = vmatprep.subr.mxu0 0.0
    %512 = vmatpush1.msra.mxu0 0.0
    %513 = vmatprep.mubr.f32.mxu0 0.0
    %514 = vmatmul.mubr.f32.gmra.mrb[0].mxu0 %v438
    %v515 = vpop.f32.mrb[0].mxu0
    %v516 = vadd.f32 0.0, %v515
    %v517 = vpop.f32.mrb[0].mxu0
    %518 = vmatprep.mubr.f32.mxu0 0.0
    %519 = vmatmul.mubr.f32.gmra.mrb[0].mxu0 %v441
    %v520 = vpop.f32.mrb[0].mxu0
    %v521 = vadd.f32 0.0, %v520
    %v522 = vpop.f32.mrb[0].mxu0
    %523 = vmatprep.mubr.f32.mxu0 0.0
    %524 = vmatmul.mubr.f32.gmra.mrb[0].mxu0 %v444
    %v525 = vpop.f32.mrb[0].mxu0
    %v526 = vadd.f32 0.0, %v525
    %v527 = vpop.f32.mrb[0].mxu0
    %528 = vdwg.mxu0
    %529 = vrot.lane.b32.xlu0 %v273, 112
    %v530 = vpop.permute.xlu0 %529
    %531 = vrot.lane.b32.xlu0 %v278, 112
    %v532 = vpop.permute.xlu0 %531
    %533 = vrot.lane.b32.xlu0 %v283, 112
    %v534 = vpop.permute.xlu0 %533
    %535 = vrot.lane.b32.xlu0 %v273, 80
    %v536 = vpop.permute.xlu0 %535
    %537 = vrot.lane.b32.xlu0 %v278, 80
    %v538 = vpop.permute.xlu0 %537
    %539 = vrot.lane.b32.xlu0 %v283, 80
    %v540 = vpop.permute.xlu0 %539
    %v541 = vsel %vm295, %v530, 0
    %v543 = vsel %vm295, %v532, 0
    %v545 = vsel %vm295, %v534, 0
    %v547 = vsel %vm295, %v536, 0
    %v549 = vsel %vm295, %v538, 0
    %v551 = vsel %vm295, %v540, 0
    %553 = vmatprep.subr.mxu0 0.0
    %554 = vmatpush1.xpose.msra.mxu0 %v547
    %555 = vmatprep.subr.mxu0 0.0
    %556 = vmatpush1.xpose.msra.mxu0 %v549
    %557 = vmatprep.subr.mxu0 0.0
    %558 = vmatpush1.xpose.msra.mxu0 %v551
    %559 = vmatprep.subr.mxu0 0.0
    %560 = vmatpush1.xpose.msra.mxu0 0.0
    %561 = vmatprep.subr.mxu0 0.0
    %562 = vmatpush1.xpose.msra.mxu0 0.0
    %563 = vmatprep.subr.mxu0 0.0
    %564 = vmatpush1.xpose.msra.mxu0 0.0
    %565 = vmatprep.subr.mxu0 0.0
    %566 = vmatpush1.xpose.msra.mxu0 0.0
    %567 = vmatprep.subr.mxu0 0.0
    %568 = vmatpush1.xpose.msra.mxu0 0.0
    %569 = vmatprep.subr.mxu0 0.0
    %570 = vmatpush1.xpose.msra.mxu0 0.0
    %571 = vmatprep.subr.mxu0 0.0
    %572 = vmatpush1.xpose.msra.mxu0 0.0
    %573 = vmatprep.subr.mxu0 0.0
    %574 = vmatpush1.xpose.msra.mxu0 0.0
    %575 = vmatprep.subr.mxu0 0.0
    %576 = vmatpush1.xpose.msra.mxu0 0.0
    %577 = vmatprep.subr.mxu0 0.0
    %578 = vmatpush1.xpose.msra.mxu0 0.0
    %579 = vmatprep.subr.mxu0 0.0
    %580 = vmatpush1.xpose.msra.mxu0 0.0
    %581 = vmatprep.subr.mxu0 0.0
    %582 = vmatpush1.xpose.msra.mxu0 0.0
    %583 = vmatprep.subr.mxu0 0.0
    %584 = vmatpush1.xpose.msra.mxu0 0.0
    %585 = vmatprep.subr.mxu0 0.0
    %586 = vmatpush1.xpose.msra.mxu0 0.0
    %587 = vmatprep.subr.mxu0 0.0
    %588 = vmatpush1.xpose.msra.mxu0 0.0
    %589 = vmatprep.subr.mxu0 0.0
    %590 = vmatpush1.xpose.msra.mxu0 0.0
    %591 = vmatprep.subr.mxu0 0.0
    %592 = vmatpush1.xpose.msra.mxu0 0.0
    %593 = vmatprep.subr.mxu0 0.0
    %594 = vmatpush1.xpose.msra.mxu0 0.0
    %595 = vmatprep.subr.mxu0 0.0
    %596 = vmatpush1.xpose.msra.mxu0 0.0
    %597 = vmatprep.subr.mxu0 0.0
    %598 = vmatpush1.xpose.msra.mxu0 0.0
    %599 = vmatprep.subr.mxu0 0.0
    %600 = vmatpush1.xpose.msra.mxu0 0.0
    %601 = vmatprep.subr.mxu0 0.0
    %602 = vmatpush1.xpose.msra.mxu0 0.0
    %603 = vmatprep.subr.mxu0 0.0
    %604 = vmatpush1.xpose.msra.mxu0 0.0
    %605 = vmatprep.subr.mxu0 0.0
    %606 = vmatpush1.xpose.msra.mxu0 0.0
    %607 = vmatprep.subr.mxu0 0.0
    %608 = vmatpush1.xpose.msra.mxu0 0.0
    %609 = vmatprep.subr.mxu0 0.0
    %610 = vmatpush1.xpose.msra.mxu0 0.0
    %611 = vmatprep.subr.mxu0 0.0
    %612 = vmatpush1.xpose.msra.mxu0 0.0
    %613 = vmatprep.subr.mxu0 0.0
    %614 = vmatpush1.xpose.msra.mxu0 0.0
    %615 = vmatprep.subr.mxu0 0.0
    %616 = vmatpush1.xpose.msra.mxu0 0.0
    %617 = vmatprep.mubr.f32.mxu0 0.0
    %618 = vmatmul.mubr.f32.gmra.mrb[0].mxu0 %v541
    %v619 = vpop.f32.mrb[0].mxu0
    %v620 = vadd.f32 0.0, %v619
    %v621 = vpop.f32.mrb[0].mxu0
    %622 = vmatprep.mubr.f32.mxu0 0.0
    %623 = vmatmul.mubr.f32.gmra.mrb[0].mxu0 %v543
    %v624 = vpop.f32.mrb[0].mxu0
    %v625 = vadd.f32 0.0, %v624
    %v626 = vpop.f32.mrb[0].mxu0
    %627 = vmatprep.mubr.f32.mxu0 0.0
    %628 = vmatmul.mubr.f32.gmra.mrb[0].mxu0 %v545
    %v629 = vpop.f32.mrb[0].mxu0
    %v630 = vadd.f32 0.0, %v629
    %v631 = vpop.f32.mrb[0].mxu0
    %632 = vdwg.mxu0
    %v633 = vmul.f32 %v620, 0.25
    %v634 = vmul.f32 %v625, 0.25
    %v635 = vmul.f32 %v630, 0.25
    %v636 = vadd.f32 %v633, %v184
    %v637 = vadd.f32 %v634, %v185
    %v638 = vadd.f32 %v635, %v186
    %v639 = vsel %vm394, %v636, -inf
    %640 = vmax.xlane.f32.xlu0 %v639
    %v641 = vpop.xlane.xlu0 %640
    %v642 = vsel %vm394, %v637, -inf
    %643 = vmax.xlane.f32.xlu0 %v642
    %v644 = vpop.xlane.xlu0 %643
    %v645 = vsel %vm401, %v638, -inf
    %646 = vmax.xlane.f32.xlu0 %v645
    %v647 = vpop.xlane.xlu0 %646
    %v648 = vsub.f32 %v636, %v641
    %v649 = vsub.f32 %v637, %v644
    %v650 = vsub.f32 %v638, %v647
    %v651 = vmul.f32 %v648, 1.442695
    %v652 = vpow.pop %v651
    %v653 = vmul.f32 %v649, 1.442695
    %v654 = vpow.pop %v653
    %v655 = vmul.f32 %v650, 1.442695
    %v656 = vpow.pop %v655
    %v657 = vsel %vm394, %v652, 0.0
    %658 = vadd.xlane.f32.xlu0 %v657
    %v659 = vpop.xlane.xlu0 %658
    %v660 = vsel %vm394, %v654, 0.0
    %661 = vadd.xlane.f32.xlu0 %v660
    %v662 = vpop.xlane.xlu0 %661
    %v663 = vsel %vm401, %v656, 0.0
    %664 = vadd.xlane.f32.xlu0 %v663
    %v665 = vpop.xlane.xlu0 %664
    %v666 = vrcp.pop %v659
    %v667 = vmul.f32 %v652, %v666
    %v668 = vrcp.pop %v662
    %v669 = vmul.f32 %v654, %v668
    %v670 = vrcp.pop %v665
    %v671 = vmul.f32 %v656, %v670
    %672 = vrot.lane.b32.xlu0 %v273, 48
    %v673 = vpop.permute.xlu0 %672
    %674 = vrot.lane.b32.xlu0 %v278, 48
    %v675 = vpop.permute.xlu0 %674
    %676 = vrot.lane.b32.xlu0 %v283, 48
    %v677 = vpop.permute.xlu0 %676
    %v681 = vsel %vm394, %v667, 0
    %v684 = vsel %vm394, %v669, 0
    %v687 = vsel %vm394, %v671, 0
    %v689 = vsel %vm446, %v677, 0
    %691 = vmatprep.subr.mxu0 0.0
    %692 = vmatpush1.msra.mxu0 %v673
    %693 = vmatprep.subr.mxu0 0.0
    %694 = vmatpush1.msra.mxu0 %v675
    %695 = vmatprep.subr.mxu0 0.0
    %696 = vmatpush1.msra.mxu0 %v689
    %697 = vmatprep.subr.mxu0 0.0
    %698 = vmatpush1.msra.mxu0 0.0
    %699 = vmatprep.subr.mxu0 0.0
    %700 = vmatpush1.msra.mxu0 0.0
    %701 = vmatprep.subr.mxu0 0.0
    %702 = vmatpush1.msra.mxu0 0.0
    %703 = vmatprep.subr.mxu0 0.0
    %704 = vmatpush1.msra.mxu0 0.0
    %705 = vmatprep.subr.mxu0 0.0
    %706 = vmatpush1.msra.mxu0 0.0
    %707 = vmatprep.subr.mxu0 0.0
    %708 = vmatpush1.msra.mxu0 0.0
    %709 = vmatprep.subr.mxu0 0.0
    %710 = vmatpush1.msra.mxu0 0.0
    %711 = vmatprep.subr.mxu0 0.0
    %712 = vmatpush1.msra.mxu0 0.0
    %713 = vmatprep.subr.mxu0 0.0
    %714 = vmatpush1.msra.mxu0 0.0
    %715 = vmatprep.subr.mxu0 0.0
    %716 = vmatpush1.msra.mxu0 0.0
    %717 = vmatprep.subr.mxu0 0.0
    %718 = vmatpush1.msra.mxu0 0.0
    %719 = vmatprep.subr.mxu0 0.0
    %720 = vmatpush1.msra.mxu0 0.0
    %721 = vmatprep.subr.mxu0 0.0
    %722 = vmatpush1.msra.mxu0 0.0
    %723 = vmatprep.subr.mxu0 0.0
    %724 = vmatpush1.msra.mxu0 0.0
    %725 = vmatprep.subr.mxu0 0.0
    %726 = vmatpush1.msra.mxu0 0.0
    %727 = vmatprep.subr.mxu0 0.0
    %728 = vmatpush1.msra.mxu0 0.0
    %729 = vmatprep.subr.mxu0 0.0
    %730 = vmatpush1.msra.mxu0 0.0
    %731 = vmatprep.subr.mxu0 0.0
    %732 = vmatpush1.msra.mxu0 0.0
    %733 = vmatprep.subr.mxu0 0.0
    %734 = vmatpush1.msra.mxu0 0.0
    %735 = vmatprep.subr.mxu0 0.0
    %736 = vmatpush1.msra.mxu0 0.0
    %737 = vmatprep.subr.mxu0 0.0
    %738 = vmatpush1.msra.mxu0 0.0
    %739 = vmatprep.subr.mxu0 0.0
    %740 = vmatpush1.msra.mxu0 0.0
    %741 = vmatprep.subr.mxu0 0.0
    %742 = vmatpush1.msra.mxu0 0.0
    %743 = vmatprep.subr.mxu0 0.0
    %744 = vmatpush1.msra.mxu0 0.0
    %745 = vmatprep.subr.mxu0 0.0
    %746 = vmatpush1.msra.mxu0 0.0
    %747 = vmatprep.subr.mxu0 0.0
    %748 = vmatpush1.msra.mxu0 0.0
    %749 = vmatprep.subr.mxu0 0.0
    %750 = vmatpush1.msra.mxu0 0.0
    %751 = vmatprep.subr.mxu0 0.0
    %752 = vmatpush1.msra.mxu0 0.0
    %753 = vmatprep.subr.mxu0 0.0
    %754 = vmatpush1.msra.mxu0 0.0
    %755 = vmatprep.mubr.f32.mxu0 0.0
    %756 = vmatmul.mubr.f32.gmra.mrb[0].mxu0 %v681
    %v757 = vpop.f32.mrb[0].mxu0
    %v758 = vadd.f32 0.0, %v757
    %v759 = vpop.f32.mrb[0].mxu0
    %760 = vmatprep.mubr.f32.mxu0 0.0
    %761 = vmatmul.mubr.f32.gmra.mrb[0].mxu0 %v684
    %v762 = vpop.f32.mrb[0].mxu0
    %v763 = vadd.f32 0.0, %v762
    %v764 = vpop.f32.mrb[0].mxu0
    %765 = vmatprep.mubr.f32.mxu0 0.0
    %766 = vmatmul.mubr.f32.gmra.mrb[0].mxu0 %v687
    %v767 = vpop.f32.mrb[0].mxu0
    %v768 = vadd.f32 0.0, %v767
    %v769 = vpop.f32.mrb[0].mxu0
    %770 = vdwg.mxu0
    %774 = vrot.lane.b32.xlu0 %v758, 16
    %v775 = vpop.permute.xlu0 %774
    %776 = vrot.lane.b32.xlu0 %v763, 16
    %v777 = vpop.permute.xlu0 %776
    %778 = vrot.lane.b32.xlu0 %v768, 16
    %v779 = vpop.permute.xlu0 %778
    %v783 = vsel %vm295, %v516, %v775
    %v784 = vsel %vm295, %v521, %v777
    %v785 = vsel %vm295, %v526, %v779
    %v786 = vlaneseq
    %v787 = vshrl.u32 %v786, 7
    %v788 = vsub.s32 1, %v787
    %v789 = vrot.slane %v187, %v788
    %794 = vrot.lane.b32.xlu0 %v188, 32
    %v795 = vpop.permute.xlu0 %794
    %796 = vrot.lane.b32.xlu0 %v189, 32
    %v797 = vpop.permute.xlu0 %796
    %798 = vrot.lane.b32.xlu0 %v190, 32
    %v799 = vpop.permute.xlu0 %798
    %800 = vrot.lane.b32.xlu0 %v191, 32
    %v801 = vpop.permute.xlu0 %800
    %v807 = vsel %vm196, %v783, 0
    %v810 = vsel %vm196, %v784, 0
    %v813 = vsel %vm196, %v785, 0
    %815 = vmatprep.subr.mxu0 0.0
    %816 = vmatpush1.msra.mxu0 %v795
    %817 = vmatprep.subr.mxu0 0.0
    %818 = vmatpush1.msra.mxu0 %v797
    %819 = vmatprep.subr.mxu0 0.0
    %820 = vmatpush1.msra.mxu0 %v799
    %821 = vmatprep.subr.mxu0 0.0
    %822 = vmatpush1.msra.mxu0 %v801
    %823 = vmatprep.subr.mxu0 0.0
    %824 = vmatpush1.msra.mxu0 0.0
    %825 = vmatprep.subr.mxu0 0.0
    %826 = vmatpush1.msra.mxu0 0.0
    %827 = vmatprep.subr.mxu0 0.0
    %828 = vmatpush1.msra.mxu0 0.0
    %829 = vmatprep.subr.mxu0 0.0
    %830 = vmatpush1.msra.mxu0 0.0
    %831 = vmatprep.subr.mxu0 0.0
    %832 = vmatpush1.msra.mxu0 0.0
    %833 = vmatprep.subr.mxu0 0.0
    %834 = vmatpush1.msra.mxu0 0.0
    %835 = vmatprep.subr.mxu0 0.0
    %836 = vmatpush1.msra.mxu0 0.0
    %837 = vmatprep.subr.mxu0 0.0
    %838 = vmatpush1.msra.mxu0 0.0
    %839 = vmatprep.subr.mxu0 0.0
    %840 = vmatpush1.msra.mxu0 0.0
    %841 = vmatprep.subr.mxu0 0.0
    %842 = vmatpush1.msra.mxu0 0.0
    %843 = vmatprep.subr.mxu0 0.0
    %844 = vmatpush1.msra.mxu0 0.0
    %845 = vmatprep.subr.mxu0 0.0
    %846 = vmatpush1.msra.mxu0 0.0
    %847 = vmatprep.subr.mxu0 0.0
    %848 = vmatpush1.msra.mxu0 0.0
    %849 = vmatprep.subr.mxu0 0.0
    %850 = vmatpush1.msra.mxu0 0.0
    %851 = vmatprep.subr.mxu0 0.0
    %852 = vmatpush1.msra.mxu0 0.0
    %853 = vmatprep.subr.mxu0 0.0
    %854 = vmatpush1.msra.mxu0 0.0
    %855 = vmatprep.subr.mxu0 0.0
    %856 = vmatpush1.msra.mxu0 0.0
    %857 = vmatprep.subr.mxu0 0.0
    %858 = vmatpush1.msra.mxu0 0.0
    %859 = vmatprep.subr.mxu0 0.0
    %860 = vmatpush1.msra.mxu0 0.0
    %861 = vmatprep.subr.mxu0 0.0
    %862 = vmatpush1.msra.mxu0 0.0
    %863 = vmatprep.subr.mxu0 0.0
    %864 = vmatpush1.msra.mxu0 0.0
    %865 = vmatprep.subr.mxu0 0.0
    %866 = vmatpush1.msra.mxu0 0.0
    %867 = vmatprep.subr.mxu0 0.0
    %868 = vmatpush1.msra.mxu0 0.0
    %869 = vmatprep.subr.mxu0 0.0
    %870 = vmatpush1.msra.mxu0 0.0
    %871 = vmatprep.subr.mxu0 0.0
    %872 = vmatpush1.msra.mxu0 0.0
    %873 = vmatprep.subr.mxu0 0.0
    %874 = vmatpush1.msra.mxu0 0.0
    %875 = vmatprep.subr.mxu0 0.0
    %876 = vmatpush1.msra.mxu0 0.0
    %877 = vmatprep.subr.mxu0 0.0
    %878 = vmatpush1.msra.mxu0 0.0
    %879 = vmatprep.mubr.f32.mxu0 0.0
    %880 = vmatmul.mubr.f32.gmra.mrb[0].mxu0 %v807
    %v881 = vpop.f32.mrb[0].mxu0
    %v882 = vadd.f32 %v789, %v881
    %v883 = vpop.f32.mrb[0].mxu0
    %884 = vmatprep.mubr.f32.mxu0 0.0
    %885 = vmatmul.mubr.f32.gmra.mrb[0].mxu0 %v810
    %v886 = vpop.f32.mrb[0].mxu0
    %v887 = vadd.f32 %v789, %v886
    %v888 = vpop.f32.mrb[0].mxu0
    %889 = vmatprep.mubr.f32.mxu0 0.0
    %890 = vmatmul.mubr.f32.gmra.mrb[0].mxu0 %v813
    %v891 = vpop.f32.mrb[0].mxu0
    %v892 = vadd.f32 %v789, %v891
    %v893 = vpop.f32.mrb[0].mxu0
    %894 = vdwg.mxu0
    %v895 = vadd.f32 %v158, %v882
    %v896 = vadd.f32 %v159, %v887
    %v897 = vadd.f32 %v160, %v892
    %v898 = vsel %vm196, %v895, 0.0
    %899 = vadd.xlane.f32.xlu0 %v898
    %v900 = vpop.xlane.xlu0 %899
    %v901 = vsel %vm196, %v896, 0.0
    %902 = vadd.xlane.f32.xlu0 %v901
    %v903 = vpop.xlane.xlu0 %902
    %vm904 = vcmask 254976
    %v905 = vsel %vm904, %v897, 0.0
    %906 = vadd.xlane.f32.xlu0 %v905
    %v907 = vpop.xlane.xlu0 %906
    %v908 = vrcp.pop 32.0
    %v909 = vmul.f32 %v900, %v908
    %v910 = vmul.f32 %v903, %v908
    %v911 = vmul.f32 %v907, %v908
    %v912 = vsub.f32 %v895, %v909
    %v913 = vsub.f32 %v896, %v910
    %v914 = vsub.f32 %v897, %v911
    %v915 = vmul.f32 %v912, %v912
    %v916 = vmul.f32 %v913, %v913
    %v917 = vmul.f32 %v914, %v914
    %v918 = vsel %vm196, %v915, 0.0
    %919 = vadd.xlane.f32.xlu0 %v918
    %v920 = vpop.xlane.xlu0 %919
    %v921 = vsel %vm196, %v916, 0.0
    %922 = vadd.xlane.f32.xlu0 %v921
    %v923 = vpop.xlane.xlu0 %922
    %v924 = vsel %vm904, %v917, 0.0
    %925 = vadd.xlane.f32.xlu0 %v924
    %v926 = vpop.xlane.xlu0 %925
    %v927 = vmul.f32 %v920, %v908
    %v928 = vmul.f32 %v923, %v908
    %v929 = vmul.f32 %v926, %v908
    %v930 = vadd.f32 %v927, 1e-05
    %v931 = vadd.f32 %v928, 1e-05
    %v932 = vadd.f32 %v929, 1e-05
    %v933 = vrsqrt.pop %v930
    %v934 = vrsqrt.pop %v931
    %v935 = vrsqrt.pop %v932
    %v936 = vmul.f32 %v912, %v933
    %v937 = vmul.f32 %v913, %v934
    %v938 = vmul.f32 %v914, %v935
    %v939 = vlaneseq
    %v940 = vshrl.u32 %v939, 7
    %v941 = vsub.s32 2, %v940
    %v942 = vrot.slane %v187, %v941
    %v943 = vmul.f32 %v936, %v942
    %v944 = vmul.f32 %v937, %v942
    %v945 = vmul.f32 %v938, %v942
    %v946 = vlaneseq
    %v947 = vshrl.u32 %v946, 7
    %v948 = vsub.s32 3, %v947
    %v949 = vrot.slane %v187, %v948
    %v950 = vadd.f32 %v943, %v949
    %v951 = vadd.f32 %v944, %v949
    %v952 = vadd.f32 %v945, %v949
    %v953 = vld [vmem:[#allocation2 + $0x20] sm:$0xff]
    %v954 = vld [vmem:[#allocation2 + $0x28] sm:$0xff]
    %v955 = vld [vmem:[#allocation2 + $0x30] sm:$0xff]
    %v956 = vld [vmem:[#allocation2 + $0x38] sm:$0xff]
    %v957 = vld [vmem:[#allocation2 + $0x40] sm:$0xff]
    %v958 = vld [vmem:[#allocation2 + $0x48] sm:$0xff]
    %v959 = vld [vmem:[#allocation2 + $0x50] sm:$0xff]
    %v960 = vld [vmem:[#allocation2 + $0x58] sm:$0xff]
    %v961 = vld [vmem:[#allocation2 + $0x60] sm:$0xff]
    %v962 = vld [vmem:[#allocation2 + $0x68] sm:$0xff]
    %v963 = vld [vmem:[#allocation2 + $0x70] sm:$0xff]
    %v964 = vld [vmem:[#allocation2 + $0x78] sm:$0xff]
    %v965 = vld [vmem:[#allocation2 + $0x80] sm:$0xff]
    %v966 = vld [vmem:[#allocation2 + $0x88] sm:$0xff]
    %v967 = vld [vmem:[#allocation2 + $0x90] sm:$0xff]
    %v968 = vld [vmem:[#allocation2 + $0x98] sm:$0xff]
    %v969 = vld [vmem:[#allocation2 + $0xa0] sm:$0xff]
    %v970 = vld [vmem:[#allocation2 + $0xa8] sm:$0xff]
    %v971 = vld [vmem:[#allocation2 + $0xb0] sm:$0xff]
    %v972 = vld [vmem:[#allocation2 + $0xb8] sm:$0xff]
    %v973 = vlaneseq
    %v974 = vshrl.u32 %v973, 7
    %v975 = vsub.s32 4, %v974
    %v976 = vrot.slane %v187, %v975
    %v978 = vsel %vm196, %v950, 0
    %v981 = vsel %vm196, %v951, 0
    %v984 = vsel %vm196, %v952, 0
    %986 = vmatprep.subr.mxu0 0.0
    %987 = vmatpush1.msra.mxu0 %v953
    %988 = vmatprep.subr.mxu0 0.0
    %989 = vmatpush1.msra.mxu0 %v954
    %990 = vmatprep.subr.mxu0 0.0
    %991 = vmatpush1.msra.mxu0 %v955
    %992 = vmatprep.subr.mxu0 0.0
    %993 = vmatpush1.msra.mxu0 %v956
    %994 = vmatprep.subr.mxu0 0.0
    %995 = vmatpush1.msra.mxu0 0.0
    %996 = vmatprep.subr.mxu0 0.0
    %997 = vmatpush1.msra.mxu0 0.0
    %998 = vmatprep.subr.mxu0 0.0
    %999 = vmatpush1.msra.mxu0 0.0
    %1000 = vmatprep.subr.mxu0 0.0
    %1001 = vmatpush1.msra.mxu0 0.0
    %1002 = vmatprep.subr.mxu0 0.0
    %1003 = vmatpush1.msra.mxu0 0.0
    %1004 = vmatprep.subr.mxu0 0.0
    %1005 = vmatpush1.msra.mxu0 0.0
    %1006 = vmatprep.subr.mxu0 0.0
    %1007 = vmatpush1.msra.mxu0 0.0
    %1008 = vmatprep.subr.mxu0 0.0
    %1009 = vmatpush1.msra.mxu0 0.0
    %1010 = vmatprep.subr.mxu0 0.0
    %1011 = vmatpush1.msra.mxu0 0.0
    %1012 = vmatprep.subr.mxu0 0.0
    %1013 = vmatpush1.msra.mxu0 0.0
    %1014 = vmatprep.subr.mxu0 0.0
    %1015 = vmatpush1.msra.mxu0 0.0
    %1016 = vmatprep.subr.mxu0 0.0
    %1017 = vmatpush1.msra.mxu0 0.0
    %1018 = vmatprep.subr.mxu0 0.0
    %1019 = vmatpush1.msra.mxu0 0.0
    %1020 = vmatprep.subr.mxu0 0.0
    %1021 = vmatpush1.msra.mxu0 0.0
    %1022 = vmatprep.subr.mxu0 0.0
    %1023 = vmatpush1.msra.mxu0 0.0
    %1024 = vmatprep.subr.mxu0 0.0
    %1025 = vmatpush1.msra.mxu0 0.0
    %1026 = vmatprep.subr.mxu0 0.0
    %1027 = vmatpush1.msra.mxu0 0.0
    %1028 = vmatprep.subr.mxu0 0.0
    %1029 = vmatpush1.msra.mxu0 0.0
    %1030 = vmatprep.subr.mxu0 0.0
    %1031 = vmatpush1.msra.mxu0 0.0
    %1032 = vmatprep.subr.mxu0 0.0
    %1033 = vmatpush1.msra.mxu0 0.0
    %1034 = vmatprep.subr.mxu0 0.0
    %1035 = vmatpush1.msra.mxu0 0.0
    %1036 = vmatprep.subr.mxu0 0.0
    %1037 = vmatpush1.msra.mxu0 0.0
    %1038 = vmatprep.subr.mxu0 0.0
    %1039 = vmatpush1.msra.mxu0 0.0
    %1040 = vmatprep.subr.mxu0 0.0
    %1041 = vmatpush1.msra.mxu0 0.0
    %1042 = vmatprep.subr.mxu0 0.0
    %1043 = vmatpush1.msra.mxu0 0.0
    %1044 = vmatprep.subr.mxu0 0.0
    %1045 = vmatpush1.msra.mxu0 0.0
    %1046 = vmatprep.subr.mxu0 0.0
    %1047 = vmatpush1.msra.mxu0 0.0
    %1048 = vmatprep.subr.mxu0 0.0
    %1049 = vmatpush1.msra.mxu0 0.0
    %1050 = vmatprep.mubr.f32.mxu0 0.0
    %1051 = vmatmul.mubr.f32.gmra.mrb[0].mxu0 %v978
    %v1052 = vpop.f32.mrb[0].mxu0
    %v1053 = vadd.f32 %v976, %v1052
    %v1054 = vpop.f32.mrb[0].mxu0
    %1055 = vmatprep.mubr.f32.mxu0 0.0
    %1056 = vmatmul.mubr.f32.gmra.mrb[0].mxu0 %v981
    %v1057 = vpop.f32.mrb[0].mxu0
    %v1058 = vadd.f32 %v976, %v1057
    %v1059 = vpop.f32.mrb[0].mxu0
    %1060 = vmatprep.mubr.f32.mxu0 0.0
    %1061 = vmatmul.mubr.f32.gmra.mrb[0].mxu0 %v984
    %v1062 = vpop.f32.mrb[0].mxu0
    %v1063 = vadd.f32 %v976, %v1062
    %v1064 = vpop.f32.mrb[0].mxu0
    %1065 = vdwg.mxu0
    %v1066 = vmax.f32 %v1053, 0.0
    %v1067 = vmax.f32 %v1058, 0.0
    %v1068 = vmax.f32 %v1063, 0.0
    %1069 = vmatprep.subr.mxu0 0.0
    %1070 = vmatpush1.msra.mxu0 %v957
    %1071 = vmatprep.subr.mxu0 0.0
    %1072 = vmatpush1.msra.mxu0 %v958
    %1073 = vmatprep.subr.mxu0 0.0
    %1074 = vmatpush1.msra.mxu0 %v959
    %1075 = vmatprep.subr.mxu0 0.0
    %1076 = vmatpush1.msra.mxu0 %v960
    %1077 = vmatprep.subr.mxu0 0.0
    %1078 = vmatpush1.msra.mxu0 %v961
    %1079 = vmatprep.subr.mxu0 0.0
    %1080 = vmatpush1.msra.mxu0 %v962
    %1081 = vmatprep.subr.mxu0 0.0
    %1082 = vmatpush1.msra.mxu0 %v963
    %1083 = vmatprep.subr.mxu0 0.0
    %1084 = vmatpush1.msra.mxu0 %v964
    %1085 = vmatprep.subr.mxu0 0.0
    %1086 = vmatpush1.msra.mxu0 %v965
    %1087 = vmatprep.subr.mxu0 0.0
    %1088 = vmatpush1.msra.mxu0 %v966
    %1089 = vmatprep.subr.mxu0 0.0
    %1090 = vmatpush1.msra.mxu0 %v967
    %1091 = vmatprep.subr.mxu0 0.0
    %1092 = vmatpush1.msra.mxu0 %v968
    %1093 = vmatprep.subr.mxu0 0.0
    %1094 = vmatpush1.msra.mxu0 %v969
    %1095 = vmatprep.subr.mxu0 0.0
    %1096 = vmatpush1.msra.mxu0 %v970
    %1097 = vmatprep.subr.mxu0 0.0
    %1098 = vmatpush1.msra.mxu0 %v971
    %1099 = vmatprep.subr.mxu0 0.0
    %1100 = vmatpush1.msra.mxu0 %v972
    %1101 = vmatprep.subr.mxu0 0.0
    %1102 = vmatpush1.msra.mxu0 0.0
    %1103 = vmatprep.subr.mxu0 0.0
    %1104 = vmatpush1.msra.mxu0 0.0
    %1105 = vmatprep.subr.mxu0 0.0
    %1106 = vmatpush1.msra.mxu0 0.0
    %1107 = vmatprep.subr.mxu0 0.0
    %1108 = vmatpush1.msra.mxu0 0.0
    %1109 = vmatprep.subr.mxu0 0.0
    %1110 = vmatpush1.msra.mxu0 0.0
    %1111 = vmatprep.subr.mxu0 0.0
    %1112 = vmatpush1.msra.mxu0 0.0
    %1113 = vmatprep.subr.mxu0 0.0
    %1114 = vmatpush1.msra.mxu0 0.0
    %1115 = vmatprep.subr.mxu0 0.0
    %1116 = vmatpush1.msra.mxu0 0.0
    %1117 = vmatprep.subr.mxu0 0.0
    %1118 = vmatpush1.msra.mxu0 0.0
    %1119 = vmatprep.subr.mxu0 0.0
    %1120 = vmatpush1.msra.mxu0 0.0
    %1121 = vmatprep.subr.mxu0 0.0
    %1122 = vmatpush1.msra.mxu0 0.0
    %1123 = vmatprep.subr.mxu0 0.0
    %1124 = vmatpush1.msra.mxu0 0.0
    %1125 = vmatprep.subr.mxu0 0.0
    %1126 = vmatpush1.msra.mxu0 0.0
    %1127 = vmatprep.subr.mxu0 0.0
    %1128 = vmatpush1.msra.mxu0 0.0
    %1129 = vmatprep.subr.mxu0 0.0
    %1130 = vmatpush1.msra.mxu0 0.0
    %1131 = vmatprep.subr.mxu0 0.0
    %1132 = vmatpush1.msra.mxu0 0.0
    %1133 = vmatprep.mubr.f32.mxu0 0.0
    %1134 = vmatmul.mubr.f32.gmra.mrb[0].mxu0 %v1066
    %v1135 = vpop.f32.mrb[0].mxu0
    %v1136 = vadd.f32 0.0, %v1135
    %v1137 = vpop.f32.mrb[0].mxu0
    %1138 = vmatprep.mubr.f32.mxu0 0.0
    %1139 = vmatmul.mubr.f32.gmra.mrb[0].mxu0 %v1067
    %v1140 = vpop.f32.mrb[0].mxu0
    %v1141 = vadd.f32 0.0, %v1140
    %v1142 = vpop.f32.mrb[0].mxu0
    %1143 = vmatprep.mubr.f32.mxu0 0.0
    %1144 = vmatmul.mubr.f32.gmra.mrb[0].mxu0 %v1068
    %v1145 = vpop.f32.mrb[0].mxu0
    %v1146 = vadd.f32 0.0, %v1145
    %v1147 = vpop.f32.mrb[0].mxu0
    %1148 = vdwg.mxu0
    %v1149 = vlaneseq
    %v1150 = vshrl.u32 %v1149, 7
    %v1151 = vsub.s32 5, %v1150
    %v1152 = vrot.slane %v187, %v1151
    %v1153 = vadd.f32 %v1136, %v1152
    %v1154 = vadd.f32 %v1141, %v1152
    %v1155 = vadd.f32 %v1146, %v1152
    %v1156 = vadd.f32 %v950, %v1153
    %v1157 = vadd.f32 %v951, %v1154
    %v1158 = vadd.f32 %v952, %v1155
    %v1159 = vsel %vm196, %v1156, 0.0
    %1160 = vadd.xlane.f32.xlu0 %v1159
    %v1161 = vpop.xlane.xlu0 %1160
    %v1162 = vsel %vm196, %v1157, 0.0
    %1163 = vadd.xlane.f32.xlu0 %v1162
    %v1164 = vpop.xlane.xlu0 %1163
    %v1165 = vsel %vm904, %v1158, 0.0
    %1166 = vadd.xlane.f32.xlu0 %v1165
    %v1167 = vpop.xlane.xlu0 %1166
    %v1168 = vmul.f32 %v1161, %v908
    %v1169 = vmul.f32 %v1164, %v908
    %v1170 = vmul.f32 %v1167, %v908
    %v1171 = vsub.f32 %v1156, %v1168
    %v1172 = vsub.f32 %v1157, %v1169
    %v1173 = vsub.f32 %v1158, %v1170
    %v1174 = vmul.f32 %v1171, %v1171
    %v1175 = vmul.f32 %v1172, %v1172
    %v1176 = vmul.f32 %v1173, %v1173
    %v1177 = vsel %vm196, %v1174, 0.0
    %1178 = vadd.xlane.f32.xlu0 %v1177
    %v1179 = vpop.xlane.xlu0 %1178
    %v1180 = vsel %vm196, %v1175, 0.0
    %1181 = vadd.xlane.f32.xlu0 %v1180
    %v1182 = vpop.xlane.xlu0 %1181
    %v1183 = vsel %vm904, %v1176, 0.0
    %1184 = vadd.xlane.f32.xlu0 %v1183
    %v1185 = vpop.xlane.xlu0 %1184
    %v1186 = vmul.f32 %v1179, %v908
    %v1187 = vmul.f32 %v1182, %v908
    %v1188 = vmul.f32 %v1185, %v908
    %v1189 = vadd.f32 %v1186, 1e-05
    %v1190 = vadd.f32 %v1187, 1e-05
    %v1191 = vadd.f32 %v1188, 1e-05
    %v1192 = vrsqrt.pop %v1189
    %v1193 = vrsqrt.pop %v1190
    %v1194 = vrsqrt.pop %v1191
    %v1195 = vmul.f32 %v1171, %v1192
    %v1196 = vmul.f32 %v1172, %v1193
    %v1197 = vmul.f32 %v1173, %v1194
    %v1198 = vlaneseq
    %v1199 = vshrl.u32 %v1198, 7
    %v1200 = vsub.s32 6, %v1199
    %v1201 = vrot.slane %v187, %v1200
    %v1202 = vmul.f32 %v1195, %v1201
    %v1203 = vmul.f32 %v1196, %v1201
    %v1204 = vmul.f32 %v1197, %v1201
    %v1205 = vlaneseq
    %v1206 = vshrl.u32 %v1205, 7
    %v1207 = vsub.s32 7, %v1206
    %v1208 = vrot.slane %v187, %v1207
    %v1209 = vadd.f32 %v1202, %v1208
    %v1210 = vadd.f32 %v1203, %v1208
    %v1211 = vadd.f32 %v1204, %v1208
    %s1212 = scalar_lea.vmem %s5, 8
    %v1213 = vld [vmem:[%s1212] sm:$0xff]
    %s1214 = scalar_lea.vmem [#allocation2], 192
    %v1215 = vld [vmem:[%s1214] sm:$0xff]
    %v1216 = vld [vmem:[%s1214 + $0x8] sm:$0xff]
    %v1217 = vld [vmem:[%s1214 + $0x10] sm:$0xff]
    %v1218 = vld [vmem:[%s1214 + $0x18] sm:$0xff]
    %v1219 = vlaneseq
    %v1220 = vshrl.u32 %v1219, 7
    %v1221 = vsub.s32 0, %v1220
    %v1222 = vrot.slane %v1213, %v1221
    %v1224 = vsel %vm196, %v1209, 0
    %v1227 = vsel %vm196, %v1210, 0
    %v1230 = vsel %vm196, %v1211, 0
    %1232 = vmatprep.subr.mxu0 0.0
    %1233 = vmatpush1.msra.mxu0 %v1215
    %1234 = vmatprep.subr.mxu0 0.0
    %1235 = vmatpush1.msra.mxu0 %v1216
    %1236 = vmatprep.subr.mxu0 0.0
    %1237 = vmatpush1.msra.mxu0 %v1217
    %1238 = vmatprep.subr.mxu0 0.0
    %1239 = vmatpush1.msra.mxu0 %v1218
    %1240 = vmatprep.subr.mxu0 0.0
    %1241 = vmatpush1.msra.mxu0 0.0
    %1242 = vmatprep.subr.mxu0 0.0
    %1243 = vmatpush1.msra.mxu0 0.0
    %1244 = vmatprep.subr.mxu0 0.0
    %1245 = vmatpush1.msra.mxu0 0.0
    %1246 = vmatprep.subr.mxu0 0.0
    %1247 = vmatpush1.msra.mxu0 0.0
    %1248 = vmatprep.subr.mxu0 0.0
    %1249 = vmatpush1.msra.mxu0 0.0
    %1250 = vmatprep.subr.mxu0 0.0
    %1251 = vmatpush1.msra.mxu0 0.0
    %1252 = vmatprep.subr.mxu0 0.0
    %1253 = vmatpush1.msra.mxu0 0.0
    %1254 = vmatprep.subr.mxu0 0.0
    %1255 = vmatpush1.msra.mxu0 0.0
    %1256 = vmatprep.subr.mxu0 0.0
    %1257 = vmatpush1.msra.mxu0 0.0
    %1258 = vmatprep.subr.mxu0 0.0
    %1259 = vmatpush1.msra.mxu0 0.0
    %1260 = vmatprep.subr.mxu0 0.0
    %1261 = vmatpush1.msra.mxu0 0.0
    %1262 = vmatprep.subr.mxu0 0.0
    %1263 = vmatpush1.msra.mxu0 0.0
    %1264 = vmatprep.subr.mxu0 0.0
    %1265 = vmatpush1.msra.mxu0 0.0
    %1266 = vmatprep.subr.mxu0 0.0
    %1267 = vmatpush1.msra.mxu0 0.0
    %1268 = vmatprep.subr.mxu0 0.0
    %1269 = vmatpush1.msra.mxu0 0.0
    %1270 = vmatprep.subr.mxu0 0.0
    %1271 = vmatpush1.msra.mxu0 0.0
    %1272 = vmatprep.subr.mxu0 0.0
    %1273 = vmatpush1.msra.mxu0 0.0
    %1274 = vmatprep.subr.mxu0 0.0
    %1275 = vmatpush1.msra.mxu0 0.0
    %1276 = vmatprep.subr.mxu0 0.0
    %1277 = vmatpush1.msra.mxu0 0.0
    %1278 = vmatprep.subr.mxu0 0.0
    %1279 = vmatpush1.msra.mxu0 0.0
    %1280 = vmatprep.subr.mxu0 0.0
    %1281 = vmatpush1.msra.mxu0 0.0
    %1282 = vmatprep.subr.mxu0 0.0
    %1283 = vmatpush1.msra.mxu0 0.0
    %1284 = vmatprep.subr.mxu0 0.0
    %1285 = vmatpush1.msra.mxu0 0.0
    %1286 = vmatprep.subr.mxu0 0.0
    %1287 = vmatpush1.msra.mxu0 0.0
    %1288 = vmatprep.subr.mxu0 0.0
    %1289 = vmatpush1.msra.mxu0 0.0
    %1290 = vmatprep.subr.mxu0 0.0
    %1291 = vmatpush1.msra.mxu0 0.0
    %1292 = vmatprep.subr.mxu0 0.0
    %1293 = vmatpush1.msra.mxu0 0.0
    %1294 = vmatprep.subr.mxu0 0.0
    %1295 = vmatpush1.msra.mxu0 0.0
    %1296 = vmatprep.mubr.f32.mxu0 0.0
    %1297 = vmatmul.mubr.f32.gmra.mrb[0].mxu0 %v1224
    %v1298 = vpop.f32.mrb[0].mxu0
    %v1299 = vadd.f32 %v1222, %v1298
    %v1300 = vpop.f32.mrb[0].mxu0
    %1301 = vmatprep.mubr.f32.mxu0 0.0
    %1302 = vmatmul.mubr.f32.gmra.mrb[0].mxu0 %v1227
    %v1303 = vpop.f32.mrb[0].mxu0
    %v1304 = vadd.f32 %v1222, %v1303
    %v1305 = vpop.f32.mrb[0].mxu0
    %1306 = vmatprep.mubr.f32.mxu0 0.0
    %1307 = vmatmul.mubr.f32.gmra.mrb[0].mxu0 %v1230
    %v1308 = vpop.f32.mrb[0].mxu0
    %v1309 = vadd.f32 %v1222, %v1308
    %v1310 = vpop.f32.mrb[0].mxu0
    %1311 = vdwg.mxu0
    %1315 = vrot.lane.b32.xlu0 %v1299, 96
    %v1316 = vpop.permute.xlu0 %1315
    %1317 = vrot.lane.b32.xlu0 %v1304, 96
    %v1318 = vpop.permute.xlu0 %1317
    %1319 = vrot.lane.b32.xlu0 %v1309, 96
    %v1320 = vpop.permute.xlu0 %1319
    %v1321 = vsel %vm295, %v1299, 0
    %v1323 = vsel %vm295, %v1304, 0
    %v1325 = vsel %vm295, %v1309, 0
    %v1327 = vsel %vm295, %v1316, 0
    %v1329 = vsel %vm295, %v1318, 0
    %v1331 = vsel %vm295, %v1320, 0
    %1333 = vmatprep.subr.mxu0 0.0
    %1334 = vmatpush1.xpose.msra.mxu0 %v1327
    %1335 = vmatprep.subr.mxu0 0.0
    %1336 = vmatpush1.xpose.msra.mxu0 %v1329
    %1337 = vmatprep.subr.mxu0 0.0
    %1338 = vmatpush1.xpose.msra.mxu0 %v1331
    %1339 = vmatprep.subr.mxu0 0.0
    %1340 = vmatpush1.xpose.msra.mxu0 0.0
    %1341 = vmatprep.subr.mxu0 0.0
    %1342 = vmatpush1.xpose.msra.mxu0 0.0
    %1343 = vmatprep.subr.mxu0 0.0
    %1344 = vmatpush1.xpose.msra.mxu0 0.0
    %1345 = vmatprep.subr.mxu0 0.0
    %1346 = vmatpush1.xpose.msra.mxu0 0.0
    %1347 = vmatprep.subr.mxu0 0.0
    %1348 = vmatpush1.xpose.msra.mxu0 0.0
    %1349 = vmatprep.subr.mxu0 0.0
    %1350 = vmatpush1.xpose.msra.mxu0 0.0
    %1351 = vmatprep.subr.mxu0 0.0
    %1352 = vmatpush1.xpose.msra.mxu0 0.0
    %1353 = vmatprep.subr.mxu0 0.0
    %1354 = vmatpush1.xpose.msra.mxu0 0.0
    %1355 = vmatprep.subr.mxu0 0.0
    %1356 = vmatpush1.xpose.msra.mxu0 0.0
    %1357 = vmatprep.subr.mxu0 0.0
    %1358 = vmatpush1.xpose.msra.mxu0 0.0
    %1359 = vmatprep.subr.mxu0 0.0
    %1360 = vmatpush1.xpose.msra.mxu0 0.0
    %1361 = vmatprep.subr.mxu0 0.0
    %1362 = vmatpush1.xpose.msra.mxu0 0.0
    %1363 = vmatprep.subr.mxu0 0.0
    %1364 = vmatpush1.xpose.msra.mxu0 0.0
    %1365 = vmatprep.subr.mxu0 0.0
    %1366 = vmatpush1.xpose.msra.mxu0 0.0
    %1367 = vmatprep.subr.mxu0 0.0
    %1368 = vmatpush1.xpose.msra.mxu0 0.0
    %1369 = vmatprep.subr.mxu0 0.0
    %1370 = vmatpush1.xpose.msra.mxu0 0.0
    %1371 = vmatprep.subr.mxu0 0.0
    %1372 = vmatpush1.xpose.msra.mxu0 0.0
    %1373 = vmatprep.subr.mxu0 0.0
    %1374 = vmatpush1.xpose.msra.mxu0 0.0
    %1375 = vmatprep.subr.mxu0 0.0
    %1376 = vmatpush1.xpose.msra.mxu0 0.0
    %1377 = vmatprep.subr.mxu0 0.0
    %1378 = vmatpush1.xpose.msra.mxu0 0.0
    %1379 = vmatprep.subr.mxu0 0.0
    %1380 = vmatpush1.xpose.msra.mxu0 0.0
    %1381 = vmatprep.subr.mxu0 0.0
    %1382 = vmatpush1.xpose.msra.mxu0 0.0
    %1383 = vmatprep.subr.mxu0 0.0
    %1384 = vmatpush1.xpose.msra.mxu0 0.0
    %1385 = vmatprep.subr.mxu0 0.0
    %1386 = vmatpush1.xpose.msra.mxu0 0.0
    %1387 = vmatprep.subr.mxu0 0.0
    %1388 = vmatpush1.xpose.msra.mxu0 0.0
    %1389 = vmatprep.subr.mxu0 0.0
    %1390 = vmatpush1.xpose.msra.mxu0 0.0
    %1391 = vmatprep.subr.mxu0 0.0
    %1392 = vmatpush1.xpose.msra.mxu0 0.0
    %1393 = vmatprep.subr.mxu0 0.0
    %1394 = vmatpush1.xpose.msra.mxu0 0.0
    %1395 = vmatprep.subr.mxu0 0.0
    %1396 = vmatpush1.xpose.msra.mxu0 0.0
    %1397 = vmatprep.mubr.f32.mxu0 0.0
    %1398 = vmatmul.mubr.f32.gmra.mrb[0].mxu0 %v1321
    %v1399 = vpop.f32.mrb[0].mxu0
    %v1400 = vadd.f32 0.0, %v1399
    %v1401 = vpop.f32.mrb[0].mxu0
    %1402 = vmatprep.mubr.f32.mxu0 0.0
    %1403 = vmatmul.mubr.f32.gmra.mrb[0].mxu0 %v1323
    %v1404 = vpop.f32.mrb[0].mxu0
    %v1405 = vadd.f32 0.0, %v1404
    %v1406 = vpop.f32.mrb[0].mxu0
    %1407 = vmatprep.mubr.f32.mxu0 0.0
    %1408 = vmatmul.mubr.f32.gmra.mrb[0].mxu0 %v1325
    %v1409 = vpop.f32.mrb[0].mxu0
    %v1410 = vadd.f32 0.0, %v1409
    %v1411 = vpop.f32.mrb[0].mxu0
    %1412 = vdwg.mxu0
    %v1413 = vmul.f32 %v1400, 0.25
    %v1414 = vmul.f32 %v1405, 0.25
    %v1415 = vmul.f32 %v1410, 0.25
    %v1416 = vadd.f32 %v1413, %v184
    %v1417 = vadd.f32 %v1414, %v185
    %v1418 = vadd.f32 %v1415, %v186
    %v1419 = vsel %vm394, %v1416, -inf
    %1420 = vmax.xlane.f32.xlu0 %v1419
    %v1421 = vpop.xlane.xlu0 %1420
    %v1422 = vsel %vm394, %v1417, -inf
    %1423 = vmax.xlane.f32.xlu0 %v1422
    %v1424 = vpop.xlane.xlu0 %1423
    %v1425 = vsel %vm401, %v1418, -inf
    %1426 = vmax.xlane.f32.xlu0 %v1425
    %v1427 = vpop.xlane.xlu0 %1426
    %v1428 = vsub.f32 %v1416, %v1421
    %v1429 = vsub.f32 %v1417, %v1424
    %v1430 = vsub.f32 %v1418, %v1427
    %v1431 = vmul.f32 %v1428, 1.442695
    %v1432 = vpow.pop %v1431
    %v1433 = vmul.f32 %v1429, 1.442695
    %v1434 = vpow.pop %v1433
    %v1435 = vmul.f32 %v1430, 1.442695
    %v1436 = vpow.pop %v1435
    %v1437 = vsel %vm394, %v1432, 0.0
    %1438 = vadd.xlane.f32.xlu0 %v1437
    %v1439 = vpop.xlane.xlu0 %1438
    %v1440 = vsel %vm394, %v1434, 0.0
    %1441 = vadd.xlane.f32.xlu0 %v1440
    %v1442 = vpop.xlane.xlu0 %1441
    %v1443 = vsel %vm401, %v1436, 0.0
    %1444 = vadd.xlane.f32.xlu0 %v1443
    %v1445 = vpop.xlane.xlu0 %1444
    %v1446 = vrcp.pop %v1439
    %v1447 = vmul.f32 %v1432, %v1446
    %v1448 = vrcp.pop %v1442
    %v1449 = vmul.f32 %v1434, %v1448
    %v1450 = vrcp.pop %v1445
    %v1451 = vmul.f32 %v1436, %v1450
    %1452 = vrot.lane.b32.xlu0 %v1299, 64
    %v1453 = vpop.permute.xlu0 %1452
    %1454 = vrot.lane.b32.xlu0 %v1304, 64
    %v1455 = vpop.permute.xlu0 %1454
    %1456 = vrot.lane.b32.xlu0 %v1309, 64
    %v1457 = vpop.permute.xlu0 %1456
    %v1461 = vsel %vm394, %v1447, 0
    %v1464 = vsel %vm394, %v1449, 0
    %v1467 = vsel %vm394, %v1451, 0
    %v1469 = vsel %vm446, %v1457, 0
    %1471 = vmatprep.subr.mxu0 0.0
    %1472 = vmatpush1.msra.mxu0 %v1453
    %1473 = vmatprep.subr.mxu0 0.0
    %1474 = vmatpush1.msra.mxu0 %v1455
    %1475 = vmatprep.subr.mxu0 0.0
    %1476 = vmatpush1.msra.mxu0 %v1469
    %1477 = vmatprep.subr.mxu0 0.0
    %1478 = vmatpush1.msra.mxu0 0.0
    %1479 = vmatprep.subr.mxu0 0.0
    %1480 = vmatpush1.msra.mxu0 0.0
    %1481 = vmatprep.subr.mxu0 0.0
    %1482 = vmatpush1.msra.mxu0 0.0
    %1483 = vmatprep.subr.mxu0 0.0
    %1484 = vmatpush1.msra.mxu0 0.0
    %1485 = vmatprep.subr.mxu0 0.0
    %1486 = vmatpush1.msra.mxu0 0.0
    %1487 = vmatprep.subr.mxu0 0.0
    %1488 = vmatpush1.msra.mxu0 0.0
    %1489 = vmatprep.subr.mxu0 0.0
    %1490 = vmatpush1.msra.mxu0 0.0
    %1491 = vmatprep.subr.mxu0 0.0
    %1492 = vmatpush1.msra.mxu0 0.0
    %1493 = vmatprep.subr.mxu0 0.0
    %1494 = vmatpush1.msra.mxu0 0.0
    %1495 = vmatprep.subr.mxu0 0.0
    %1496 = vmatpush1.msra.mxu0 0.0
    %1497 = vmatprep.subr.mxu0 0.0
    %1498 = vmatpush1.msra.mxu0 0.0
    %1499 = vmatprep.subr.mxu0 0.0
    %1500 = vmatpush1.msra.mxu0 0.0
    %1501 = vmatprep.subr.mxu0 0.0
    %1502 = vmatpush1.msra.mxu0 0.0
    %1503 = vmatprep.subr.mxu0 0.0
    %1504 = vmatpush1.msra.mxu0 0.0
    %1505 = vmatprep.subr.mxu0 0.0
    %1506 = vmatpush1.msra.mxu0 0.0
    %1507 = vmatprep.subr.mxu0 0.0
    %1508 = vmatpush1.msra.mxu0 0.0
    %1509 = vmatprep.subr.mxu0 0.0
    %1510 = vmatpush1.msra.mxu0 0.0
    %1511 = vmatprep.subr.mxu0 0.0
    %1512 = vmatpush1.msra.mxu0 0.0
    %1513 = vmatprep.subr.mxu0 0.0
    %1514 = vmatpush1.msra.mxu0 0.0
    %1515 = vmatprep.subr.mxu0 0.0
    %1516 = vmatpush1.msra.mxu0 0.0
    %1517 = vmatprep.subr.mxu0 0.0
    %1518 = vmatpush1.msra.mxu0 0.0
    %1519 = vmatprep.subr.mxu0 0.0
    %1520 = vmatpush1.msra.mxu0 0.0
    %1521 = vmatprep.subr.mxu0 0.0
    %1522 = vmatpush1.msra.mxu0 0.0
    %1523 = vmatprep.subr.mxu0 0.0
    %1524 = vmatpush1.msra.mxu0 0.0
    %1525 = vmatprep.subr.mxu0 0.0
    %1526 = vmatpush1.msra.mxu0 0.0
    %1527 = vmatprep.subr.mxu0 0.0
    %1528 = vmatpush1.msra.mxu0 0.0
    %1529 = vmatprep.subr.mxu0 0.0
    %1530 = vmatpush1.msra.mxu0 0.0
    %1531 = vmatprep.subr.mxu0 0.0
    %1532 = vmatpush1.msra.mxu0 0.0
    %1533 = vmatprep.subr.mxu0 0.0
    %1534 = vmatpush1.msra.mxu0 0.0
    %1535 = vmatprep.mubr.f32.mxu0 0.0
    %1536 = vmatmul.mubr.f32.gmra.mrb[0].mxu0 %v1461
    %v1537 = vpop.f32.mrb[0].mxu0
    %v1538 = vadd.f32 0.0, %v1537
    %v1539 = vpop.f32.mrb[0].mxu0
    %1540 = vmatprep.mubr.f32.mxu0 0.0
    %1541 = vmatmul.mubr.f32.gmra.mrb[0].mxu0 %v1464
    %v1542 = vpop.f32.mrb[0].mxu0
    %v1543 = vadd.f32 0.0, %v1542
    %v1544 = vpop.f32.mrb[0].mxu0
    %1545 = vmatprep.mubr.f32.mxu0 0.0
    %1546 = vmatmul.mubr.f32.gmra.mrb[0].mxu0 %v1467
    %v1547 = vpop.f32.mrb[0].mxu0
    %v1548 = vadd.f32 0.0, %v1547
    %v1549 = vpop.f32.mrb[0].mxu0
    %1550 = vdwg.mxu0
    %1551 = vrot.lane.b32.xlu0 %v1299, 112
    %v1552 = vpop.permute.xlu0 %1551
    %1553 = vrot.lane.b32.xlu0 %v1304, 112
    %v1554 = vpop.permute.xlu0 %1553
    %1555 = vrot.lane.b32.xlu0 %v1309, 112
    %v1556 = vpop.permute.xlu0 %1555
    %1557 = vrot.lane.b32.xlu0 %v1299, 80
    %v1558 = vpop.permute.xlu0 %1557
    %1559 = vrot.lane.b32.xlu0 %v1304, 80
    %v1560 = vpop.permute.xlu0 %1559
    %1561 = vrot.lane.b32.xlu0 %v1309, 80
    %v1562 = vpop.permute.xlu0 %1561
    %v1563 = vsel %vm295, %v1552, 0
    %v1565 = vsel %vm295, %v1554, 0
    %v1567 = vsel %vm295, %v1556, 0
    %v1569 = vsel %vm295, %v1558, 0
    %v1571 = vsel %vm295, %v1560, 0
    %v1573 = vsel %vm295, %v1562, 0
    %1575 = vmatprep.subr.mxu0 0.0
    %1576 = vmatpush1.xpose.msra.mxu0 %v1569
    %1577 = vmatprep.subr.mxu0 0.0
    %1578 = vmatpush1.xpose.msra.mxu0 %v1571
    %1579 = vmatprep.subr.mxu0 0.0
    %1580 = vmatpush1.xpose.msra.mxu0 %v1573
    %1581 = vmatprep.subr.mxu0 0.0
    %1582 = vmatpush1.xpose.msra.mxu0 0.0
    %1583 = vmatprep.subr.mxu0 0.0
    %1584 = vmatpush1.xpose.msra.mxu0 0.0
    %1585 = vmatprep.subr.mxu0 0.0
    %1586 = vmatpush1.xpose.msra.mxu0 0.0
    %1587 = vmatprep.subr.mxu0 0.0
    %1588 = vmatpush1.xpose.msra.mxu0 0.0
    %1589 = vmatprep.subr.mxu0 0.0
    %1590 = vmatpush1.xpose.msra.mxu0 0.0
    %1591 = vmatprep.subr.mxu0 0.0
    %1592 = vmatpush1.xpose.msra.mxu0 0.0
    %1593 = vmatprep.subr.mxu0 0.0
    %1594 = vmatpush1.xpose.msra.mxu0 0.0
    %1595 = vmatprep.subr.mxu0 0.0
    %1596 = vmatpush1.xpose.msra.mxu0 0.0
    %1597 = vmatprep.subr.mxu0 0.0
    %1598 = vmatpush1.xpose.msra.mxu0 0.0
    %1599 = vmatprep.subr.mxu0 0.0
    %1600 = vmatpush1.xpose.msra.mxu0 0.0
    %1601 = vmatprep.subr.mxu0 0.0
    %1602 = vmatpush1.xpose.msra.mxu0 0.0
    %1603 = vmatprep.subr.mxu0 0.0
    %1604 = vmatpush1.xpose.msra.mxu0 0.0
    %1605 = vmatprep.subr.mxu0 0.0
    %1606 = vmatpush1.xpose.msra.mxu0 0.0
    %1607 = vmatprep.subr.mxu0 0.0
    %1608 = vmatpush1.xpose.msra.mxu0 0.0
    %1609 = vmatprep.subr.mxu0 0.0
    %1610 = vmatpush1.xpose.msra.mxu0 0.0
    %1611 = vmatprep.subr.mxu0 0.0
    %1612 = vmatpush1.xpose.msra.mxu0 0.0
    %1613 = vmatprep.subr.mxu0 0.0
    %1614 = vmatpush1.xpose.msra.mxu0 0.0
    %1615 = vmatprep.subr.mxu0 0.0
    %1616 = vmatpush1.xpose.msra.mxu0 0.0
    %1617 = vmatprep.subr.mxu0 0.0
    %1618 = vmatpush1.xpose.msra.mxu0 0.0
    %1619 = vmatprep.subr.mxu0 0.0
    %1620 = vmatpush1.xpose.msra.mxu0 0.0
    %1621 = vmatprep.subr.mxu0 0.0
    %1622 = vmatpush1.xpose.msra.mxu0 0.0
    %1623 = vmatprep.subr.mxu0 0.0
    %1624 = vmatpush1.xpose.msra.mxu0 0.0
    %1625 = vmatprep.subr.mxu0 0.0
    %1626 = vmatpush1.xpose.msra.mxu0 0.0
    %1627 = vmatprep.subr.mxu0 0.0
    %1628 = vmatpush1.xpose.msra.mxu0 0.0
    %1629 = vmatprep.subr.mxu0 0.0
    %1630 = vmatpush1.xpose.msra.mxu0 0.0
    %1631 = vmatprep.subr.mxu0 0.0
    %1632 = vmatpush1.xpose.msra.mxu0 0.0
    %1633 = vmatprep.subr.mxu0 0.0
    %1634 = vmatpush1.xpose.msra.mxu0 0.0
    %1635 = vmatprep.subr.mxu0 0.0
    %1636 = vmatpush1.xpose.msra.mxu0 0.0
    %1637 = vmatprep.subr.mxu0 0.0
    %1638 = vmatpush1.xpose.msra.mxu0 0.0
    %1639 = vmatprep.mubr.f32.mxu0 0.0
    %1640 = vmatmul.mubr.f32.gmra.mrb[0].mxu0 %v1563
    %v1641 = vpop.f32.mrb[0].mxu0
    %v1642 = vadd.f32 0.0, %v1641
    %v1643 = vpop.f32.mrb[0].mxu0
    %1644 = vmatprep.mubr.f32.mxu0 0.0
    %1645 = vmatmul.mubr.f32.gmra.mrb[0].mxu0 %v1565
    %v1646 = vpop.f32.mrb[0].mxu0
    %v1647 = vadd.f32 0.0, %v1646
    %v1648 = vpop.f32.mrb[0].mxu0
    %1649 = vmatprep.mubr.f32.mxu0 0.0
    %1650 = vmatmul.mubr.f32.gmra.mrb[0].mxu0 %v1567
    %v1651 = vpop.f32.mrb[0].mxu0
    %v1652 = vadd.f32 0.0, %v1651
    %v1653 = vpop.f32.mrb[0].mxu0
    %1654 = vdwg.mxu0
    %v1655 = vmul.f32 %v1642, 0.25
    %v1656 = vmul.f32 %v1647, 0.25
    %v1657 = vmul.f32 %v1652, 0.25
    %v1658 = vadd.f32 %v1655, %v184
    %v1659 = vadd.f32 %v1656, %v185
    %v1660 = vadd.f32 %v1657, %v186
    %v1661 = vsel %vm394, %v1658, -inf
    %1662 = vmax.xlane.f32.xlu0 %v1661
    %v1663 = vpop.xlane.xlu0 %1662
    %v1664 = vsel %vm394, %v1659, -inf
    %1665 = vmax.xlane.f32.xlu0 %v1664
    %v1666 = vpop.xlane.xlu0 %1665
    %v1667 = vsel %vm401, %v1660, -inf
    %1668 = vmax.xlane.f32.xlu0 %v1667
    %v1669 = vpop.xlane.xlu0 %1668
    %v1670 = vsub.f32 %v1658, %v1663
    %v1671 = vsub.f32 %v1659, %v1666
    %v1672 = vsub.f32 %v1660, %v1669
    %v1673 = vmul.f32 %v1670, 1.442695
    %v1674 = vpow.pop %v1673
    %v1675 = vmul.f32 %v1671, 1.442695
    %v1676 = vpow.pop %v1675
    %v1677 = vmul.f32 %v1672, 1.442695
    %v1678 = vpow.pop %v1677
    %v1679 = vsel %vm394, %v1674, 0.0
    %1680 = vadd.xlane.f32.xlu0 %v1679
    %v1681 = vpop.xlane.xlu0 %1680
    %v1682 = vsel %vm394, %v1676, 0.0
    %1683 = vadd.xlane.f32.xlu0 %v1682
    %v1684 = vpop.xlane.xlu0 %1683
    %v1685 = vsel %vm401, %v1678, 0.0
    %1686 = vadd.xlane.f32.xlu0 %v1685
    %v1687 = vpop.xlane.xlu0 %1686
    %v1688 = vrcp.pop %v1681
    %v1689 = vmul.f32 %v1674, %v1688
    %v1690 = vrcp.pop %v1684
    %v1691 = vmul.f32 %v1676, %v1690
    %v1692 = vrcp.pop %v1687
    %v1693 = vmul.f32 %v1678, %v1692
    %1694 = vrot.lane.b32.xlu0 %v1299, 48
    %v1695 = vpop.permute.xlu0 %1694
    %1696 = vrot.lane.b32.xlu0 %v1304, 48
    %v1697 = vpop.permute.xlu0 %1696
    %1698 = vrot.lane.b32.xlu0 %v1309, 48
    %v1699 = vpop.permute.xlu0 %1698
    %v1703 = vsel %vm394, %v1689, 0
    %v1706 = vsel %vm394, %v1691, 0
    %v1709 = vsel %vm394, %v1693, 0
    %v1711 = vsel %vm446, %v1699, 0
    %1713 = vmatprep.subr.mxu0 0.0
    %1714 = vmatpush1.msra.mxu0 %v1695
    %1715 = vmatprep.subr.mxu0 0.0
    %1716 = vmatpush1.msra.mxu0 %v1697
    %1717 = vmatprep.subr.mxu0 0.0
    %1718 = vmatpush1.msra.mxu0 %v1711
    %1719 = vmatprep.subr.mxu0 0.0
    %1720 = vmatpush1.msra.mxu0 0.0
    %1721 = vmatprep.subr.mxu0 0.0
    %1722 = vmatpush1.msra.mxu0 0.0
    %1723 = vmatprep.subr.mxu0 0.0
    %1724 = vmatpush1.msra.mxu0 0.0
    %1725 = vmatprep.subr.mxu0 0.0
    %1726 = vmatpush1.msra.mxu0 0.0
    %1727 = vmatprep.subr.mxu0 0.0
    %1728 = vmatpush1.msra.mxu0 0.0
    %1729 = vmatprep.subr.mxu0 0.0
    %1730 = vmatpush1.msra.mxu0 0.0
    %1731 = vmatprep.subr.mxu0 0.0
    %1732 = vmatpush1.msra.mxu0 0.0
    %1733 = vmatprep.subr.mxu0 0.0
    %1734 = vmatpush1.msra.mxu0 0.0
    %1735 = vmatprep.subr.mxu0 0.0
    %1736 = vmatpush1.msra.mxu0 0.0
    %1737 = vmatprep.subr.mxu0 0.0
    %1738 = vmatpush1.msra.mxu0 0.0
    %1739 = vmatprep.subr.mxu0 0.0
    %1740 = vmatpush1.msra.mxu0 0.0
    %1741 = vmatprep.subr.mxu0 0.0
    %1742 = vmatpush1.msra.mxu0 0.0
    %1743 = vmatprep.subr.mxu0 0.0
    %1744 = vmatpush1.msra.mxu0 0.0
    %1745 = vmatprep.subr.mxu0 0.0
    %1746 = vmatpush1.msra.mxu0 0.0
    %1747 = vmatprep.subr.mxu0 0.0
    %1748 = vmatpush1.msra.mxu0 0.0
    %1749 = vmatprep.subr.mxu0 0.0
    %1750 = vmatpush1.msra.mxu0 0.0
    %1751 = vmatprep.subr.mxu0 0.0
    %1752 = vmatpush1.msra.mxu0 0.0
    %1753 = vmatprep.subr.mxu0 0.0
    %1754 = vmatpush1.msra.mxu0 0.0
    %1755 = vmatprep.subr.mxu0 0.0
    %1756 = vmatpush1.msra.mxu0 0.0
    %1757 = vmatprep.subr.mxu0 0.0
    %1758 = vmatpush1.msra.mxu0 0.0
    %1759 = vmatprep.subr.mxu0 0.0
    %1760 = vmatpush1.msra.mxu0 0.0
    %1761 = vmatprep.subr.mxu0 0.0
    %1762 = vmatpush1.msra.mxu0 0.0
    %1763 = vmatprep.subr.mxu0 0.0
    %1764 = vmatpush1.msra.mxu0 0.0
    %1765 = vmatprep.subr.mxu0 0.0
    %1766 = vmatpush1.msra.mxu0 0.0
    %1767 = vmatprep.subr.mxu0 0.0
    %1768 = vmatpush1.msra.mxu0 0.0
    %1769 = vmatprep.subr.mxu0 0.0
    %1770 = vmatpush1.msra.mxu0 0.0
    %1771 = vmatprep.subr.mxu0 0.0
    %1772 = vmatpush1.msra.mxu0 0.0
    %1773 = vmatprep.subr.mxu0 0.0
    %1774 = vmatpush1.msra.mxu0 0.0
    %1775 = vmatprep.subr.mxu0 0.0
    %1776 = vmatpush1.msra.mxu0 0.0
    %1777 = vmatprep.mubr.f32.mxu0 0.0
    %1778 = vmatmul.mubr.f32.gmra.mrb[0].mxu0 %v1703
    %v1779 = vpop.f32.mrb[0].mxu0
    %v1780 = vadd.f32 0.0, %v1779
    %v1781 = vpop.f32.mrb[0].mxu0
    %1782 = vmatprep.mubr.f32.mxu0 0.0
    %1783 = vmatmul.mubr.f32.gmra.mrb[0].mxu0 %v1706
    %v1784 = vpop.f32.mrb[0].mxu0
    %v1785 = vadd.f32 0.0, %v1784
    %v1786 = vpop.f32.mrb[0].mxu0
    %1787 = vmatprep.mubr.f32.mxu0 0.0
    %1788 = vmatmul.mubr.f32.gmra.mrb[0].mxu0 %v1709
    %v1789 = vpop.f32.mrb[0].mxu0
    %v1790 = vadd.f32 0.0, %v1789
    %v1791 = vpop.f32.mrb[0].mxu0
    %1792 = vdwg.mxu0
    %1796 = vrot.lane.b32.xlu0 %v1780, 16
    %v1797 = vpop.permute.xlu0 %1796
    %1798 = vrot.lane.b32.xlu0 %v1785, 16
    %v1799 = vpop.permute.xlu0 %1798
    %1800 = vrot.lane.b32.xlu0 %v1790, 16
    %v1801 = vpop.permute.xlu0 %1800
    %v1805 = vsel %vm295, %v1538, %v1797
    %v1806 = vsel %vm295, %v1543, %v1799
    %v1807 = vsel %vm295, %v1548, %v1801
    %v1808 = vlaneseq
    %v1809 = vshrl.u32 %v1808, 7
    %v1810 = vsub.s32 1, %v1809
    %v1811 = vrot.slane %v1213, %v1810
    %1816 = vrot.lane.b32.xlu0 %v1215, 32
    %v1817 = vpop.permute.xlu0 %1816
    %1818 = vrot.lane.b32.xlu0 %v1216, 32
    %v1819 = vpop.permute.xlu0 %1818
    %1820 = vrot.lane.b32.xlu0 %v1217, 32
    %v1821 = vpop.permute.xlu0 %1820
    %1822 = vrot.lane.b32.xlu0 %v1218, 32
    %v1823 = vpop.permute.xlu0 %1822
    %v1829 = vsel %vm196, %v1805, 0
    %v1832 = vsel %vm196, %v1806, 0
    %v1835 = vsel %vm196, %v1807, 0
    %1837 = vmatprep.subr.mxu0 0.0
    %1838 = vmatpush1.msra.mxu0 %v1817
    %1839 = vmatprep.subr.mxu0 0.0
    %1840 = vmatpush1.msra.mxu0 %v1819
    %1841 = vmatprep.subr.mxu0 0.0
    %1842 = vmatpush1.msra.mxu0 %v1821
    %1843 = vmatprep.subr.mxu0 0.0
    %1844 = vmatpush1.msra.mxu0 %v1823
    %1845 = vmatprep.subr.mxu0 0.0
    %1846 = vmatpush1.msra.mxu0 0.0
    %1847 = vmatprep.subr.mxu0 0.0
    %1848 = vmatpush1.msra.mxu0 0.0
    %1849 = vmatprep.subr.mxu0 0.0
    %1850 = vmatpush1.msra.mxu0 0.0
    %1851 = vmatprep.subr.mxu0 0.0
    %1852 = vmatpush1.msra.mxu0 0.0
    %1853 = vmatprep.subr.mxu0 0.0
    %1854 = vmatpush1.msra.mxu0 0.0
    %1855 = vmatprep.subr.mxu0 0.0
    %1856 = vmatpush1.msra.mxu0 0.0
    %1857 = vmatprep.subr.mxu0 0.0
    %1858 = vmatpush1.msra.mxu0 0.0
    %1859 = vmatprep.subr.mxu0 0.0
    %1860 = vmatpush1.msra.mxu0 0.0
    %1861 = vmatprep.subr.mxu0 0.0
    %1862 = vmatpush1.msra.mxu0 0.0
    %1863 = vmatprep.subr.mxu0 0.0
    %1864 = vmatpush1.msra.mxu0 0.0
    %1865 = vmatprep.subr.mxu0 0.0
    %1866 = vmatpush1.msra.mxu0 0.0
    %1867 = vmatprep.subr.mxu0 0.0
    %1868 = vmatpush1.msra.mxu0 0.0
    %1869 = vmatprep.subr.mxu0 0.0
    %1870 = vmatpush1.msra.mxu0 0.0
    %1871 = vmatprep.subr.mxu0 0.0
    %1872 = vmatpush1.msra.mxu0 0.0
    %1873 = vmatprep.subr.mxu0 0.0
    %1874 = vmatpush1.msra.mxu0 0.0
    %1875 = vmatprep.subr.mxu0 0.0
    %1876 = vmatpush1.msra.mxu0 0.0
    %1877 = vmatprep.subr.mxu0 0.0
    %1878 = vmatpush1.msra.mxu0 0.0
    %1879 = vmatprep.subr.mxu0 0.0
    %1880 = vmatpush1.msra.mxu0 0.0
    %1881 = vmatprep.subr.mxu0 0.0
    %1882 = vmatpush1.msra.mxu0 0.0
    %1883 = vmatprep.subr.mxu0 0.0
    %1884 = vmatpush1.msra.mxu0 0.0
    %1885 = vmatprep.subr.mxu0 0.0
    %1886 = vmatpush1.msra.mxu0 0.0
    %1887 = vmatprep.subr.mxu0 0.0
    %1888 = vmatpush1.msra.mxu0 0.0
    %1889 = vmatprep.subr.mxu0 0.0
    %1890 = vmatpush1.msra.mxu0 0.0
    %1891 = vmatprep.subr.mxu0 0.0
    %1892 = vmatpush1.msra.mxu0 0.0
    %1893 = vmatprep.subr.mxu0 0.0
    %1894 = vmatpush1.msra.mxu0 0.0
    %1895 = vmatprep.subr.mxu0 0.0
    %1896 = vmatpush1.msra.mxu0 0.0
    %1897 = vmatprep.subr.mxu0 0.0
    %1898 = vmatpush1.msra.mxu0 0.0
    %1899 = vmatprep.subr.mxu0 0.0
    %1900 = vmatpush1.msra.mxu0 0.0
    %1901 = vmatprep.mubr.f32.mxu0 0.0
    %1902 = vmatmul.mubr.f32.gmra.mrb[0].mxu0 %v1829
    %v1903 = vpop.f32.mrb[0].mxu0
    %v1904 = vadd.f32 %v1811, %v1903
    %v1905 = vpop.f32.mrb[0].mxu0
    %1906 = vmatprep.mubr.f32.mxu0 0.0
    %1907 = vmatmul.mubr.f32.gmra.mrb[0].mxu0 %v1832
    %v1908 = vpop.f32.mrb[0].mxu0
    %v1909 = vadd.f32 %v1811, %v1908
    %v1910 = vpop.f32.mrb[0].mxu0
    %1911 = vmatprep.mubr.f32.mxu0 0.0
    %1912 = vmatmul.mubr.f32.gmra.mrb[0].mxu0 %v1835
    %v1913 = vpop.f32.mrb[0].mxu0
    %v1914 = vadd.f32 %v1811, %v1913
    %v1915 = vpop.f32.mrb[0].mxu0
    %1916 = vdwg.mxu0
    %v1917 = vadd.f32 %v1209, %v1904
    %v1918 = vadd.f32 %v1210, %v1909
    %v1919 = vadd.f32 %v1211, %v1914
    %v1920 = vsel %vm196, %v1917, 0.0
    %1921 = vadd.xlane.f32.xlu0 %v1920
    %v1922 = vpop.xlane.xlu0 %1921
    %v1923 = vsel %vm196, %v1918, 0.0
    %1924 = vadd.xlane.f32.xlu0 %v1923
    %v1925 = vpop.xlane.xlu0 %1924
    %v1926 = vsel %vm904, %v1919, 0.0
    %1927 = vadd.xlane.f32.xlu0 %v1926
    %v1928 = vpop.xlane.xlu0 %1927
    %v1929 = vmul.f32 %v1922, %v908
    %v1930 = vmul.f32 %v1925, %v908
    %v1931 = vmul.f32 %v1928, %v908
    %v1932 = vsub.f32 %v1917, %v1929
    %v1933 = vsub.f32 %v1918, %v1930
    %v1934 = vsub.f32 %v1919, %v1931
    %v1935 = vmul.f32 %v1932, %v1932
    %v1936 = vmul.f32 %v1933, %v1933
    %v1937 = vmul.f32 %v1934, %v1934
    %v1938 = vsel %vm196, %v1935, 0.0
    %1939 = vadd.xlane.f32.xlu0 %v1938
    %v1940 = vpop.xlane.xlu0 %1939
    %v1941 = vsel %vm196, %v1936, 0.0
    %1942 = vadd.xlane.f32.xlu0 %v1941
    %v1943 = vpop.xlane.xlu0 %1942
    %v1944 = vsel %vm904, %v1937, 0.0
    %1945 = vadd.xlane.f32.xlu0 %v1944
    %v1946 = vpop.xlane.xlu0 %1945
    %v1947 = vmul.f32 %v1940, %v908
    %v1948 = vmul.f32 %v1943, %v908
    %v1949 = vmul.f32 %v1946, %v908
    %v1950 = vadd.f32 %v1947, 1e-05
    %v1951 = vadd.f32 %v1948, 1e-05
    %v1952 = vadd.f32 %v1949, 1e-05
    %v1953 = vrsqrt.pop %v1950
    %v1954 = vrsqrt.pop %v1951
    %v1955 = vrsqrt.pop %v1952
    %v1956 = vmul.f32 %v1932, %v1953
    %v1957 = vmul.f32 %v1933, %v1954
    %v1958 = vmul.f32 %v1934, %v1955
    %v1959 = vlaneseq
    %v1960 = vshrl.u32 %v1959, 7
    %v1961 = vsub.s32 2, %v1960
    %v1962 = vrot.slane %v1213, %v1961
    %v1963 = vmul.f32 %v1956, %v1962
    %v1964 = vmul.f32 %v1957, %v1962
    %v1965 = vmul.f32 %v1958, %v1962
    %v1966 = vlaneseq
    %v1967 = vshrl.u32 %v1966, 7
    %v1968 = vsub.s32 3, %v1967
    %v1969 = vrot.slane %v1213, %v1968
    %v1970 = vadd.f32 %v1963, %v1969
    %v1971 = vadd.f32 %v1964, %v1969
    %v1972 = vadd.f32 %v1965, %v1969
    %v1973 = vld [vmem:[%s1214 + $0x20] sm:$0xff]
    %v1974 = vld [vmem:[%s1214 + $0x28] sm:$0xff]
    %v1975 = vld [vmem:[%s1214 + $0x30] sm:$0xff]
    %v1976 = vld [vmem:[%s1214 + $0x38] sm:$0xff]
    %v1977 = vld [vmem:[%s1214 + $0x40] sm:$0xff]
    %v1978 = vld [vmem:[%s1214 + $0x48] sm:$0xff]
    %v1979 = vld [vmem:[%s1214 + $0x50] sm:$0xff]
    %v1980 = vld [vmem:[%s1214 + $0x58] sm:$0xff]
    %v1981 = vld [vmem:[%s1214 + $0x60] sm:$0xff]
    %v1982 = vld [vmem:[%s1214 + $0x68] sm:$0xff]
    %v1983 = vld [vmem:[%s1214 + $0x70] sm:$0xff]
    %v1984 = vld [vmem:[%s1214 + $0x78] sm:$0xff]
    %v1985 = vld [vmem:[%s1214 + $0x80] sm:$0xff]
    %v1986 = vld [vmem:[%s1214 + $0x88] sm:$0xff]
    %v1987 = vld [vmem:[%s1214 + $0x90] sm:$0xff]
    %v1988 = vld [vmem:[%s1214 + $0x98] sm:$0xff]
    %v1989 = vld [vmem:[%s1214 + $0xa0] sm:$0xff]
    %v1990 = vld [vmem:[%s1214 + $0xa8] sm:$0xff]
    %v1991 = vld [vmem:[%s1214 + $0xb0] sm:$0xff]
    %v1992 = vld [vmem:[%s1214 + $0xb8] sm:$0xff]
    %v1993 = vlaneseq
    %v1994 = vshrl.u32 %v1993, 7
    %v1995 = vsub.s32 4, %v1994
    %v1996 = vrot.slane %v1213, %v1995
    %v1998 = vsel %vm196, %v1970, 0
    %v2001 = vsel %vm196, %v1971, 0
    %v2004 = vsel %vm196, %v1972, 0
    %2006 = vmatprep.subr.mxu0 0.0
    %2007 = vmatpush1.msra.mxu0 %v1973
    %2008 = vmatprep.subr.mxu0 0.0
    %2009 = vmatpush1.msra.mxu0 %v1974
    %2010 = vmatprep.subr.mxu0 0.0
    %2011 = vmatpush1.msra.mxu0 %v1975
    %2012 = vmatprep.subr.mxu0 0.0
    %2013 = vmatpush1.msra.mxu0 %v1976
    %2014 = vmatprep.subr.mxu0 0.0
    %2015 = vmatpush1.msra.mxu0 0.0
    %2016 = vmatprep.subr.mxu0 0.0
    %2017 = vmatpush1.msra.mxu0 0.0
    %2018 = vmatprep.subr.mxu0 0.0
    %2019 = vmatpush1.msra.mxu0 0.0
    %2020 = vmatprep.subr.mxu0 0.0
    %2021 = vmatpush1.msra.mxu0 0.0
    %2022 = vmatprep.subr.mxu0 0.0
    %2023 = vmatpush1.msra.mxu0 0.0
    %2024 = vmatprep.subr.mxu0 0.0
    %2025 = vmatpush1.msra.mxu0 0.0
    %2026 = vmatprep.subr.mxu0 0.0
    %2027 = vmatpush1.msra.mxu0 0.0
    %2028 = vmatprep.subr.mxu0 0.0
    %2029 = vmatpush1.msra.mxu0 0.0
    %2030 = vmatprep.subr.mxu0 0.0
    %2031 = vmatpush1.msra.mxu0 0.0
    %2032 = vmatprep.subr.mxu0 0.0
    %2033 = vmatpush1.msra.mxu0 0.0
    %2034 = vmatprep.subr.mxu0 0.0
    %2035 = vmatpush1.msra.mxu0 0.0
    %2036 = vmatprep.subr.mxu0 0.0
    %2037 = vmatpush1.msra.mxu0 0.0
    %2038 = vmatprep.subr.mxu0 0.0
    %2039 = vmatpush1.msra.mxu0 0.0
    %2040 = vmatprep.subr.mxu0 0.0
    %2041 = vmatpush1.msra.mxu0 0.0
    %2042 = vmatprep.subr.mxu0 0.0
    %2043 = vmatpush1.msra.mxu0 0.0
    %2044 = vmatprep.subr.mxu0 0.0
    %2045 = vmatpush1.msra.mxu0 0.0
    %2046 = vmatprep.subr.mxu0 0.0
    %2047 = vmatpush1.msra.mxu0 0.0
    %2048 = vmatprep.subr.mxu0 0.0
    %2049 = vmatpush1.msra.mxu0 0.0
    %2050 = vmatprep.subr.mxu0 0.0
    %2051 = vmatpush1.msra.mxu0 0.0
    %2052 = vmatprep.subr.mxu0 0.0
    %2053 = vmatpush1.msra.mxu0 0.0
    %2054 = vmatprep.subr.mxu0 0.0
    %2055 = vmatpush1.msra.mxu0 0.0
    %2056 = vmatprep.subr.mxu0 0.0
    %2057 = vmatpush1.msra.mxu0 0.0
    %2058 = vmatprep.subr.mxu0 0.0
    %2059 = vmatpush1.msra.mxu0 0.0
    %2060 = vmatprep.subr.mxu0 0.0
    %2061 = vmatpush1.msra.mxu0 0.0
    %2062 = vmatprep.subr.mxu0 0.0
    %2063 = vmatpush1.msra.mxu0 0.0
    %2064 = vmatprep.subr.mxu0 0.0
    %2065 = vmatpush1.msra.mxu0 0.0
    %2066 = vmatprep.subr.mxu0 0.0
    %2067 = vmatpush1.msra.mxu0 0.0
    %2068 = vmatprep.subr.mxu0 0.0
    %2069 = vmatpush1.msra.mxu0 0.0
    %2070 = vmatprep.mubr.f32.mxu0 0.0
    %2071 = vmatmul.mubr.f32.gmra.mrb[0].mxu0 %v1998
    %v2072 = vpop.f32.mrb[0].mxu0
    %v2073 = vadd.f32 %v1996, %v2072
    %v2074 = vpop.f32.mrb[0].mxu0
    %2075 = vmatprep.mubr.f32.mxu0 0.0
    %2076 = vmatmul.mubr.f32.gmra.mrb[0].mxu0 %v2001
    %v2077 = vpop.f32.mrb[0].mxu0
    %v2078 = vadd.f32 %v1996, %v2077
    %v2079 = vpop.f32.mrb[0].mxu0
    %2080 = vmatprep.mubr.f32.mxu0 0.0
    %2081 = vmatmul.mubr.f32.gmra.mrb[0].mxu0 %v2004
    %v2082 = vpop.f32.mrb[0].mxu0
    %v2083 = vadd.f32 %v1996, %v2082
    %v2084 = vpop.f32.mrb[0].mxu0
    %2085 = vdwg.mxu0
    %v2086 = vmax.f32 %v2073, 0.0
    %v2087 = vmax.f32 %v2078, 0.0
    %v2088 = vmax.f32 %v2083, 0.0
    %2089 = vmatprep.subr.mxu0 0.0
    %2090 = vmatpush1.msra.mxu0 %v1977
    %2091 = vmatprep.subr.mxu0 0.0
    %2092 = vmatpush1.msra.mxu0 %v1978
    %2093 = vmatprep.subr.mxu0 0.0
    %2094 = vmatpush1.msra.mxu0 %v1979
    %2095 = vmatprep.subr.mxu0 0.0
    %2096 = vmatpush1.msra.mxu0 %v1980
    %2097 = vmatprep.subr.mxu0 0.0
    %2098 = vmatpush1.msra.mxu0 %v1981
    %2099 = vmatprep.subr.mxu0 0.0
    %2100 = vmatpush1.msra.mxu0 %v1982
    %2101 = vmatprep.subr.mxu0 0.0
    %2102 = vmatpush1.msra.mxu0 %v1983
    %2103 = vmatprep.subr.mxu0 0.0
    %2104 = vmatpush1.msra.mxu0 %v1984
    %2105 = vmatprep.subr.mxu0 0.0
    %2106 = vmatpush1.msra.mxu0 %v1985
    %2107 = vmatprep.subr.mxu0 0.0
    %2108 = vmatpush1.msra.mxu0 %v1986
    %2109 = vmatprep.subr.mxu0 0.0
    %2110 = vmatpush1.msra.mxu0 %v1987
    %2111 = vmatprep.subr.mxu0 0.0
    %2112 = vmatpush1.msra.mxu0 %v1988
    %2113 = vmatprep.subr.mxu0 0.0
    %2114 = vmatpush1.msra.mxu0 %v1989
    %2115 = vmatprep.subr.mxu0 0.0
    %2116 = vmatpush1.msra.mxu0 %v1990
    %2117 = vmatprep.subr.mxu0 0.0
    %2118 = vmatpush1.msra.mxu0 %v1991
    %2119 = vmatprep.subr.mxu0 0.0
    %2120 = vmatpush1.msra.mxu0 %v1992
    %2121 = vmatprep.subr.mxu0 0.0
    %2122 = vmatpush1.msra.mxu0 0.0
    %2123 = vmatprep.subr.mxu0 0.0
    %2124 = vmatpush1.msra.mxu0 0.0
    %2125 = vmatprep.subr.mxu0 0.0
    %2126 = vmatpush1.msra.mxu0 0.0
    %2127 = vmatprep.subr.mxu0 0.0
    %2128 = vmatpush1.msra.mxu0 0.0
    %2129 = vmatprep.subr.mxu0 0.0
    %2130 = vmatpush1.msra.mxu0 0.0
    %2131 = vmatprep.subr.mxu0 0.0
    %2132 = vmatpush1.msra.mxu0 0.0
    %2133 = vmatprep.subr.mxu0 0.0
    %2134 = vmatpush1.msra.mxu0 0.0
    %2135 = vmatprep.subr.mxu0 0.0
    %2136 = vmatpush1.msra.mxu0 0.0
    %2137 = vmatprep.subr.mxu0 0.0
    %2138 = vmatpush1.msra.mxu0 0.0
    %2139 = vmatprep.subr.mxu0 0.0
    %2140 = vmatpush1.msra.mxu0 0.0
    %2141 = vmatprep.subr.mxu0 0.0
    %2142 = vmatpush1.msra.mxu0 0.0
    %2143 = vmatprep.subr.mxu0 0.0
    %2144 = vmatpush1.msra.mxu0 0.0
    %2145 = vmatprep.subr.mxu0 0.0
    %2146 = vmatpush1.msra.mxu0 0.0
    %2147 = vmatprep.subr.mxu0 0.0
    %2148 = vmatpush1.msra.mxu0 0.0
    %2149 = vmatprep.subr.mxu0 0.0
    %2150 = vmatpush1.msra.mxu0 0.0
    %2151 = vmatprep.subr.mxu0 0.0
    %2152 = vmatpush1.msra.mxu0 0.0
    %2153 = vmatprep.mubr.f32.mxu0 0.0
    %2154 = vmatmul.mubr.f32.gmra.mrb[0].mxu0 %v2086
    %v2155 = vpop.f32.mrb[0].mxu0
    %v2156 = vadd.f32 0.0, %v2155
    %v2157 = vpop.f32.mrb[0].mxu0
    %2158 = vmatprep.mubr.f32.mxu0 0.0
    %2159 = vmatmul.mubr.f32.gmra.mrb[0].mxu0 %v2087
    %v2160 = vpop.f32.mrb[0].mxu0
    %v2161 = vadd.f32 0.0, %v2160
    %v2162 = vpop.f32.mrb[0].mxu0
    %2163 = vmatprep.mubr.f32.mxu0 0.0
    %2164 = vmatmul.mubr.f32.gmra.mrb[0].mxu0 %v2088
    %v2165 = vpop.f32.mrb[0].mxu0
    %v2166 = vadd.f32 0.0, %v2165
    %v2167 = vpop.f32.mrb[0].mxu0
    %2168 = vdwg.mxu0
    %v2169 = vlaneseq
    %v2170 = vshrl.u32 %v2169, 7
    %v2171 = vsub.s32 5, %v2170
    %v2172 = vrot.slane %v1213, %v2171
    %v2173 = vadd.f32 %v2156, %v2172
    %v2174 = vadd.f32 %v2161, %v2172
    %v2175 = vadd.f32 %v2166, %v2172
    %v2176 = vadd.f32 %v1970, %v2173
    %v2177 = vadd.f32 %v1971, %v2174
    %v2178 = vadd.f32 %v1972, %v2175
    %v2179 = vsel %vm196, %v2176, 0.0
    %2180 = vadd.xlane.f32.xlu0 %v2179
    %v2181 = vpop.xlane.xlu0 %2180
    %v2182 = vsel %vm196, %v2177, 0.0
    %2183 = vadd.xlane.f32.xlu0 %v2182
    %v2184 = vpop.xlane.xlu0 %2183
    %v2185 = vsel %vm904, %v2178, 0.0
    %2186 = vadd.xlane.f32.xlu0 %v2185
    %v2187 = vpop.xlane.xlu0 %2186
    %v2188 = vmul.f32 %v2181, %v908
    %v2189 = vmul.f32 %v2184, %v908
    %v2190 = vmul.f32 %v2187, %v908
    %v2191 = vsub.f32 %v2176, %v2188
    %v2192 = vsub.f32 %v2177, %v2189
    %v2193 = vsub.f32 %v2178, %v2190
    %v2194 = vmul.f32 %v2191, %v2191
    %v2195 = vmul.f32 %v2192, %v2192
    %v2196 = vmul.f32 %v2193, %v2193
    %v2197 = vsel %vm196, %v2194, 0.0
    %2198 = vadd.xlane.f32.xlu0 %v2197
    %v2199 = vpop.xlane.xlu0 %2198
    %v2200 = vsel %vm196, %v2195, 0.0
    %2201 = vadd.xlane.f32.xlu0 %v2200
    %v2202 = vpop.xlane.xlu0 %2201
    %v2203 = vsel %vm904, %v2196, 0.0
    %2204 = vadd.xlane.f32.xlu0 %v2203
    %v2205 = vpop.xlane.xlu0 %2204
    %v2206 = vmul.f32 %v2199, %v908
    %v2207 = vmul.f32 %v2202, %v908
    %v2208 = vmul.f32 %v2205, %v908
    %v2209 = vadd.f32 %v2206, 1e-05
    %v2210 = vadd.f32 %v2207, 1e-05
    %v2211 = vadd.f32 %v2208, 1e-05
    %v2212 = vrsqrt.pop %v2209
    %v2213 = vrsqrt.pop %v2210
    %v2214 = vrsqrt.pop %v2211
    %v2215 = vmul.f32 %v2191, %v2212
    %v2216 = vmul.f32 %v2192, %v2213
    %v2217 = vmul.f32 %v2193, %v2214
    %v2218 = vlaneseq
    %v2219 = vshrl.u32 %v2218, 7
    %v2220 = vsub.s32 6, %v2219
    %v2221 = vrot.slane %v1213, %v2220
    %v2222 = vmul.f32 %v2215, %v2221
    %v2223 = vmul.f32 %v2216, %v2221
    %v2224 = vmul.f32 %v2217, %v2221
    %v2225 = vlaneseq
    %v2226 = vshrl.u32 %v2225, 7
    %v2227 = vsub.s32 7, %v2226
    %v2228 = vrot.slane %v1213, %v2227
    %v2229 = vadd.f32 %v2222, %v2228
    %v2230 = vadd.f32 %v2223, %v2228
    %v2231 = vadd.f32 %v2224, %v2228
    %s2232 = scalar_lea.vmem %s5, 16
    %v2233 = vld [vmem:[%s2232] sm:$0xff]
    %s2234 = scalar_lea.vmem [#allocation2], 384
    %v2235 = vld [vmem:[%s2234] sm:$0xff]
    %v2236 = vld [vmem:[%s2234 + $0x8] sm:$0xff]
    %v2237 = vld [vmem:[%s2234 + $0x10] sm:$0xff]
    %v2238 = vld [vmem:[%s2234 + $0x18] sm:$0xff]
    %v2239 = vlaneseq
    %v2240 = vshrl.u32 %v2239, 7
    %v2241 = vsub.s32 0, %v2240
    %v2242 = vrot.slane %v2233, %v2241
    %v2244 = vsel %vm196, %v2229, 0
    %v2247 = vsel %vm196, %v2230, 0
    %v2250 = vsel %vm196, %v2231, 0
    %2252 = vmatprep.subr.mxu0 0.0
    %2253 = vmatpush1.msra.mxu0 %v2235
    %2254 = vmatprep.subr.mxu0 0.0
    %2255 = vmatpush1.msra.mxu0 %v2236
    %2256 = vmatprep.subr.mxu0 0.0
    %2257 = vmatpush1.msra.mxu0 %v2237
    %2258 = vmatprep.subr.mxu0 0.0
    %2259 = vmatpush1.msra.mxu0 %v2238
    %2260 = vmatprep.subr.mxu0 0.0
    %2261 = vmatpush1.msra.mxu0 0.0
    %2262 = vmatprep.subr.mxu0 0.0
    %2263 = vmatpush1.msra.mxu0 0.0
    %2264 = vmatprep.subr.mxu0 0.0
    %2265 = vmatpush1.msra.mxu0 0.0
    %2266 = vmatprep.subr.mxu0 0.0
    %2267 = vmatpush1.msra.mxu0 0.0
    %2268 = vmatprep.subr.mxu0 0.0
    %2269 = vmatpush1.msra.mxu0 0.0
    %2270 = vmatprep.subr.mxu0 0.0
    %2271 = vmatpush1.msra.mxu0 0.0
    %2272 = vmatprep.subr.mxu0 0.0
    %2273 = vmatpush1.msra.mxu0 0.0
    %2274 = vmatprep.subr.mxu0 0.0
    %2275 = vmatpush1.msra.mxu0 0.0
    %2276 = vmatprep.subr.mxu0 0.0
    %2277 = vmatpush1.msra.mxu0 0.0
    %2278 = vmatprep.subr.mxu0 0.0
    %2279 = vmatpush1.msra.mxu0 0.0
    %2280 = vmatprep.subr.mxu0 0.0
    %2281 = vmatpush1.msra.mxu0 0.0
    %2282 = vmatprep.subr.mxu0 0.0
    %2283 = vmatpush1.msra.mxu0 0.0
    %2284 = vmatprep.subr.mxu0 0.0
    %2285 = vmatpush1.msra.mxu0 0.0
    %2286 = vmatprep.subr.mxu0 0.0
    %2287 = vmatpush1.msra.mxu0 0.0
    %2288 = vmatprep.subr.mxu0 0.0
    %2289 = vmatpush1.msra.mxu0 0.0
    %2290 = vmatprep.subr.mxu0 0.0
    %2291 = vmatpush1.msra.mxu0 0.0
    %2292 = vmatprep.subr.mxu0 0.0
    %2293 = vmatpush1.msra.mxu0 0.0
    %2294 = vmatprep.subr.mxu0 0.0
    %2295 = vmatpush1.msra.mxu0 0.0
    %2296 = vmatprep.subr.mxu0 0.0
    %2297 = vmatpush1.msra.mxu0 0.0
    %2298 = vmatprep.subr.mxu0 0.0
    %2299 = vmatpush1.msra.mxu0 0.0
    %2300 = vmatprep.subr.mxu0 0.0
    %2301 = vmatpush1.msra.mxu0 0.0
    %2302 = vmatprep.subr.mxu0 0.0
    %2303 = vmatpush1.msra.mxu0 0.0
    %2304 = vmatprep.subr.mxu0 0.0
    %2305 = vmatpush1.msra.mxu0 0.0
    %2306 = vmatprep.subr.mxu0 0.0
    %2307 = vmatpush1.msra.mxu0 0.0
    %2308 = vmatprep.subr.mxu0 0.0
    %2309 = vmatpush1.msra.mxu0 0.0
    %2310 = vmatprep.subr.mxu0 0.0
    %2311 = vmatpush1.msra.mxu0 0.0
    %2312 = vmatprep.subr.mxu0 0.0
    %2313 = vmatpush1.msra.mxu0 0.0
    %2314 = vmatprep.subr.mxu0 0.0
    %2315 = vmatpush1.msra.mxu0 0.0
    %2316 = vmatprep.mubr.f32.mxu0 0.0
    %2317 = vmatmul.mubr.f32.gmra.mrb[0].mxu0 %v2244
    %v2318 = vpop.f32.mrb[0].mxu0
    %v2319 = vadd.f32 %v2242, %v2318
    %v2320 = vpop.f32.mrb[0].mxu0
    %2321 = vmatprep.mubr.f32.mxu0 0.0
    %2322 = vmatmul.mubr.f32.gmra.mrb[0].mxu0 %v2247
    %v2323 = vpop.f32.mrb[0].mxu0
    %v2324 = vadd.f32 %v2242, %v2323
    %v2325 = vpop.f32.mrb[0].mxu0
    %2326 = vmatprep.mubr.f32.mxu0 0.0
    %2327 = vmatmul.mubr.f32.gmra.mrb[0].mxu0 %v2250
    %v2328 = vpop.f32.mrb[0].mxu0
    %v2329 = vadd.f32 %v2242, %v2328
    %v2330 = vpop.f32.mrb[0].mxu0
    %2331 = vdwg.mxu0
    %2335 = vrot.lane.b32.xlu0 %v2319, 96
    %v2336 = vpop.permute.xlu0 %2335
    %2337 = vrot.lane.b32.xlu0 %v2324, 96
    %v2338 = vpop.permute.xlu0 %2337
    %2339 = vrot.lane.b32.xlu0 %v2329, 96
    %v2340 = vpop.permute.xlu0 %2339
    %v2341 = vsel %vm295, %v2319, 0
    %v2343 = vsel %vm295, %v2324, 0
    %v2345 = vsel %vm295, %v2329, 0
    %v2347 = vsel %vm295, %v2336, 0
    %v2349 = vsel %vm295, %v2338, 0
    %v2351 = vsel %vm295, %v2340, 0
    %2353 = vmatprep.subr.mxu0 0.0
    %2354 = vmatpush1.xpose.msra.mxu0 %v2347
    %2355 = vmatprep.subr.mxu0 0.0
    %2356 = vmatpush1.xpose.msra.mxu0 %v2349
    %2357 = vmatprep.subr.mxu0 0.0
    %2358 = vmatpush1.xpose.msra.mxu0 %v2351
    %2359 = vmatprep.subr.mxu0 0.0
    %2360 = vmatpush1.xpose.msra.mxu0 0.0
    %2361 = vmatprep.subr.mxu0 0.0
    %2362 = vmatpush1.xpose.msra.mxu0 0.0
    %2363 = vmatprep.subr.mxu0 0.0
    %2364 = vmatpush1.xpose.msra.mxu0 0.0
    %2365 = vmatprep.subr.mxu0 0.0
    %2366 = vmatpush1.xpose.msra.mxu0 0.0
    %2367 = vmatprep.subr.mxu0 0.0
    %2368 = vmatpush1.xpose.msra.mxu0 0.0
    %2369 = vmatprep.subr.mxu0 0.0
    %2370 = vmatpush1.xpose.msra.mxu0 0.0
    %2371 = vmatprep.subr.mxu0 0.0
    %2372 = vmatpush1.xpose.msra.mxu0 0.0
    %2373 = vmatprep.subr.mxu0 0.0
    %2374 = vmatpush1.xpose.msra.mxu0 0.0
    %2375 = vmatprep.subr.mxu0 0.0
    %2376 = vmatpush1.xpose.msra.mxu0 0.0
    %2377 = vmatprep.subr.mxu0 0.0
    %2378 = vmatpush1.xpose.msra.mxu0 0.0
    %2379 = vmatprep.subr.mxu0 0.0
    %2380 = vmatpush1.xpose.msra.mxu0 0.0
    %2381 = vmatprep.subr.mxu0 0.0
    %2382 = vmatpush1.xpose.msra.mxu0 0.0
    %2383 = vmatprep.subr.mxu0 0.0
    %2384 = vmatpush1.xpose.msra.mxu0 0.0
    %2385 = vmatprep.subr.mxu0 0.0
    %2386 = vmatpush1.xpose.msra.mxu0 0.0
    %2387 = vmatprep.subr.mxu0 0.0
    %2388 = vmatpush1.xpose.msra.mxu0 0.0
    %2389 = vmatprep.subr.mxu0 0.0
    %2390 = vmatpush1.xpose.msra.mxu0 0.0
    %2391 = vmatprep.subr.mxu0 0.0
    %2392 = vmatpush1.xpose.msra.mxu0 0.0
    %2393 = vmatprep.subr.mxu0 0.0
    %2394 = vmatpush1.xpose.msra.mxu0 0.0
    %2395 = vmatprep.subr.mxu0 0.0
    %2396 = vmatpush1.xpose.msra.mxu0 0.0
    %2397 = vmatprep.subr.mxu0 0.0
    %2398 = vmatpush1.xpose.msra.mxu0 0.0
    %2399 = vmatprep.subr.mxu0 0.0
    %2400 = vmatpush1.xpose.msra.mxu0 0.0
    %2401 = vmatprep.subr.mxu0 0.0
    %2402 = vmatpush1.xpose.msra.mxu0 0.0
    %2403 = vmatprep.subr.mxu0 0.0
    %2404 = vmatpush1.xpose.msra.mxu0 0.0
    %2405 = vmatprep.subr.mxu0 0.0
    %2406 = vmatpush1.xpose.msra.mxu0 0.0
    %2407 = vmatprep.subr.mxu0 0.0
    %2408 = vmatpush1.xpose.msra.mxu0 0.0
    %2409 = vmatprep.subr.mxu0 0.0
    %2410 = vmatpush1.xpose.msra.mxu0 0.0
    %2411 = vmatprep.subr.mxu0 0.0
    %2412 = vmatpush1.xpose.msra.mxu0 0.0
    %2413 = vmatprep.subr.mxu0 0.0
    %2414 = vmatpush1.xpose.msra.mxu0 0.0
    %2415 = vmatprep.subr.mxu0 0.0
    %2416 = vmatpush1.xpose.msra.mxu0 0.0
    %2417 = vmatprep.mubr.f32.mxu0 0.0
    %2418 = vmatmul.mubr.f32.gmra.mrb[0].mxu0 %v2341
    %v2419 = vpop.f32.mrb[0].mxu0
    %v2420 = vadd.f32 0.0, %v2419
    %v2421 = vpop.f32.mrb[0].mxu0
    %2422 = vmatprep.mubr.f32.mxu0 0.0
    %2423 = vmatmul.mubr.f32.gmra.mrb[0].mxu0 %v2343
    %v2424 = vpop.f32.mrb[0].mxu0
    %v2425 = vadd.f32 0.0, %v2424
    %v2426 = vpop.f32.mrb[0].mxu0
    %2427 = vmatprep.mubr.f32.mxu0 0.0
    %2428 = vmatmul.mubr.f32.gmra.mrb[0].mxu0 %v2345
    %v2429 = vpop.f32.mrb[0].mxu0
    %v2430 = vadd.f32 0.0, %v2429
    %v2431 = vpop.f32.mrb[0].mxu0
    %2432 = vdwg.mxu0
    %v2433 = vmul.f32 %v2420, 0.25
    %v2434 = vmul.f32 %v2425, 0.25
    %v2435 = vmul.f32 %v2430, 0.25
    %v2436 = vadd.f32 %v2433, %v184
    %v2437 = vadd.f32 %v2434, %v185
    %v2438 = vadd.f32 %v2435, %v186
    %v2439 = vsel %vm394, %v2436, -inf
    %2440 = vmax.xlane.f32.xlu0 %v2439
    %v2441 = vpop.xlane.xlu0 %2440
    %v2442 = vsel %vm394, %v2437, -inf
    %2443 = vmax.xlane.f32.xlu0 %v2442
    %v2444 = vpop.xlane.xlu0 %2443
    %v2445 = vsel %vm401, %v2438, -inf
    %2446 = vmax.xlane.f32.xlu0 %v2445
    %v2447 = vpop.xlane.xlu0 %2446
    %v2448 = vsub.f32 %v2436, %v2441
    %v2449 = vsub.f32 %v2437, %v2444
    %v2450 = vsub.f32 %v2438, %v2447
    %v2451 = vmul.f32 %v2448, 1.442695
    %v2452 = vpow.pop %v2451
    %v2453 = vmul.f32 %v2449, 1.442695
    %v2454 = vpow.pop %v2453
    %v2455 = vmul.f32 %v2450, 1.442695
    %v2456 = vpow.pop %v2455
    %v2457 = vsel %vm394, %v2452, 0.0
    %2458 = vadd.xlane.f32.xlu0 %v2457
    %v2459 = vpop.xlane.xlu0 %2458
    %v2460 = vsel %vm394, %v2454, 0.0
    %2461 = vadd.xlane.f32.xlu0 %v2460
    %v2462 = vpop.xlane.xlu0 %2461
    %v2463 = vsel %vm401, %v2456, 0.0
    %2464 = vadd.xlane.f32.xlu0 %v2463
    %v2465 = vpop.xlane.xlu0 %2464
    %v2466 = vrcp.pop %v2459
    %v2467 = vmul.f32 %v2452, %v2466
    %v2468 = vrcp.pop %v2462
    %v2469 = vmul.f32 %v2454, %v2468
    %v2470 = vrcp.pop %v2465
    %v2471 = vmul.f32 %v2456, %v2470
    %2472 = vrot.lane.b32.xlu0 %v2319, 64
    %v2473 = vpop.permute.xlu0 %2472
    %2474 = vrot.lane.b32.xlu0 %v2324, 64
    %v2475 = vpop.permute.xlu0 %2474
    %2476 = vrot.lane.b32.xlu0 %v2329, 64
    %v2477 = vpop.permute.xlu0 %2476
    %v2481 = vsel %vm394, %v2467, 0
    %v2484 = vsel %vm394, %v2469, 0
    %v2487 = vsel %vm394, %v2471, 0
    %v2489 = vsel %vm446, %v2477, 0
    %2491 = vmatprep.subr.mxu0 0.0
    %2492 = vmatpush1.msra.mxu0 %v2473
    %2493 = vmatprep.subr.mxu0 0.0
    %2494 = vmatpush1.msra.mxu0 %v2475
    %2495 = vmatprep.subr.mxu0 0.0
    %2496 = vmatpush1.msra.mxu0 %v2489
    %2497 = vmatprep.subr.mxu0 0.0
    %2498 = vmatpush1.msra.mxu0 0.0
    %2499 = vmatprep.subr.mxu0 0.0
    %2500 = vmatpush1.msra.mxu0 0.0
    %2501 = vmatprep.subr.mxu0 0.0
    %2502 = vmatpush1.msra.mxu0 0.0
    %2503 = vmatprep.subr.mxu0 0.0
    %2504 = vmatpush1.msra.mxu0 0.0
    %2505 = vmatprep.subr.mxu0 0.0
    %2506 = vmatpush1.msra.mxu0 0.0
    %2507 = vmatprep.subr.mxu0 0.0
    %2508 = vmatpush1.msra.mxu0 0.0
    %2509 = vmatprep.subr.mxu0 0.0
    %2510 = vmatpush1.msra.mxu0 0.0
    %2511 = vmatprep.subr.mxu0 0.0
    %2512 = vmatpush1.msra.mxu0 0.0
    %2513 = vmatprep.subr.mxu0 0.0
    %2514 = vmatpush1.msra.mxu0 0.0
    %2515 = vmatprep.subr.mxu0 0.0
    %2516 = vmatpush1.msra.mxu0 0.0
    %2517 = vmatprep.subr.mxu0 0.0
    %2518 = vmatpush1.msra.mxu0 0.0
    %2519 = vmatprep.subr.mxu0 0.0
    %2520 = vmatpush1.msra.mxu0 0.0
    %2521 = vmatprep.subr.mxu0 0.0
    %2522 = vmatpush1.msra.mxu0 0.0
    %2523 = vmatprep.subr.mxu0 0.0
    %2524 = vmatpush1.msra.mxu0 0.0
    %2525 = vmatprep.subr.mxu0 0.0
    %2526 = vmatpush1.msra.mxu0 0.0
    %2527 = vmatprep.subr.mxu0 0.0
    %2528 = vmatpush1.msra.mxu0 0.0
    %2529 = vmatprep.subr.mxu0 0.0
    %2530 = vmatpush1.msra.mxu0 0.0
    %2531 = vmatprep.subr.mxu0 0.0
    %2532 = vmatpush1.msra.mxu0 0.0
    %2533 = vmatprep.subr.mxu0 0.0
    %2534 = vmatpush1.msra.mxu0 0.0
    %2535 = vmatprep.subr.mxu0 0.0
    %2536 = vmatpush1.msra.mxu0 0.0
    %2537 = vmatprep.subr.mxu0 0.0
    %2538 = vmatpush1.msra.mxu0 0.0
    %2539 = vmatprep.subr.mxu0 0.0
    %2540 = vmatpush1.msra.mxu0 0.0
    %2541 = vmatprep.subr.mxu0 0.0
    %2542 = vmatpush1.msra.mxu0 0.0
    %2543 = vmatprep.subr.mxu0 0.0
    %2544 = vmatpush1.msra.mxu0 0.0
    %2545 = vmatprep.subr.mxu0 0.0
    %2546 = vmatpush1.msra.mxu0 0.0
    %2547 = vmatprep.subr.mxu0 0.0
    %2548 = vmatpush1.msra.mxu0 0.0
    %2549 = vmatprep.subr.mxu0 0.0
    %2550 = vmatpush1.msra.mxu0 0.0
    %2551 = vmatprep.subr.mxu0 0.0
    %2552 = vmatpush1.msra.mxu0 0.0
    %2553 = vmatprep.subr.mxu0 0.0
    %2554 = vmatpush1.msra.mxu0 0.0
    %2555 = vmatprep.mubr.f32.mxu0 0.0
    %2556 = vmatmul.mubr.f32.gmra.mrb[0].mxu0 %v2481
    %v2557 = vpop.f32.mrb[0].mxu0
    %v2558 = vadd.f32 0.0, %v2557
    %v2559 = vpop.f32.mrb[0].mxu0
    %2560 = vmatprep.mubr.f32.mxu0 0.0
    %2561 = vmatmul.mubr.f32.gmra.mrb[0].mxu0 %v2484
    %v2562 = vpop.f32.mrb[0].mxu0
    %v2563 = vadd.f32 0.0, %v2562
    %v2564 = vpop.f32.mrb[0].mxu0
    %2565 = vmatprep.mubr.f32.mxu0 0.0
    %2566 = vmatmul.mubr.f32.gmra.mrb[0].mxu0 %v2487
    %v2567 = vpop.f32.mrb[0].mxu0
    %v2568 = vadd.f32 0.0, %v2567
    %v2569 = vpop.f32.mrb[0].mxu0
    %2570 = vdwg.mxu0
    %2571 = vrot.lane.b32.xlu0 %v2319, 112
    %v2572 = vpop.permute.xlu0 %2571
    %2573 = vrot.lane.b32.xlu0 %v2324, 112
    %v2574 = vpop.permute.xlu0 %2573
    %2575 = vrot.lane.b32.xlu0 %v2329, 112
    %v2576 = vpop.permute.xlu0 %2575
    %2577 = vrot.lane.b32.xlu0 %v2319, 80
    %v2578 = vpop.permute.xlu0 %2577
    %2579 = vrot.lane.b32.xlu0 %v2324, 80
    %v2580 = vpop.permute.xlu0 %2579
    %2581 = vrot.lane.b32.xlu0 %v2329, 80
    %v2582 = vpop.permute.xlu0 %2581
    %v2583 = vsel %vm295, %v2572, 0
    %v2585 = vsel %vm295, %v2574, 0
    %v2587 = vsel %vm295, %v2576, 0
    %v2589 = vsel %vm295, %v2578, 0
    %v2591 = vsel %vm295, %v2580, 0
    %v2593 = vsel %vm295, %v2582, 0
    %2595 = vmatprep.subr.mxu0 0.0
    %2596 = vmatpush1.xpose.msra.mxu0 %v2589
    %2597 = vmatprep.subr.mxu0 0.0
    %2598 = vmatpush1.xpose.msra.mxu0 %v2591
    %2599 = vmatprep.subr.mxu0 0.0
    %2600 = vmatpush1.xpose.msra.mxu0 %v2593
    %2601 = vmatprep.subr.mxu0 0.0
    %2602 = vmatpush1.xpose.msra.mxu0 0.0
    %2603 = vmatprep.subr.mxu0 0.0
    %2604 = vmatpush1.xpose.msra.mxu0 0.0
    %2605 = vmatprep.subr.mxu0 0.0
    %2606 = vmatpush1.xpose.msra.mxu0 0.0
    %2607 = vmatprep.subr.mxu0 0.0
    %2608 = vmatpush1.xpose.msra.mxu0 0.0
    %2609 = vmatprep.subr.mxu0 0.0
    %2610 = vmatpush1.xpose.msra.mxu0 0.0
    %2611 = vmatprep.subr.mxu0 0.0
    %2612 = vmatpush1.xpose.msra.mxu0 0.0
    %2613 = vmatprep.subr.mxu0 0.0
    %2614 = vmatpush1.xpose.msra.mxu0 0.0
    %2615 = vmatprep.subr.mxu0 0.0
    %2616 = vmatpush1.xpose.msra.mxu0 0.0
    %2617 = vmatprep.subr.mxu0 0.0
    %2618 = vmatpush1.xpose.msra.mxu0 0.0
    %2619 = vmatprep.subr.mxu0 0.0
    %2620 = vmatpush1.xpose.msra.mxu0 0.0
    %2621 = vmatprep.subr.mxu0 0.0
    %2622 = vmatpush1.xpose.msra.mxu0 0.0
    %2623 = vmatprep.subr.mxu0 0.0
    %2624 = vmatpush1.xpose.msra.mxu0 0.0
    %2625 = vmatprep.subr.mxu0 0.0
    %2626 = vmatpush1.xpose.msra.mxu0 0.0
    %2627 = vmatprep.subr.mxu0 0.0
    %2628 = vmatpush1.xpose.msra.mxu0 0.0
    %2629 = vmatprep.subr.mxu0 0.0
    %2630 = vmatpush1.xpose.msra.mxu0 0.0
    %2631 = vmatprep.subr.mxu0 0.0
    %2632 = vmatpush1.xpose.msra.mxu0 0.0
    %2633 = vmatprep.subr.mxu0 0.0
    %2634 = vmatpush1.xpose.msra.mxu0 0.0
    %2635 = vmatprep.subr.mxu0 0.0
    %2636 = vmatpush1.xpose.msra.mxu0 0.0
    %2637 = vmatprep.subr.mxu0 0.0
    %2638 = vmatpush1.xpose.msra.mxu0 0.0
    %2639 = vmatprep.subr.mxu0 0.0
    %2640 = vmatpush1.xpose.msra.mxu0 0.0
    %2641 = vmatprep.subr.mxu0 0.0
    %2642 = vmatpush1.xpose.msra.mxu0 0.0
    %2643 = vmatprep.subr.mxu0 0.0
    %2644 = vmatpush1.xpose.msra.mxu0 0.0
    %2645 = vmatprep.subr.mxu0 0.0
    %2646 = vmatpush1.xpose.msra.mxu0 0.0
    %2647 = vmatprep.subr.mxu0 0.0
    %2648 = vmatpush1.xpose.msra.mxu0 0.0
    %2649 = vmatprep.subr.mxu0 0.0
    %2650 = vmatpush1.xpose.msra.mxu0 0.0
    %2651 = vmatprep.subr.mxu0 0.0
    %2652 = vmatpush1.xpose.msra.mxu0 0.0
    %2653 = vmatprep.subr.mxu0 0.0
    %2654 = vmatpush1.xpose.msra.mxu0 0.0
    %2655 = vmatprep.subr.mxu0 0.0
    %2656 = vmatpush1.xpose.msra.mxu0 0.0
    %2657 = vmatprep.subr.mxu0 0.0
    %2658 = vmatpush1.xpose.msra.mxu0 0.0
    %2659 = vmatprep.mubr.f32.mxu0 0.0
    %2660 = vmatmul.mubr.f32.gmra.mrb[0].mxu0 %v2583
    %v2661 = vpop.f32.mrb[0].mxu0
    %v2662 = vadd.f32 0.0, %v2661
    %v2663 = vpop.f32.mrb[0].mxu0
    %2664 = vmatprep.mubr.f32.mxu0 0.0
    %2665 = vmatmul.mubr.f32.gmra.mrb[0].mxu0 %v2585
    %v2666 = vpop.f32.mrb[0].mxu0
    %v2667 = vadd.f32 0.0, %v2666
    %v2668 = vpop.f32.mrb[0].mxu0
    %2669 = vmatprep.mubr.f32.mxu0 0.0
    %2670 = vmatmul.mubr.f32.gmra.mrb[0].mxu0 %v2587
    %v2671 = vpop.f32.mrb[0].mxu0
    %v2672 = vadd.f32 0.0, %v2671
    %v2673 = vpop.f32.mrb[0].mxu0
    %2674 = vdwg.mxu0
    %v2675 = vmul.f32 %v2662, 0.25
    %v2676 = vmul.f32 %v2667, 0.25
    %v2677 = vmul.f32 %v2672, 0.25
    %v2678 = vadd.f32 %v2675, %v184
    %v2679 = vadd.f32 %v2676, %v185
    %v2680 = vadd.f32 %v2677, %v186
    %v2681 = vsel %vm394, %v2678, -inf
    %2682 = vmax.xlane.f32.xlu0 %v2681
    %v2683 = vpop.xlane.xlu0 %2682
    %v2684 = vsel %vm394, %v2679, -inf
    %2685 = vmax.xlane.f32.xlu0 %v2684
    %v2686 = vpop.xlane.xlu0 %2685
    %v2687 = vsel %vm401, %v2680, -inf
    %2688 = vmax.xlane.f32.xlu0 %v2687
    %v2689 = vpop.xlane.xlu0 %2688
    %v2690 = vsub.f32 %v2678, %v2683
    %v2691 = vsub.f32 %v2679, %v2686
    %v2692 = vsub.f32 %v2680, %v2689
    %v2693 = vmul.f32 %v2690, 1.442695
    %v2694 = vpow.pop %v2693
    %v2695 = vmul.f32 %v2691, 1.442695
    %v2696 = vpow.pop %v2695
    %v2697 = vmul.f32 %v2692, 1.442695
    %v2698 = vpow.pop %v2697
    %v2699 = vsel %vm394, %v2694, 0.0
    %2700 = vadd.xlane.f32.xlu0 %v2699
    %v2701 = vpop.xlane.xlu0 %2700
    %v2702 = vsel %vm394, %v2696, 0.0
    %2703 = vadd.xlane.f32.xlu0 %v2702
    %v2704 = vpop.xlane.xlu0 %2703
    %v2705 = vsel %vm401, %v2698, 0.0
    %2706 = vadd.xlane.f32.xlu0 %v2705
    %v2707 = vpop.xlane.xlu0 %2706
    %v2708 = vrcp.pop %v2701
    %v2709 = vmul.f32 %v2694, %v2708
    %v2710 = vrcp.pop %v2704
    %v2711 = vmul.f32 %v2696, %v2710
    %v2712 = vrcp.pop %v2707
    %v2713 = vmul.f32 %v2698, %v2712
    %2714 = vrot.lane.b32.xlu0 %v2319, 48
    %v2715 = vpop.permute.xlu0 %2714
    %2716 = vrot.lane.b32.xlu0 %v2324, 48
    %v2717 = vpop.permute.xlu0 %2716
    %2718 = vrot.lane.b32.xlu0 %v2329, 48
    %v2719 = vpop.permute.xlu0 %2718
    %v2723 = vsel %vm394, %v2709, 0
    %v2726 = vsel %vm394, %v2711, 0
    %v2729 = vsel %vm394, %v2713, 0
    %v2731 = vsel %vm446, %v2719, 0
    %2733 = vmatprep.subr.mxu0 0.0
    %2734 = vmatpush1.msra.mxu0 %v2715
    %2735 = vmatprep.subr.mxu0 0.0
    %2736 = vmatpush1.msra.mxu0 %v2717
    %2737 = vmatprep.subr.mxu0 0.0
    %2738 = vmatpush1.msra.mxu0 %v2731
    %2739 = vmatprep.subr.mxu0 0.0
    %2740 = vmatpush1.msra.mxu0 0.0
    %2741 = vmatprep.subr.mxu0 0.0
    %2742 = vmatpush1.msra.mxu0 0.0
    %2743 = vmatprep.subr.mxu0 0.0
    %2744 = vmatpush1.msra.mxu0 0.0
    %2745 = vmatprep.subr.mxu0 0.0
    %2746 = vmatpush1.msra.mxu0 0.0
    %2747 = vmatprep.subr.mxu0 0.0
    %2748 = vmatpush1.msra.mxu0 0.0
    %2749 = vmatprep.subr.mxu0 0.0
    %2750 = vmatpush1.msra.mxu0 0.0
    %2751 = vmatprep.subr.mxu0 0.0
    %2752 = vmatpush1.msra.mxu0 0.0
    %2753 = vmatprep.subr.mxu0 0.0
    %2754 = vmatpush1.msra.mxu0 0.0
    %2755 = vmatprep.subr.mxu0 0.0
    %2756 = vmatpush1.msra.mxu0 0.0
    %2757 = vmatprep.subr.mxu0 0.0
    %2758 = vmatpush1.msra.mxu0 0.0
    %2759 = vmatprep.subr.mxu0 0.0
    %2760 = vmatpush1.msra.mxu0 0.0
    %2761 = vmatprep.subr.mxu0 0.0
    %2762 = vmatpush1.msra.mxu0 0.0
    %2763 = vmatprep.subr.mxu0 0.0
    %2764 = vmatpush1.msra.mxu0 0.0
    %2765 = vmatprep.subr.mxu0 0.0
    %2766 = vmatpush1.msra.mxu0 0.0
    %2767 = vmatprep.subr.mxu0 0.0
    %2768 = vmatpush1.msra.mxu0 0.0
    %2769 = vmatprep.subr.mxu0 0.0
    %2770 = vmatpush1.msra.mxu0 0.0
    %2771 = vmatprep.subr.mxu0 0.0
    %2772 = vmatpush1.msra.mxu0 0.0
    %2773 = vmatprep.subr.mxu0 0.0
    %2774 = vmatpush1.msra.mxu0 0.0
    %2775 = vmatprep.subr.mxu0 0.0
    %2776 = vmatpush1.msra.mxu0 0.0
    %2777 = vmatprep.subr.mxu0 0.0
    %2778 = vmatpush1.msra.mxu0 0.0
    %2779 = vmatprep.subr.mxu0 0.0
    %2780 = vmatpush1.msra.mxu0 0.0
    %2781 = vmatprep.subr.mxu0 0.0
    %2782 = vmatpush1.msra.mxu0 0.0
    %2783 = vmatprep.subr.mxu0 0.0
    %2784 = vmatpush1.msra.mxu0 0.0
    %2785 = vmatprep.subr.mxu0 0.0
    %2786 = vmatpush1.msra.mxu0 0.0
    %2787 = vmatprep.subr.mxu0 0.0
    %2788 = vmatpush1.msra.mxu0 0.0
    %2789 = vmatprep.subr.mxu0 0.0
    %2790 = vmatpush1.msra.mxu0 0.0
    %2791 = vmatprep.subr.mxu0 0.0
    %2792 = vmatpush1.msra.mxu0 0.0
    %2793 = vmatprep.subr.mxu0 0.0
    %2794 = vmatpush1.msra.mxu0 0.0
    %2795 = vmatprep.subr.mxu0 0.0
    %2796 = vmatpush1.msra.mxu0 0.0
    %2797 = vmatprep.mubr.f32.mxu0 0.0
    %2798 = vmatmul.mubr.f32.gmra.mrb[0].mxu0 %v2723
    %v2799 = vpop.f32.mrb[0].mxu0
    %v2800 = vadd.f32 0.0, %v2799
    %v2801 = vpop.f32.mrb[0].mxu0
    %2802 = vmatprep.mubr.f32.mxu0 0.0
    %2803 = vmatmul.mubr.f32.gmra.mrb[0].mxu0 %v2726
    %v2804 = vpop.f32.mrb[0].mxu0
    %v2805 = vadd.f32 0.0, %v2804
    %v2806 = vpop.f32.mrb[0].mxu0
    %2807 = vmatprep.mubr.f32.mxu0 0.0
    %2808 = vmatmul.mubr.f32.gmra.mrb[0].mxu0 %v2729
    %v2809 = vpop.f32.mrb[0].mxu0
    %v2810 = vadd.f32 0.0, %v2809
    %v2811 = vpop.f32.mrb[0].mxu0
    %2812 = vdwg.mxu0
    %2816 = vrot.lane.b32.xlu0 %v2800, 16
    %v2817 = vpop.permute.xlu0 %2816
    %2818 = vrot.lane.b32.xlu0 %v2805, 16
    %v2819 = vpop.permute.xlu0 %2818
    %2820 = vrot.lane.b32.xlu0 %v2810, 16
    %v2821 = vpop.permute.xlu0 %2820
    %v2825 = vsel %vm295, %v2558, %v2817
    %v2826 = vsel %vm295, %v2563, %v2819
    %v2827 = vsel %vm295, %v2568, %v2821
    %v2828 = vlaneseq
    %v2829 = vshrl.u32 %v2828, 7
    %v2830 = vsub.s32 1, %v2829
    %v2831 = vrot.slane %v2233, %v2830
    %2836 = vrot.lane.b32.xlu0 %v2235, 32
    %v2837 = vpop.permute.xlu0 %2836
    %2838 = vrot.lane.b32.xlu0 %v2236, 32
    %v2839 = vpop.permute.xlu0 %2838
    %2840 = vrot.lane.b32.xlu0 %v2237, 32
    %v2841 = vpop.permute.xlu0 %2840
    %2842 = vrot.lane.b32.xlu0 %v2238, 32
    %v2843 = vpop.permute.xlu0 %2842
    %v2849 = vsel %vm196, %v2825, 0
    %v2852 = vsel %vm196, %v2826, 0
    %v2855 = vsel %vm196, %v2827, 0
    %2857 = vmatprep.subr.mxu0 0.0
    %2858 = vmatpush1.msra.mxu0 %v2837
    %2859 = vmatprep.subr.mxu0 0.0
    %2860 = vmatpush1.msra.mxu0 %v2839
    %2861 = vmatprep.subr.mxu0 0.0
    %2862 = vmatpush1.msra.mxu0 %v2841
    %2863 = vmatprep.subr.mxu0 0.0
    %2864 = vmatpush1.msra.mxu0 %v2843
    %2865 = vmatprep.subr.mxu0 0.0
    %2866 = vmatpush1.msra.mxu0 0.0
    %2867 = vmatprep.subr.mxu0 0.0
    %2868 = vmatpush1.msra.mxu0 0.0
    %2869 = vmatprep.subr.mxu0 0.0
    %2870 = vmatpush1.msra.mxu0 0.0
    %2871 = vmatprep.subr.mxu0 0.0
    %2872 = vmatpush1.msra.mxu0 0.0
    %2873 = vmatprep.subr.mxu0 0.0
    %2874 = vmatpush1.msra.mxu0 0.0
    %2875 = vmatprep.subr.mxu0 0.0
    %2876 = vmatpush1.msra.mxu0 0.0
    %2877 = vmatprep.subr.mxu0 0.0
    %2878 = vmatpush1.msra.mxu0 0.0
    %2879 = vmatprep.subr.mxu0 0.0
    %2880 = vmatpush1.msra.mxu0 0.0
    %2881 = vmatprep.subr.mxu0 0.0
    %2882 = vmatpush1.msra.mxu0 0.0
    %2883 = vmatprep.subr.mxu0 0.0
    %2884 = vmatpush1.msra.mxu0 0.0
    %2885 = vmatprep.subr.mxu0 0.0
    %2886 = vmatpush1.msra.mxu0 0.0
    %2887 = vmatprep.subr.mxu0 0.0
    %2888 = vmatpush1.msra.mxu0 0.0
    %2889 = vmatprep.subr.mxu0 0.0
    %2890 = vmatpush1.msra.mxu0 0.0
    %2891 = vmatprep.subr.mxu0 0.0
    %2892 = vmatpush1.msra.mxu0 0.0
    %2893 = vmatprep.subr.mxu0 0.0
    %2894 = vmatpush1.msra.mxu0 0.0
    %2895 = vmatprep.subr.mxu0 0.0
    %2896 = vmatpush1.msra.mxu0 0.0
    %2897 = vmatprep.subr.mxu0 0.0
    %2898 = vmatpush1.msra.mxu0 0.0
    %2899 = vmatprep.subr.mxu0 0.0
    %2900 = vmatpush1.msra.mxu0 0.0
    %2901 = vmatprep.subr.mxu0 0.0
    %2902 = vmatpush1.msra.mxu0 0.0
    %2903 = vmatprep.subr.mxu0 0.0
    %2904 = vmatpush1.msra.mxu0 0.0
    %2905 = vmatprep.subr.mxu0 0.0
    %2906 = vmatpush1.msra.mxu0 0.0
    %2907 = vmatprep.subr.mxu0 0.0
    %2908 = vmatpush1.msra.mxu0 0.0
    %2909 = vmatprep.subr.mxu0 0.0
    %2910 = vmatpush1.msra.mxu0 0.0
    %2911 = vmatprep.subr.mxu0 0.0
    %2912 = vmatpush1.msra.mxu0 0.0
    %2913 = vmatprep.subr.mxu0 0.0
    %2914 = vmatpush1.msra.mxu0 0.0
    %2915 = vmatprep.subr.mxu0 0.0
    %2916 = vmatpush1.msra.mxu0 0.0
    %2917 = vmatprep.subr.mxu0 0.0
    %2918 = vmatpush1.msra.mxu0 0.0
    %2919 = vmatprep.subr.mxu0 0.0
    %2920 = vmatpush1.msra.mxu0 0.0
    %2921 = vmatprep.mubr.f32.mxu0 0.0
    %2922 = vmatmul.mubr.f32.gmra.mrb[0].mxu0 %v2849
    %v2923 = vpop.f32.mrb[0].mxu0
    %v2924 = vadd.f32 %v2831, %v2923
    %v2925 = vpop.f32.mrb[0].mxu0
    %2926 = vmatprep.mubr.f32.mxu0 0.0
    %2927 = vmatmul.mubr.f32.gmra.mrb[0].mxu0 %v2852
    %v2928 = vpop.f32.mrb[0].mxu0
    %v2929 = vadd.f32 %v2831, %v2928
    %v2930 = vpop.f32.mrb[0].mxu0
    %2931 = vmatprep.mubr.f32.mxu0 0.0
    %2932 = vmatmul.mubr.f32.gmra.mrb[0].mxu0 %v2855
    %v2933 = vpop.f32.mrb[0].mxu0
    %v2934 = vadd.f32 %v2831, %v2933
    %v2935 = vpop.f32.mrb[0].mxu0
    %2936 = vdwg.mxu0
    %v2937 = vadd.f32 %v2229, %v2924
    %v2938 = vadd.f32 %v2230, %v2929
    %v2939 = vadd.f32 %v2231, %v2934
    %v2940 = vsel %vm196, %v2937, 0.0
    %2941 = vadd.xlane.f32.xlu0 %v2940
    %v2942 = vpop.xlane.xlu0 %2941
    %v2943 = vsel %vm196, %v2938, 0.0
    %2944 = vadd.xlane.f32.xlu0 %v2943
    %v2945 = vpop.xlane.xlu0 %2944
    %v2946 = vsel %vm904, %v2939, 0.0
    %2947 = vadd.xlane.f32.xlu0 %v2946
    %v2948 = vpop.xlane.xlu0 %2947
    %v2949 = vmul.f32 %v2942, %v908
    %v2950 = vmul.f32 %v2945, %v908
    %v2951 = vmul.f32 %v2948, %v908
    %v2952 = vsub.f32 %v2937, %v2949
    %v2953 = vsub.f32 %v2938, %v2950
    %v2954 = vsub.f32 %v2939, %v2951
    %v2955 = vmul.f32 %v2952, %v2952
    %v2956 = vmul.f32 %v2953, %v2953
    %v2957 = vmul.f32 %v2954, %v2954
    %v2958 = vsel %vm196, %v2955, 0.0
    %2959 = vadd.xlane.f32.xlu0 %v2958
    %v2960 = vpop.xlane.xlu0 %2959
    %v2961 = vsel %vm196, %v2956, 0.0
    %2962 = vadd.xlane.f32.xlu0 %v2961
    %v2963 = vpop.xlane.xlu0 %2962
    %v2964 = vsel %vm904, %v2957, 0.0
    %2965 = vadd.xlane.f32.xlu0 %v2964
    %v2966 = vpop.xlane.xlu0 %2965
    %v2967 = vmul.f32 %v2960, %v908
    %v2968 = vmul.f32 %v2963, %v908
    %v2969 = vmul.f32 %v2966, %v908
    %v2970 = vadd.f32 %v2967, 1e-05
    %v2971 = vadd.f32 %v2968, 1e-05
    %v2972 = vadd.f32 %v2969, 1e-05
    %v2973 = vrsqrt.pop %v2970
    %v2974 = vrsqrt.pop %v2971
    %v2975 = vrsqrt.pop %v2972
    %v2976 = vmul.f32 %v2952, %v2973
    %v2977 = vmul.f32 %v2953, %v2974
    %v2978 = vmul.f32 %v2954, %v2975
    %v2979 = vlaneseq
    %v2980 = vshrl.u32 %v2979, 7
    %v2981 = vsub.s32 2, %v2980
    %v2982 = vrot.slane %v2233, %v2981
    %v2983 = vmul.f32 %v2976, %v2982
    %v2984 = vmul.f32 %v2977, %v2982
    %v2985 = vmul.f32 %v2978, %v2982
    %v2986 = vlaneseq
    %v2987 = vshrl.u32 %v2986, 7
    %v2988 = vsub.s32 3, %v2987
    %v2989 = vrot.slane %v2233, %v2988
    %v2990 = vadd.f32 %v2983, %v2989
    %v2991 = vadd.f32 %v2984, %v2989
    %v2992 = vadd.f32 %v2985, %v2989
    %v2993 = vld [vmem:[%s2234 + $0x20] sm:$0xff]
    %v2994 = vld [vmem:[%s2234 + $0x28] sm:$0xff]
    %v2995 = vld [vmem:[%s2234 + $0x30] sm:$0xff]
    %v2996 = vld [vmem:[%s2234 + $0x38] sm:$0xff]
    %v2997 = vld [vmem:[%s2234 + $0x40] sm:$0xff]
    %v2998 = vld [vmem:[%s2234 + $0x48] sm:$0xff]
    %v2999 = vld [vmem:[%s2234 + $0x50] sm:$0xff]
    %v3000 = vld [vmem:[%s2234 + $0x58] sm:$0xff]
    %v3001 = vld [vmem:[%s2234 + $0x60] sm:$0xff]
    %v3002 = vld [vmem:[%s2234 + $0x68] sm:$0xff]
    %v3003 = vld [vmem:[%s2234 + $0x70] sm:$0xff]
    %v3004 = vld [vmem:[%s2234 + $0x78] sm:$0xff]
    %v3005 = vld [vmem:[%s2234 + $0x80] sm:$0xff]
    %v3006 = vld [vmem:[%s2234 + $0x88] sm:$0xff]
    %v3007 = vld [vmem:[%s2234 + $0x90] sm:$0xff]
    %v3008 = vld [vmem:[%s2234 + $0x98] sm:$0xff]
    %v3009 = vld [vmem:[%s2234 + $0xa0] sm:$0xff]
    %v3010 = vld [vmem:[%s2234 + $0xa8] sm:$0xff]
    %v3011 = vld [vmem:[%s2234 + $0xb0] sm:$0xff]
    %v3012 = vld [vmem:[%s2234 + $0xb8] sm:$0xff]
    %v3013 = vlaneseq
    %v3014 = vshrl.u32 %v3013, 7
    %v3015 = vsub.s32 4, %v3014
    %v3016 = vrot.slane %v2233, %v3015
    %v3018 = vsel %vm196, %v2990, 0
    %v3021 = vsel %vm196, %v2991, 0
    %v3024 = vsel %vm196, %v2992, 0
    %3026 = vmatprep.subr.mxu0 0.0
    %3027 = vmatpush1.msra.mxu0 %v2993
    %3028 = vmatprep.subr.mxu0 0.0
    %3029 = vmatpush1.msra.mxu0 %v2994
    %3030 = vmatprep.subr.mxu0 0.0
    %3031 = vmatpush1.msra.mxu0 %v2995
    %3032 = vmatprep.subr.mxu0 0.0
    %3033 = vmatpush1.msra.mxu0 %v2996
    %3034 = vmatprep.subr.mxu0 0.0
    %3035 = vmatpush1.msra.mxu0 0.0
    %3036 = vmatprep.subr.mxu0 0.0
    %3037 = vmatpush1.msra.mxu0 0.0
    %3038 = vmatprep.subr.mxu0 0.0
    %3039 = vmatpush1.msra.mxu0 0.0
    %3040 = vmatprep.subr.mxu0 0.0
    %3041 = vmatpush1.msra.mxu0 0.0
    %3042 = vmatprep.subr.mxu0 0.0
    %3043 = vmatpush1.msra.mxu0 0.0
    %3044 = vmatprep.subr.mxu0 0.0
    %3045 = vmatpush1.msra.mxu0 0.0
    %3046 = vmatprep.subr.mxu0 0.0
    %3047 = vmatpush1.msra.mxu0 0.0
    %3048 = vmatprep.subr.mxu0 0.0
    %3049 = vmatpush1.msra.mxu0 0.0
    %3050 = vmatprep.subr.mxu0 0.0
    %3051 = vmatpush1.msra.mxu0 0.0
    %3052 = vmatprep.subr.mxu0 0.0
    %3053 = vmatpush1.msra.mxu0 0.0
    %3054 = vmatprep.subr.mxu0 0.0
    %3055 = vmatpush1.msra.mxu0 0.0
    %3056 = vmatprep.subr.mxu0 0.0
    %3057 = vmatpush1.msra.mxu0 0.0
    %3058 = vmatprep.subr.mxu0 0.0
    %3059 = vmatpush1.msra.mxu0 0.0
    %3060 = vmatprep.subr.mxu0 0.0
    %3061 = vmatpush1.msra.mxu0 0.0
    %3062 = vmatprep.subr.mxu0 0.0
    %3063 = vmatpush1.msra.mxu0 0.0
    %3064 = vmatprep.subr.mxu0 0.0
    %3065 = vmatpush1.msra.mxu0 0.0
    %3066 = vmatprep.subr.mxu0 0.0
    %3067 = vmatpush1.msra.mxu0 0.0
    %3068 = vmatprep.subr.mxu0 0.0
    %3069 = vmatpush1.msra.mxu0 0.0
    %3070 = vmatprep.subr.mxu0 0.0
    %3071 = vmatpush1.msra.mxu0 0.0
    %3072 = vmatprep.subr.mxu0 0.0
    %3073 = vmatpush1.msra.mxu0 0.0
    %3074 = vmatprep.subr.mxu0 0.0
    %3075 = vmatpush1.msra.mxu0 0.0
    %3076 = vmatprep.subr.mxu0 0.0
    %3077 = vmatpush1.msra.mxu0 0.0
    %3078 = vmatprep.subr.mxu0 0.0
    %3079 = vmatpush1.msra.mxu0 0.0
    %3080 = vmatprep.subr.mxu0 0.0
    %3081 = vmatpush1.msra.mxu0 0.0
    %3082 = vmatprep.subr.mxu0 0.0
    %3083 = vmatpush1.msra.mxu0 0.0
    %3084 = vmatprep.subr.mxu0 0.0
    %3085 = vmatpush1.msra.mxu0 0.0
    %3086 = vmatprep.subr.mxu0 0.0
    %3087 = vmatpush1.msra.mxu0 0.0
    %3088 = vmatprep.subr.mxu0 0.0
    %3089 = vmatpush1.msra.mxu0 0.0
    %3090 = vmatprep.mubr.f32.mxu0 0.0
    %3091 = vmatmul.mubr.f32.gmra.mrb[0].mxu0 %v3018
    %v3092 = vpop.f32.mrb[0].mxu0
    %v3093 = vadd.f32 %v3016, %v3092
    %v3094 = vpop.f32.mrb[0].mxu0
    %3095 = vmatprep.mubr.f32.mxu0 0.0
    %3096 = vmatmul.mubr.f32.gmra.mrb[0].mxu0 %v3021
    %v3097 = vpop.f32.mrb[0].mxu0
    %v3098 = vadd.f32 %v3016, %v3097
    %v3099 = vpop.f32.mrb[0].mxu0
    %3100 = vmatprep.mubr.f32.mxu0 0.0
    %3101 = vmatmul.mubr.f32.gmra.mrb[0].mxu0 %v3024
    %v3102 = vpop.f32.mrb[0].mxu0
    %v3103 = vadd.f32 %v3016, %v3102
    %v3104 = vpop.f32.mrb[0].mxu0
    %3105 = vdwg.mxu0
    %v3106 = vmax.f32 %v3093, 0.0
    %v3107 = vmax.f32 %v3098, 0.0
    %v3108 = vmax.f32 %v3103, 0.0
    %3109 = vmatprep.subr.mxu0 0.0
    %3110 = vmatpush1.msra.mxu0 %v2997
    %3111 = vmatprep.subr.mxu0 0.0
    %3112 = vmatpush1.msra.mxu0 %v2998
    %3113 = vmatprep.subr.mxu0 0.0
    %3114 = vmatpush1.msra.mxu0 %v2999
    %3115 = vmatprep.subr.mxu0 0.0
    %3116 = vmatpush1.msra.mxu0 %v3000
    %3117 = vmatprep.subr.mxu0 0.0
    %3118 = vmatpush1.msra.mxu0 %v3001
    %3119 = vmatprep.subr.mxu0 0.0
    %3120 = vmatpush1.msra.mxu0 %v3002
    %3121 = vmatprep.subr.mxu0 0.0
    %3122 = vmatpush1.msra.mxu0 %v3003
    %3123 = vmatprep.subr.mxu0 0.0
    %3124 = vmatpush1.msra.mxu0 %v3004
    %3125 = vmatprep.subr.mxu0 0.0
    %3126 = vmatpush1.msra.mxu0 %v3005
    %3127 = vmatprep.subr.mxu0 0.0
    %3128 = vmatpush1.msra.mxu0 %v3006
    %3129 = vmatprep.subr.mxu0 0.0
    %3130 = vmatpush1.msra.mxu0 %v3007
    %3131 = vmatprep.subr.mxu0 0.0
    %3132 = vmatpush1.msra.mxu0 %v3008
    %3133 = vmatprep.subr.mxu0 0.0
    %3134 = vmatpush1.msra.mxu0 %v3009
    %3135 = vmatprep.subr.mxu0 0.0
    %3136 = vmatpush1.msra.mxu0 %v3010
    %3137 = vmatprep.subr.mxu0 0.0
    %3138 = vmatpush1.msra.mxu0 %v3011
    %3139 = vmatprep.subr.mxu0 0.0
    %3140 = vmatpush1.msra.mxu0 %v3012
    %3141 = vmatprep.subr.mxu0 0.0
    %3142 = vmatpush1.msra.mxu0 0.0
    %3143 = vmatprep.subr.mxu0 0.0
    %3144 = vmatpush1.msra.mxu0 0.0
    %3145 = vmatprep.subr.mxu0 0.0
    %3146 = vmatpush1.msra.mxu0 0.0
    %3147 = vmatprep.subr.mxu0 0.0
    %3148 = vmatpush1.msra.mxu0 0.0
    %3149 = vmatprep.subr.mxu0 0.0
    %3150 = vmatpush1.msra.mxu0 0.0
    %3151 = vmatprep.subr.mxu0 0.0
    %3152 = vmatpush1.msra.mxu0 0.0
    %3153 = vmatprep.subr.mxu0 0.0
    %3154 = vmatpush1.msra.mxu0 0.0
    %3155 = vmatprep.subr.mxu0 0.0
    %3156 = vmatpush1.msra.mxu0 0.0
    %3157 = vmatprep.subr.mxu0 0.0
    %3158 = vmatpush1.msra.mxu0 0.0
    %3159 = vmatprep.subr.mxu0 0.0
    %3160 = vmatpush1.msra.mxu0 0.0
    %3161 = vmatprep.subr.mxu0 0.0
    %3162 = vmatpush1.msra.mxu0 0.0
    %3163 = vmatprep.subr.mxu0 0.0
    %3164 = vmatpush1.msra.mxu0 0.0
    %3165 = vmatprep.subr.mxu0 0.0
    %3166 = vmatpush1.msra.mxu0 0.0
    %3167 = vmatprep.subr.mxu0 0.0
    %3168 = vmatpush1.msra.mxu0 0.0
    %3169 = vmatprep.subr.mxu0 0.0
    %3170 = vmatpush1.msra.mxu0 0.0
    %3171 = vmatprep.subr.mxu0 0.0
    %3172 = vmatpush1.msra.mxu0 0.0
    %3173 = vmatprep.mubr.f32.mxu0 0.0
    %3174 = vmatmul.mubr.f32.gmra.mrb[0].mxu0 %v3106
    %v3175 = vpop.f32.mrb[0].mxu0
    %v3176 = vadd.f32 0.0, %v3175
    %v3177 = vpop.f32.mrb[0].mxu0
    %3178 = vmatprep.mubr.f32.mxu0 0.0
    %3179 = vmatmul.mubr.f32.gmra.mrb[0].mxu0 %v3107
    %v3180 = vpop.f32.mrb[0].mxu0
    %v3181 = vadd.f32 0.0, %v3180
    %v3182 = vpop.f32.mrb[0].mxu0
    %3183 = vmatprep.mubr.f32.mxu0 0.0
    %3184 = vmatmul.mubr.f32.gmra.mrb[0].mxu0 %v3108
    %v3185 = vpop.f32.mrb[0].mxu0
    %v3186 = vadd.f32 0.0, %v3185
    %v3187 = vpop.f32.mrb[0].mxu0
    %3188 = vdwg.mxu0
    %v3189 = vlaneseq
    %v3190 = vshrl.u32 %v3189, 7
    %v3191 = vsub.s32 5, %v3190
    %v3192 = vrot.slane %v2233, %v3191
    %v3193 = vadd.f32 %v3176, %v3192
    %v3194 = vadd.f32 %v3181, %v3192
    %v3195 = vadd.f32 %v3186, %v3192
    %v3196 = vadd.f32 %v2990, %v3193
    %v3197 = vadd.f32 %v2991, %v3194
    %v3198 = vadd.f32 %v2992, %v3195
    %v3199 = vsel %vm196, %v3196, 0.0
    %3200 = vadd.xlane.f32.xlu0 %v3199
    %v3201 = vpop.xlane.xlu0 %3200
    %v3202 = vsel %vm196, %v3197, 0.0
    %3203 = vadd.xlane.f32.xlu0 %v3202
    %v3204 = vpop.xlane.xlu0 %3203
    %v3205 = vsel %vm904, %v3198, 0.0
    %3206 = vadd.xlane.f32.xlu0 %v3205
    %v3207 = vpop.xlane.xlu0 %3206
    %v3208 = vmul.f32 %v3201, %v908
    %v3209 = vmul.f32 %v3204, %v908
    %v3210 = vmul.f32 %v3207, %v908
    %v3211 = vsub.f32 %v3196, %v3208
    %v3212 = vsub.f32 %v3197, %v3209
    %v3213 = vsub.f32 %v3198, %v3210
    %v3214 = vmul.f32 %v3211, %v3211
    %v3215 = vmul.f32 %v3212, %v3212
    %v3216 = vmul.f32 %v3213, %v3213
    %v3217 = vsel %vm196, %v3214, 0.0
    %3218 = vadd.xlane.f32.xlu0 %v3217
    %v3219 = vpop.xlane.xlu0 %3218
    %v3220 = vsel %vm196, %v3215, 0.0
    %3221 = vadd.xlane.f32.xlu0 %v3220
    %v3222 = vpop.xlane.xlu0 %3221
    %v3223 = vsel %vm904, %v3216, 0.0
    %3224 = vadd.xlane.f32.xlu0 %v3223
    %v3225 = vpop.xlane.xlu0 %3224
    %v3226 = vmul.f32 %v3219, %v908
    %v3227 = vmul.f32 %v3222, %v908
    %v3228 = vmul.f32 %v3225, %v908
    %v3229 = vadd.f32 %v3226, 1e-05
    %v3230 = vadd.f32 %v3227, 1e-05
    %v3231 = vadd.f32 %v3228, 1e-05
    %v3232 = vrsqrt.pop %v3229
    %v3233 = vrsqrt.pop %v3230
    %v3234 = vrsqrt.pop %v3231
    %v3235 = vmul.f32 %v3211, %v3232
    %v3236 = vmul.f32 %v3212, %v3233
    %v3237 = vmul.f32 %v3213, %v3234
    %v3238 = vlaneseq
    %v3239 = vshrl.u32 %v3238, 7
    %v3240 = vsub.s32 6, %v3239
    %v3241 = vrot.slane %v2233, %v3240
    %v3242 = vmul.f32 %v3235, %v3241
    %v3243 = vmul.f32 %v3236, %v3241
    %v3244 = vmul.f32 %v3237, %v3241
    %v3245 = vlaneseq
    %v3246 = vshrl.u32 %v3245, 7
    %v3247 = vsub.s32 7, %v3246
    %v3248 = vrot.slane %v2233, %v3247
    %v3249 = vadd.f32 %v3242, %v3248
    %v3250 = vadd.f32 %v3243, %v3248
    %v3251 = vadd.f32 %v3244, %v3248
    %3252 = vst.msk [vmem:[%s6] sm:$0xff] %vm196, %v3249
    %3253 = vst.msk [vmem:[%s6 + $0x8] sm:$0xff] %vm196, %v3250
    %3254 = vst.msk [vmem:[%s6 + $0x10] sm:$0x3] %vm904, %v3251
    // Predicated region
    $region30: #{key_pw_encoder_forward.1} parent=1 // pred_check
      _
    $region31: #{key_pw_encoder_forward.1} parent=1 // pred_check_branch
      %3256 = sbr.rel (0) target = $region33
    $region32: #{key_pw_encoder_forward.1} parent=1 // pred_region
      _
    $region33: #{key_pw_encoder_forward.1} parent=1 // pred_fallthru
      _
    // Predicated region
    $region34: #{key_pw_encoder_forward.1} parent=1 // pred_check
      _
    $region35: #{key_pw_encoder_forward.1} parent=1 // pred_check_branch
      %3258 = sbr.rel (0) target = $region37
    $region36: #{key_pw_encoder_forward.1} parent=1 // pred_region
      _
    $region37: #{key_pw_encoder_forward.1} parent=1 // pred_fallthru
      _
    %3259 = vsyncpa [#allocation3], 1

</llo_original>
